<compile_context>
chip_gen: v7x
topology: tpu7x:2x2x1
jax: 0.10.0
libtpu: 0.0.40
codegen_flags: <defaults>
</compile_context>

<pallas_src>
import math
import functools

import jax
import jax.numpy as jnp
from jax.experimental import pallas as pl
from jax.experimental.pallas import tpu as pltpu


# ------------------------------ fused decoder kernel ------------------------------ #

def _decoder_kernel(
    x_ref, mem_ref, tmask_ref, smask_ref,
    sa_wqkv_ref, sa_bqkv_ref, sa_wo_ref, sa_bo_ref,
    ca_wq_ref, ca_bq_ref, ca_wkv_ref, ca_bkv_ref, ca_wo_ref, ca_bo_ref,
    ln_src_g_ref, ln_src_b_ref, ln_ffn_g_ref, ln_ffn_b_ref,
    w1_ref, b1_ref, w2_ref, b2_ref,
    fin_g_ref, fin_b_ref,
    o_ref,
    x_scr, kv_scr,
    *, n_heads: int):
    """Grid = (batch, layer).  One full TransformerLayer per grid step; the residual
    stream and the (shared-weight) cross-attention K/V stay resident in VMEM scratch."""
    S, D = x_ref.shape
    dh = D // n_heads
    scale = 1.0 / math.sqrt(dh)
    layer = pl.program_id(1)

    def matmul(a, wt_ref, b_ref):
        # bf16 MXU matmul with f32 accumulation + bias (weights pre-transposed, bf16).
        return jnp.dot(a.astype(jnp.bfloat16), wt_ref[...],
                       preferred_element_type=jnp.float32) + b_ref[...]

    def layer_norm(v, g_ref, b_ref):
        # LayerNorm over last dim, eps = 1e-5 (PyTorch default); stats in f32.
        mu = jnp.mean(v, axis=-1, keepdims=True)
        var = jnp.mean(jnp.square(v - mu), axis=-1, keepdims=True)
        return (v - mu) * jax.lax.rsqrt(var + 1e-5) * g_ref[...] + b_ref[...]

    def mask_bias(m_ref):
        # int8 mask -> additive bias, computed ONCE per attention call (not per head).
        m = m_ref[...].astype(jnp.float32)
        return jnp.where(m > 0, jnp.float32(0.0), jnp.float32(-1e9))

    def split_heads(m2):
        # (S, D) -> (H, S, dh): lane slices stacked on a new leading (batch) axis.
        return jnp.stack([m2[:, h * dh:(h + 1) * dh] for h in range(n_heads)], axis=0)

    def mha(q2, k2, v2, bias):
        # q2: (Sq, D), k2/v2: (Sk, D).  One batched dot over the head axis; operands
        # cast to bf16 right at the MXU, scores/softmax stay f32.
        qh = split_heads(q2 * scale).astype(jnp.bfloat16)     # (H, Sq, dh)
        kh = split_heads(k2).astype(jnp.bfloat16)              # (H, Sk, dh)
        vh = split_heads(v2).astype(jnp.bfloat16)              # (H, Sk, dh)
        s = jax.lax.dot_general(qh, kh, (((2,), (2,)), ((0,), (0,))),
                                preferred_element_type=jnp.float32)   # (H, Sq, Sk)
        if bias is not None:
            s = s + bias[None, :, :]
        s = s - jnp.max(s, axis=-1, keepdims=True)
        p = jnp.exp(s)
        p = p * pl.reciprocal(jnp.sum(p, axis=-1, keepdims=True), approx=True)
        o = jax.lax.dot_general(p.astype(jnp.bfloat16), vh, (((2,), (1,)), ((0,), (0,))),
                                preferred_element_type=jnp.float32)   # (H, Sq, dh)
        # back to lane-dense (Sq, D) so the output projection needs no transpose
        return jnp.concatenate([o[h] for h in range(n_heads)], axis=-1)

    def self_attn(inp, bias):
        qkv = matmul(inp, sa_wqkv_ref, sa_bqkv_ref)            # (S, 3D): fused Wq|Wk|Wv
        a = mha(qkv[:, :D], qkv[:, D:2 * D], qkv[:, 2 * D:], bias)
        return matmul(a, sa_wo_ref, sa_bo_ref)

    # ----- per-batch-row initialisation (layer == 0) --------------------------------
    @pl.when(layer == 0)
    def _():
        x_scr[...] = x_ref[...]
        # clone_module_list => all layers share ca_wkv, so K/V of memory is computed
        # once per batch row and reused from scratch for every layer.
        kv_scr[...] = matmul(mem_ref[...], ca_wkv_ref, ca_bkv_ref)

    x = x_scr[...]                                             # (S, D) f32 residual

    # ----- self attention (dropout == identity in eval mode) ------------------------
    z = self_attn(x, None)                                     # self_attn(x): no mask
    x = x + self_attn(z, mask_bias(tmask_ref))                 # residual

    # ----- cross attention over encoder memory --------------------------------------
    zs = layer_norm(x, ln_src_g_ref, ln_src_b_ref)
    q = matmul(zs, ca_wq_ref, ca_bq_ref)                       # (S, D)
    kv = kv_scr[...]                                           # (S_src, 2D): fused Wk|Wv
    ca = mha(q, kv[:, :D], kv[:, D:], mask_bias(smask_ref))
    x = x + matmul(ca, ca_wo_ref, ca_bo_ref)                   # residual

    # ----- feed-forward --------------------------------------------------------------
    zf = layer_norm(x, ln_ffn_g_ref, ln_ffn_b_ref)
    h = jnp.maximum(matmul(zf, w1_ref, b1_ref), 0.0)
    x = x + matmul(h, w2_ref, b2_ref)                          # residual

    x_scr[...] = x                                             # carry to next layer

    # ----- final Decoder LayerNorm on the last layer step ---------------------------
    @pl.when(layer == pl.num_programs(1) - 1)
    def _():
        o_ref[...] = layer_norm(x, fin_g_ref, fin_b_ref)


# --------------------------------- wrapper ---------------------------------------- #

def decoder_forward(params, x, memory, src_mask, tgt_mask, *, n_heads, n_layers):
    B, S, D = x.shape
    S_src = memory.shape[1]
    lp = params["layer"]
    F = lp["w1t"].shape[1]

    # masks as int8 (4x less HBM traffic); kernel uses mask > 0 -> attend.
    tgt_i8 = (tgt_mask > 0).astype(jnp.int8)
    src_i8 = (src_mask > 0).astype(jnp.int8)

    weights = (lp["sa_wqkv"], lp["sa_bqkv"], lp["sa_wo"], lp["sa_bo"],
               lp["ca_wq"], lp["ca_bq"], lp["ca_wkv"], lp["ca_bkv"],
               lp["ca_wo"], lp["ca_bo"],
               lp["ln_src_g"], lp["ln_src_b"], lp["ln_ffn_g"], lp["ln_ffn_b"],
               lp["w1t"], lp["b1"], lp["w2t"], lp["b2"],
               params["norm_g"], params["norm_b"])

    def wspec(arr):
        shp = arr.shape
        return pl.BlockSpec(shp, lambda *_: (0,) * len(shp))  # resident across grid

    in_specs = [
        pl.BlockSpec((None, S, D), lambda b, l: (b, 0, 0)),        # x
        pl.BlockSpec((None, S_src, D), lambda b, l: (b, 0, 0)),    # memory
        pl.BlockSpec((None, S, S), lambda b, l: (b, 0, 0)),        # tgt_mask (int8)
        pl.BlockSpec((None, S, S_src), lambda b, l: (b, 0, 0)),    # src_mask (int8)
    ] + [wspec(w) for w in weights]

    # Advisory cost estimate so XLA can schedule around the custom call.
    flops_layer = B * (
        2 * (2 * S * D * 3 * D)          # two fused QKV projections
        + 2 * (2 * S * D * D)            # two self-attn output projections
        + 2 * (4 * S * S * D)            # two self-attn QK^T + PV
        + 2 * (2 * S * D * D)            # cross-attn q / out projections
        + 4 * S * S_src * D              # cross-attn QK^T + PV
        + 4 * S * D * F)                 # FFN
    flops = n_layers * flops_layer + B * (2 * S_src * D * 2 * D)    # shared KV proj, once
    transcendentals = B * n_layers * n_heads * (2 * S * S + S * S_src)
    bytes_accessed = (sum(int(w.nbytes) for w in weights)
                      + int(x.nbytes) * 2 + int(memory.nbytes)
                      + int(tgt_i8.nbytes) + int(src_i8.nbytes))

    return pl.pallas_call(
        functools.partial(_decoder_kernel, n_heads=n_heads),
        out_shape=jax.ShapeDtypeStruct((B, S, D), jnp.float32),
        grid=(B, n_layers),
        in_specs=in_specs,
        out_specs=pl.BlockSpec((None, S, D), lambda b, l: (b, 0, 0)),
        scratch_shapes=[
            pltpu.VMEM((S, D), jnp.float32),          # residual stream, carried over layers
            pltpu.VMEM((S_src, 2 * D), jnp.float32),  # shared cross-attn K|V of memory
        ],
        compiler_params=pltpu.CompilerParams(
            dimension_semantics=("parallel", "arbitrary"),
            vmem_limit_bytes=64 * 1024 * 1024),
        cost_estimate=pl.CostEstimate(flops=int(flops),
                                      transcendentals=int(transcendentals),
                                      bytes_accessed=int(bytes_accessed)),
    )(x, memory, tgt_i8, src_i8, *weights)


# ---------------------------------- params -------------------------------------- #

def init_params(key, d_model, n_heads, features):
    ks = jax.random.split(key, 10)
    s = 0.05

    def w(k, out_dim, in_dim):                 # PyTorch nn.Linear layout: (out, in)
        return jax.random.normal(k, (out_dim, in_dim), jnp.float32) * s

    def t16(wt):                               # pre-transpose once -> (in, out) bf16
        return wt.T.astype(jnp.bfloat16)

    zeros = lambda n: jnp.zeros((1, n), jnp.float32)
    ones = lambda n: jnp.ones((1, n), jnp.float32)

    layer = {
        # self attention: fused Wq|Wk|Wv
        "sa_wqkv": jnp.concatenate([t16(w(ks[0], d_model, d_model)),
                                    t16(w(ks[1], d_model, d_model)),
                                    t16(w(ks[2], d_model, d_model))], axis=1),
        "sa_bqkv": zeros(3 * d_model),
        "sa_wo": t16(w(ks[3], d_model, d_model)), "sa_bo": zeros(d_model),
        # cross attention: Wq separate, fused Wk|Wv (projected from memory)
        "ca_wq": t16(w(ks[4], d_model, d_model)), "ca_bq": zeros(d_model),
        "ca_wkv": jnp.concatenate([t16(w(ks[5], d_model, d_model)),
                                   t16(w(ks[6], d_model, d_model))], axis=1),
        "ca_bkv": zeros(2 * d_model),
        "ca_wo": t16(w(ks[7], d_model, d_model)), "ca_bo": zeros(d_model),
        # LayerNorms
        "ln_src_g": ones(d_model), "ln_src_b": zeros(d_model),
        "ln_ffn_g": ones(d_model), "ln_ffn_b": zeros(d_model),
        # FFN
        "w1t": t16(w(ks[8], features, d_model)), "b1": zeros(features),
        "w2t": t16(w(ks[9], d_model, features)), "b2": zeros(d_model),
    }
    return {"layer": layer, "norm_g": ones(d_model), "norm_b": zeros(d_model)}


# ----------------------------------- main ---------------------------------------- #

if __name__ == "__main__":
    B, S, S_src, D = 2, 8, 16, 32
    n_heads = 4
    features = 64
    n_layers = 2

    key = jax.random.PRNGKey(0)
    kx, km, kp = jax.random.split(key, 3)

    x = jax.random.normal(kx, (B, S, D), jnp.float32)
    memory = jax.random.normal(km, (B, S_src, D), jnp.float32)
    # tgt_mask: causal (1 = attend, 0 = masked); src_mask: attend to all memory positions
    tgt_mask = jnp.broadcast_to(jnp.tril(jnp.ones((S, S), jnp.float32)), (B, S, S))
    src_mask = jnp.ones((B, S, S_src), jnp.float32)

    params = init_params(kp, D, n_heads, features)

    fwd = jax.jit(functools.partial(decoder_forward, n_heads=n_heads, n_layers=n_layers))
    out = fwd(params, x, memory, src_mask, tgt_mask)
    out = jax.block_until_ready(out)

    assert out.shape == (B, S, D) and out.dtype == jnp.float32
    assert bool(jnp.all(jnp.isfinite(out)))
    print("KERNEL_OK")
</pallas_src>

<mosaic_0001>
module attributes {stable_mosaic.version = 11 : i64} {
  func.func @_decoder_kernel(%arg0: i32, %arg1: i32, %arg2: memref<1x8x32xf32, #tpu.memory_space<vmem>>, %arg3: memref<1x16x32xf32, #tpu.memory_space<vmem>>, %arg4: memref<1x8x8xi8, #tpu.memory_space<vmem>>, %arg5: memref<1x8x16xi8, #tpu.memory_space<vmem>>, %arg6: memref<32x96xbf16, #tpu.memory_space<vmem>>, %arg7: memref<1x96xf32, #tpu.memory_space<vmem>>, %arg8: memref<32x32xbf16, #tpu.memory_space<vmem>>, %arg9: memref<1x32xf32, #tpu.memory_space<vmem>>, %arg10: memref<32x32xbf16, #tpu.memory_space<vmem>>, %arg11: memref<1x32xf32, #tpu.memory_space<vmem>>, %arg12: memref<32x64xbf16, #tpu.memory_space<vmem>>, %arg13: memref<1x64xf32, #tpu.memory_space<vmem>>, %arg14: memref<32x32xbf16, #tpu.memory_space<vmem>>, %arg15: memref<1x32xf32, #tpu.memory_space<vmem>>, %arg16: memref<1x32xf32, #tpu.memory_space<vmem>>, %arg17: memref<1x32xf32, #tpu.memory_space<vmem>>, %arg18: memref<1x32xf32, #tpu.memory_space<vmem>>, %arg19: memref<1x32xf32, #tpu.memory_space<vmem>>, %arg20: memref<32x64xbf16, #tpu.memory_space<vmem>>, %arg21: memref<1x64xf32, #tpu.memory_space<vmem>>, %arg22: memref<64x32xbf16, #tpu.memory_space<vmem>>, %arg23: memref<1x32xf32, #tpu.memory_space<vmem>>, %arg24: memref<1x32xf32, #tpu.memory_space<vmem>>, %arg25: memref<1x32xf32, #tpu.memory_space<vmem>>, %arg26: memref<1x8x32xf32, #tpu.memory_space<vmem>>, %arg27: memref<8x32xf32, #tpu.memory_space<vmem>>, %arg28: memref<16x64xf32, #tpu.memory_space<vmem>>) attributes {dimension_semantics = [#tpu.dimension_semantics<parallel>, #tpu.dimension_semantics<arbitrary>], iteration_bounds = array<i64: 2, 2>, scalar_prefetch = 0 : i64, scratch_operands = 2 : i64, tpu.core_type = #tpu.core_type<tc>, window_params = [{transform_indices = @transform_0, window_bounds = array<i64: 1, 8, 32>}, {transform_indices = @transform_1, window_bounds = array<i64: 1, 16, 32>}, {transform_indices = @transform_2, window_bounds = array<i64: 1, 8, 8>}, {transform_indices = @transform_3, window_bounds = array<i64: 1, 8, 16>}, {pipeline_mode = #tpu.pipeline_mode<synchronous>, transform_indices = @transform_4, window_bounds = array<i64: 32, 96>}, {pipeline_mode = #tpu.pipeline_mode<synchronous>, transform_indices = @transform_5, window_bounds = array<i64: 1, 96>}, {pipeline_mode = #tpu.pipeline_mode<synchronous>, transform_indices = @transform_6, window_bounds = array<i64: 32, 32>}, {pipeline_mode = #tpu.pipeline_mode<synchronous>, transform_indices = @transform_7, window_bounds = array<i64: 1, 32>}, {pipeline_mode = #tpu.pipeline_mode<synchronous>, transform_indices = @transform_8, window_bounds = array<i64: 32, 32>}, {pipeline_mode = #tpu.pipeline_mode<synchronous>, transform_indices = @transform_9, window_bounds = array<i64: 1, 32>}, {pipeline_mode = #tpu.pipeline_mode<synchronous>, transform_indices = @transform_10, window_bounds = array<i64: 32, 64>}, {pipeline_mode = #tpu.pipeline_mode<synchronous>, transform_indices = @transform_11, window_bounds = array<i64: 1, 64>}, {pipeline_mode = #tpu.pipeline_mode<synchronous>, transform_indices = @transform_12, window_bounds = array<i64: 32, 32>}, {pipeline_mode = #tpu.pipeline_mode<synchronous>, transform_indices = @transform_13, window_bounds = array<i64: 1, 32>}, {pipeline_mode = #tpu.pipeline_mode<synchronous>, transform_indices = @transform_14, window_bounds = array<i64: 1, 32>}, {pipeline_mode = #tpu.pipeline_mode<synchronous>, transform_indices = @transform_15, window_bounds = array<i64: 1, 32>}, {pipeline_mode = #tpu.pipeline_mode<synchronous>, transform_indices = @transform_16, window_bounds = array<i64: 1, 32>}, {pipeline_mode = #tpu.pipeline_mode<synchronous>, transform_indices = @transform_17, window_bounds = array<i64: 1, 32>}, {pipeline_mode = #tpu.pipeline_mode<synchronous>, transform_indices = @transform_18, window_bounds = array<i64: 32, 64>}, {pipeline_mode = #tpu.pipeline_mode<synchronous>, transform_indices = @transform_19, window_bounds = array<i64: 1, 64>}, {pipeline_mode = #tpu.pipeline_mode<synchronous>, transform_indices = @transform_20, window_bounds = array<i64: 64, 32>}, {pipeline_mode = #tpu.pipeline_mode<synchronous>, transform_indices = @transform_21, window_bounds = array<i64: 1, 32>}, {pipeline_mode = #tpu.pipeline_mode<synchronous>, transform_indices = @transform_22, window_bounds = array<i64: 1, 32>}, {pipeline_mode = #tpu.pipeline_mode<synchronous>, transform_indices = @transform_23, window_bounds = array<i64: 1, 32>}, {transform_indices = @transform_24, window_bounds = array<i64: 1, 8, 32>}]} {
    %c0_i32 = arith.constant 0 : i32
    %0 = arith.cmpi eq, %arg1, %c0_i32 : i32
    %1 = arith.extui %0 : i1 to i32
    %c0_i32_0 = arith.constant 0 : i32
    %2 = arith.cmpi ne, %1, %c0_i32_0 : i32
    scf.if %2 {
      %c0_92 = arith.constant 0 : index
      %c0_93 = arith.constant 0 : index
      %c0_94 = arith.constant 0 : index
      %302 = vector.load %arg2[%c0_92, %c0_93, %c0_94] : memref<1x8x32xf32, #tpu.memory_space<vmem>>, vector<1x8x32xf32>
      %303 = vector.shape_cast %302 : vector<1x8x32xf32> to vector<8x32xf32>
      %c0_95 = arith.constant 0 : index
      %c0_96 = arith.constant 0 : index
      %304 = vector.load %arg27[%c0_95, %c0_96] : memref<8x32xf32, #tpu.memory_space<vmem>>, vector<8x32xf32>
      tpu.vector_store %arg27[%c0_95, %c0_96], %303 {strides = array<i32>} : memref<8x32xf32, #tpu.memory_space<vmem>>, vector<8x32xf32>,
      %c0_97 = arith.constant 0 : index
      %c0_98 = arith.constant 0 : index
      %c0_99 = arith.constant 0 : index
      %305 = vector.load %arg3[%c0_97, %c0_98, %c0_99] : memref<1x16x32xf32, #tpu.memory_space<vmem>>, vector<1x16x32xf32>
      %306 = vector.shape_cast %305 : vector<1x16x32xf32> to vector<16x32xf32>
      %307 = arith.truncf %306 : vector<16x32xf32> to vector<16x32xbf16>
      %c0_100 = arith.constant 0 : index
      %c0_101 = arith.constant 0 : index
      %308 = vector.load %arg12[%c0_100, %c0_101] : memref<32x64xbf16, #tpu.memory_space<vmem>>, vector<32x64xbf16>
      %cst_102 = arith.constant dense<0.000000e+00> : vector<16x64xf32>
      %309 = tpu.matmul %307, %308, %cst_102 {dimension_numbers = #tpu.dot_dimension_numbers<[1], [0], [0], [1], [0, 0, 1, 1], [], []>} : vector<16x32xbf16>, vector<32x64xbf16>, vector<16x64xf32> -> vector<16x64xf32>
      %c0_103 = arith.constant 0 : index
      %c0_104 = arith.constant 0 : index
      %310 = vector.load %arg13[%c0_103, %c0_104] : memref<1x64xf32, #tpu.memory_space<vmem>>, vector<1x64xf32>
      %311 = vector.broadcast %310 : vector<1x64xf32> to vector<16x64xf32>
      %312 = arith.addf %309, %311 : vector<16x64xf32>
      %c0_105 = arith.constant 0 : index
      %c0_106 = arith.constant 0 : index
      %313 = vector.load %arg28[%c0_105, %c0_106] : memref<16x64xf32, #tpu.memory_space<vmem>>, vector<16x64xf32>
      tpu.vector_store %arg28[%c0_105, %c0_106], %312 {strides = array<i32>} : memref<16x64xf32, #tpu.memory_space<vmem>>, vector<16x64xf32>,
    } else {
    }
    %c0 = arith.constant 0 : index
    %c0_1 = arith.constant 0 : index
    %3 = vector.load %arg27[%c0, %c0_1] : memref<8x32xf32, #tpu.memory_space<vmem>>, vector<8x32xf32>
    %4 = arith.truncf %3 : vector<8x32xf32> to vector<8x32xbf16>
    %c0_2 = arith.constant 0 : index
    %c0_3 = arith.constant 0 : index
    %5 = vector.load %arg6[%c0_2, %c0_3] : memref<32x96xbf16, #tpu.memory_space<vmem>>, vector<32x96xbf16>
    %cst = arith.constant dense<0.000000e+00> : vector<8x96xf32>
    %6 = tpu.matmul %4, %5, %cst {dimension_numbers = #tpu.dot_dimension_numbers<[1], [0], [0], [1], [0, 0, 1, 1], [], []>} : vector<8x32xbf16>, vector<32x96xbf16>, vector<8x96xf32> -> vector<8x96xf32>
    %c0_4 = arith.constant 0 : index
    %c0_5 = arith.constant 0 : index
    %7 = vector.load %arg7[%c0_4, %c0_5] : memref<1x96xf32, #tpu.memory_space<vmem>>, vector<1x96xf32>
    %8 = vector.broadcast %7 : vector<1x96xf32> to vector<8x96xf32>
    %9 = arith.addf %6, %8 : vector<8x96xf32>
    %10 = vector.extract_strided_slice %9 {offsets = [0, 0], sizes = [8, 32], strides = [1, 1]} : vector<8x96xf32> to vector<8x32xf32>
    %11 = vector.extract_strided_slice %9 {offsets = [0, 32], sizes = [8, 32], strides = [1, 1]} : vector<8x96xf32> to vector<8x32xf32>
    %12 = vector.extract_strided_slice %9 {offsets = [0, 64], sizes = [8, 32], strides = [1, 1]} : vector<8x96xf32> to vector<8x32xf32>
    %cst_6 = arith.constant 0.353553385 : f32
    %13 = vector.broadcast %cst_6 : f32 to vector<8x32xf32>
    %14 = arith.mulf %10, %13 : vector<8x32xf32>
    %15 = vector.extract_strided_slice %14 {offsets = [0, 0], sizes = [8, 8], strides = [1, 1]} : vector<8x32xf32> to vector<8x8xf32>
    %16 = vector.extract_strided_slice %14 {offsets = [0, 8], sizes = [8, 8], strides = [1, 1]} : vector<8x32xf32> to vector<8x8xf32>
    %17 = vector.extract_strided_slice %14 {offsets = [0, 16], sizes = [8, 8], strides = [1, 1]} : vector<8x32xf32> to vector<8x8xf32>
    %18 = vector.extract_strided_slice %14 {offsets = [0, 24], sizes = [8, 8], strides = [1, 1]} : vector<8x32xf32> to vector<8x8xf32>
    %19 = vector.shape_cast %15 : vector<8x8xf32> to vector<1x8x8xf32>
    %20 = vector.shape_cast %16 : vector<8x8xf32> to vector<1x8x8xf32>
    %21 = vector.shape_cast %17 : vector<8x8xf32> to vector<1x8x8xf32>
    %22 = vector.shape_cast %18 : vector<8x8xf32> to vector<1x8x8xf32>
    %23 = tpu.concatenate %19, %20, %21, %22 in 0 : vector<1x8x8xf32>, vector<1x8x8xf32>, vector<1x8x8xf32>, vector<1x8x8xf32> -> vector<4x8x8xf32>
    %24 = arith.truncf %23 : vector<4x8x8xf32> to vector<4x8x8xbf16>
    %25 = vector.extract_strided_slice %11 {offsets = [0, 0], sizes = [8, 8], strides = [1, 1]} : vector<8x32xf32> to vector<8x8xf32>
    %26 = vector.extract_strided_slice %11 {offsets = [0, 8], sizes = [8, 8], strides = [1, 1]} : vector<8x32xf32> to vector<8x8xf32>
    %27 = vector.extract_strided_slice %11 {offsets = [0, 16], sizes = [8, 8], strides = [1, 1]} : vector<8x32xf32> to vector<8x8xf32>
    %28 = vector.extract_strided_slice %11 {offsets = [0, 24], sizes = [8, 8], strides = [1, 1]} : vector<8x32xf32> to vector<8x8xf32>
    %29 = vector.shape_cast %25 : vector<8x8xf32> to vector<1x8x8xf32>
    %30 = vector.shape_cast %26 : vector<8x8xf32> to vector<1x8x8xf32>
    %31 = vector.shape_cast %27 : vector<8x8xf32> to vector<1x8x8xf32>
    %32 = vector.shape_cast %28 : vector<8x8xf32> to vector<1x8x8xf32>
    %33 = tpu.concatenate %29, %30, %31, %32 in 0 : vector<1x8x8xf32>, vector<1x8x8xf32>, vector<1x8x8xf32>, vector<1x8x8xf32> -> vector<4x8x8xf32>
    %34 = arith.truncf %33 : vector<4x8x8xf32> to vector<4x8x8xbf16>
    %35 = vector.extract_strided_slice %12 {offsets = [0, 0], sizes = [8, 8], strides = [1, 1]} : vector<8x32xf32> to vector<8x8xf32>
    %36 = vector.extract_strided_slice %12 {offsets = [0, 8], sizes = [8, 8], strides = [1, 1]} : vector<8x32xf32> to vector<8x8xf32>
    %37 = vector.extract_strided_slice %12 {offsets = [0, 16], sizes = [8, 8], strides = [1, 1]} : vector<8x32xf32> to vector<8x8xf32>
    %38 = vector.extract_strided_slice %12 {offsets = [0, 24], sizes = [8, 8], strides = [1, 1]} : vector<8x32xf32> to vector<8x8xf32>
    %39 = vector.shape_cast %35 : vector<8x8xf32> to vector<1x8x8xf32>
    %40 = vector.shape_cast %36 : vector<8x8xf32> to vector<1x8x8xf32>
    %41 = vector.shape_cast %37 : vector<8x8xf32> to vector<1x8x8xf32>
    %42 = vector.shape_cast %38 : vector<8x8xf32> to vector<1x8x8xf32>
    %43 = tpu.concatenate %39, %40, %41, %42 in 0 : vector<1x8x8xf32>, vector<1x8x8xf32>, vector<1x8x8xf32>, vector<1x8x8xf32> -> vector<4x8x8xf32>
    %44 = arith.truncf %43 : vector<4x8x8xf32> to vector<4x8x8xbf16>
    %cst_7 = arith.constant dense<0.000000e+00> : vector<4x8x8xf32>
    %45 = tpu.matmul %24, %34, %cst_7 {dimension_numbers = #tpu.dot_dimension_numbers<[2], [2], [1], [1], [0, 0, 0, 1, 1, 1], [0], [0]>} : vector<4x8x8xbf16>, vector<4x8x8xbf16>, vector<4x8x8xf32> -> vector<4x8x8xf32>
    %cst_8 = arith.constant dense<0xFF800000> : vector<4x8xf32>
    %46 = vector.multi_reduction <maximumf>, %45, %cst_8 [2] : vector<4x8x8xf32> to vector<4x8xf32>
    %47 = vector.shape_cast %46 : vector<4x8xf32> to vector<4x8x1xf32>
    %48 = vector.broadcast %47 : vector<4x8x1xf32> to vector<4x8x8xf32>
    %49 = arith.subf %45, %48 : vector<4x8x8xf32>
    %50 = math.exp %49 : vector<4x8x8xf32>
    %cst_9 = arith.constant dense<0.000000e+00> : vector<4x8xf32>
    %51 = vector.multi_reduction <add>, %50, %cst_9 [2] : vector<4x8x8xf32> to vector<4x8xf32>
    %52 = vector.shape_cast %51 : vector<4x8xf32> to vector<4x8x1xf32>
    %53 = tpu.reciprocal %52 {approx = true} : vector<4x8x1xf32> -> vector<4x8x1xf32>
    %54 = vector.broadcast %53 : vector<4x8x1xf32> to vector<4x8x8xf32>
    %55 = arith.mulf %50, %54 : vector<4x8x8xf32>
    %56 = arith.truncf %55 : vector<4x8x8xf32> to vector<4x8x8xbf16>
    %cst_10 = arith.constant dense<0.000000e+00> : vector<4x8x8xf32>
    %57 = tpu.matmul %56, %44, %cst_10 {dimension_numbers = #tpu.dot_dimension_numbers<[2], [1], [1], [2], [0, 0, 0, 1, 1, 2], [0], [0]>} : vector<4x8x8xbf16>, vector<4x8x8xbf16>, vector<4x8x8xf32> -> vector<4x8x8xf32>
    %58 = vector.extract_strided_slice %57 {offsets = [0, 0, 0], sizes = [1, 8, 8], strides = [1, 1, 1]} : vector<4x8x8xf32> to vector<1x8x8xf32>
    %59 = vector.shape_cast %58 : vector<1x8x8xf32> to vector<8x8xf32>
    %60 = vector.extract_strided_slice %57 {offsets = [1, 0, 0], sizes = [1, 8, 8], strides = [1, 1, 1]} : vector<4x8x8xf32> to vector<1x8x8xf32>
    %61 = vector.shape_cast %60 : vector<1x8x8xf32> to vector<8x8xf32>
    %62 = vector.extract_strided_slice %57 {offsets = [2, 0, 0], sizes = [1, 8, 8], strides = [1, 1, 1]} : vector<4x8x8xf32> to vector<1x8x8xf32>
    %63 = vector.shape_cast %62 : vector<1x8x8xf32> to vector<8x8xf32>
    %64 = vector.extract_strided_slice %57 {offsets = [3, 0, 0], sizes = [1, 8, 8], strides = [1, 1, 1]} : vector<4x8x8xf32> to vector<1x8x8xf32>
    %65 = vector.shape_cast %64 : vector<1x8x8xf32> to vector<8x8xf32>
    %66 = tpu.concatenate %59, %61, %63, %65 in 1 : vector<8x8xf32>, vector<8x8xf32>, vector<8x8xf32>, vector<8x8xf32> -> vector<8x32xf32>
    %67 = arith.truncf %66 : vector<8x32xf32> to vector<8x32xbf16>
    %c0_11 = arith.constant 0 : index
    %c0_12 = arith.constant 0 : index
    %68 = vector.load %arg8[%c0_11, %c0_12] : memref<32x32xbf16, #tpu.memory_space<vmem>>, vector<32x32xbf16>
    %cst_13 = arith.constant dense<0.000000e+00> : vector<8x32xf32>
    %69 = tpu.matmul %67, %68, %cst_13 {dimension_numbers = #tpu.dot_dimension_numbers<[1], [0], [0], [1], [0, 0, 1, 1], [], []>} : vector<8x32xbf16>, vector<32x32xbf16>, vector<8x32xf32> -> vector<8x32xf32>
    %c0_14 = arith.constant 0 : index
    %c0_15 = arith.constant 0 : index
    %70 = vector.load %arg9[%c0_14, %c0_15] : memref<1x32xf32, #tpu.memory_space<vmem>>, vector<1x32xf32>
    %71 = vector.broadcast %70 : vector<1x32xf32> to vector<8x32xf32>
    %72 = arith.addf %69, %71 : vector<8x32xf32>
    %c0_16 = arith.constant 0 : index
    %c0_17 = arith.constant 0 : index
    %c0_18 = arith.constant 0 : index
    %73 = vector.load %arg4[%c0_16, %c0_17, %c0_18] : memref<1x8x8xi8, #tpu.memory_space<vmem>>, vector<1x8x8xi8>
    %74 = vector.shape_cast %73 : vector<1x8x8xi8> to vector<8x8xi8>
    %75 = arith.sitofp %74 : vector<8x8xi8> to vector<8x8xf32>
    %cst_19 = arith.constant 0.000000e+00 : f32
    %76 = vector.broadcast %cst_19 : f32 to vector<8x8xf32>
    %77 = arith.cmpf ogt, %75, %76 : vector<8x8xf32>
    %cst_20 = arith.constant 0.000000e+00 : f32
    %cst_21 = arith.constant -1.000000e+09 : f32
    %78 = vector.broadcast %cst_20 : f32 to vector<8x8xf32>
    %79 = vector.broadcast %cst_21 : f32 to vector<8x8xf32>
    %80 = arith.select %77, %78, %79 : vector<8x8xi1>, vector<8x8xf32>
    %81 = arith.truncf %72 : vector<8x32xf32> to vector<8x32xbf16>
    %c0_22 = arith.constant 0 : index
    %c0_23 = arith.constant 0 : index
    %82 = vector.load %arg6[%c0_22, %c0_23] : memref<32x96xbf16, #tpu.memory_space<vmem>>, vector<32x96xbf16>
    %cst_24 = arith.constant dense<0.000000e+00> : vector<8x96xf32>
    %83 = tpu.matmul %81, %82, %cst_24 {dimension_numbers = #tpu.dot_dimension_numbers<[1], [0], [0], [1], [0, 0, 1, 1], [], []>} : vector<8x32xbf16>, vector<32x96xbf16>, vector<8x96xf32> -> vector<8x96xf32>
    %c0_25 = arith.constant 0 : index
    %c0_26 = arith.constant 0 : index
    %84 = vector.load %arg7[%c0_25, %c0_26] : memref<1x96xf32, #tpu.memory_space<vmem>>, vector<1x96xf32>
    %85 = vector.broadcast %84 : vector<1x96xf32> to vector<8x96xf32>
    %86 = arith.addf %83, %85 : vector<8x96xf32>
    %87 = vector.extract_strided_slice %86 {offsets = [0, 0], sizes = [8, 32], strides = [1, 1]} : vector<8x96xf32> to vector<8x32xf32>
    %88 = vector.extract_strided_slice %86 {offsets = [0, 32], sizes = [8, 32], strides = [1, 1]} : vector<8x96xf32> to vector<8x32xf32>
    %89 = vector.extract_strided_slice %86 {offsets = [0, 64], sizes = [8, 32], strides = [1, 1]} : vector<8x96xf32> to vector<8x32xf32>
    %cst_27 = arith.constant 0.353553385 : f32
    %90 = vector.broadcast %cst_27 : f32 to vector<8x32xf32>
    %91 = arith.mulf %87, %90 : vector<8x32xf32>
    %92 = vector.extract_strided_slice %91 {offsets = [0, 0], sizes = [8, 8], strides = [1, 1]} : vector<8x32xf32> to vector<8x8xf32>
    %93 = vector.extract_strided_slice %91 {offsets = [0, 8], sizes = [8, 8], strides = [1, 1]} : vector<8x32xf32> to vector<8x8xf32>
    %94 = vector.extract_strided_slice %91 {offsets = [0, 16], sizes = [8, 8], strides = [1, 1]} : vector<8x32xf32> to vector<8x8xf32>
    %95 = vector.extract_strided_slice %91 {offsets = [0, 24], sizes = [8, 8], strides = [1, 1]} : vector<8x32xf32> to vector<8x8xf32>
    %96 = vector.shape_cast %92 : vector<8x8xf32> to vector<1x8x8xf32>
    %97 = vector.shape_cast %93 : vector<8x8xf32> to vector<1x8x8xf32>
    %98 = vector.shape_cast %94 : vector<8x8xf32> to vector<1x8x8xf32>
    %99 = vector.shape_cast %95 : vector<8x8xf32> to vector<1x8x8xf32>
    %100 = tpu.concatenate %96, %97, %98, %99 in 0 : vector<1x8x8xf32>, vector<1x8x8xf32>, vector<1x8x8xf32>, vector<1x8x8xf32> -> vector<4x8x8xf32>
    %101 = arith.truncf %100 : vector<4x8x8xf32> to vector<4x8x8xbf16>
    %102 = vector.extract_strided_slice %88 {offsets = [0, 0], sizes = [8, 8], strides = [1, 1]} : vector<8x32xf32> to vector<8x8xf32>
    %103 = vector.extract_strided_slice %88 {offsets = [0, 8], sizes = [8, 8], strides = [1, 1]} : vector<8x32xf32> to vector<8x8xf32>
    %104 = vector.extract_strided_slice %88 {offsets = [0, 16], sizes = [8, 8], strides = [1, 1]} : vector<8x32xf32> to vector<8x8xf32>
    %105 = vector.extract_strided_slice %88 {offsets = [0, 24], sizes = [8, 8], strides = [1, 1]} : vector<8x32xf32> to vector<8x8xf32>
    %106 = vector.shape_cast %102 : vector<8x8xf32> to vector<1x8x8xf32>
    %107 = vector.shape_cast %103 : vector<8x8xf32> to vector<1x8x8xf32>
    %108 = vector.shape_cast %104 : vector<8x8xf32> to vector<1x8x8xf32>
    %109 = vector.shape_cast %105 : vector<8x8xf32> to vector<1x8x8xf32>
    %110 = tpu.concatenate %106, %107, %108, %109 in 0 : vector<1x8x8xf32>, vector<1x8x8xf32>, vector<1x8x8xf32>, vector<1x8x8xf32> -> vector<4x8x8xf32>
    %111 = arith.truncf %110 : vector<4x8x8xf32> to vector<4x8x8xbf16>
    %112 = vector.extract_strided_slice %89 {offsets = [0, 0], sizes = [8, 8], strides = [1, 1]} : vector<8x32xf32> to vector<8x8xf32>
    %113 = vector.extract_strided_slice %89 {offsets = [0, 8], sizes = [8, 8], strides = [1, 1]} : vector<8x32xf32> to vector<8x8xf32>
    %114 = vector.extract_strided_slice %89 {offsets = [0, 16], sizes = [8, 8], strides = [1, 1]} : vector<8x32xf32> to vector<8x8xf32>
    %115 = vector.extract_strided_slice %89 {offsets = [0, 24], sizes = [8, 8], strides = [1, 1]} : vector<8x32xf32> to vector<8x8xf32>
    %116 = vector.shape_cast %112 : vector<8x8xf32> to vector<1x8x8xf32>
    %117 = vector.shape_cast %113 : vector<8x8xf32> to vector<1x8x8xf32>
    %118 = vector.shape_cast %114 : vector<8x8xf32> to vector<1x8x8xf32>
    %119 = vector.shape_cast %115 : vector<8x8xf32> to vector<1x8x8xf32>
    %120 = tpu.concatenate %116, %117, %118, %119 in 0 : vector<1x8x8xf32>, vector<1x8x8xf32>, vector<1x8x8xf32>, vector<1x8x8xf32> -> vector<4x8x8xf32>
    %121 = arith.truncf %120 : vector<4x8x8xf32> to vector<4x8x8xbf16>
    %cst_28 = arith.constant dense<0.000000e+00> : vector<4x8x8xf32>
    %122 = tpu.matmul %101, %111, %cst_28 {dimension_numbers = #tpu.dot_dimension_numbers<[2], [2], [1], [1], [0, 0, 0, 1, 1, 1], [0], [0]>} : vector<4x8x8xbf16>, vector<4x8x8xbf16>, vector<4x8x8xf32> -> vector<4x8x8xf32>
    %123 = vector.shape_cast %80 : vector<8x8xf32> to vector<1x8x8xf32>
    %124 = vector.broadcast %123 : vector<1x8x8xf32> to vector<4x8x8xf32>
    %125 = arith.addf %122, %124 : vector<4x8x8xf32>
    %cst_29 = arith.constant dense<0xFF800000> : vector<4x8xf32>
    %126 = vector.multi_reduction <maximumf>, %125, %cst_29 [2] : vector<4x8x8xf32> to vector<4x8xf32>
    %127 = vector.shape_cast %126 : vector<4x8xf32> to vector<4x8x1xf32>
    %128 = vector.broadcast %127 : vector<4x8x1xf32> to vector<4x8x8xf32>
    %129 = arith.subf %125, %128 : vector<4x8x8xf32>
    %130 = math.exp %129 : vector<4x8x8xf32>
    %cst_30 = arith.constant dense<0.000000e+00> : vector<4x8xf32>
    %131 = vector.multi_reduction <add>, %130, %cst_30 [2] : vector<4x8x8xf32> to vector<4x8xf32>
    %132 = vector.shape_cast %131 : vector<4x8xf32> to vector<4x8x1xf32>
    %133 = tpu.reciprocal %132 {approx = true} : vector<4x8x1xf32> -> vector<4x8x1xf32>
    %134 = vector.broadcast %133 : vector<4x8x1xf32> to vector<4x8x8xf32>
    %135 = arith.mulf %130, %134 : vector<4x8x8xf32>
    %136 = arith.truncf %135 : vector<4x8x8xf32> to vector<4x8x8xbf16>
    %cst_31 = arith.constant dense<0.000000e+00> : vector<4x8x8xf32>
    %137 = tpu.matmul %136, %121, %cst_31 {dimension_numbers = #tpu.dot_dimension_numbers<[2], [1], [1], [2], [0, 0, 0, 1, 1, 2], [0], [0]>} : vector<4x8x8xbf16>, vector<4x8x8xbf16>, vector<4x8x8xf32> -> vector<4x8x8xf32>
    %138 = vector.extract_strided_slice %137 {offsets = [0, 0, 0], sizes = [1, 8, 8], strides = [1, 1, 1]} : vector<4x8x8xf32> to vector<1x8x8xf32>
    %139 = vector.shape_cast %138 : vector<1x8x8xf32> to vector<8x8xf32>
    %140 = vector.extract_strided_slice %137 {offsets = [1, 0, 0], sizes = [1, 8, 8], strides = [1, 1, 1]} : vector<4x8x8xf32> to vector<1x8x8xf32>
    %141 = vector.shape_cast %140 : vector<1x8x8xf32> to vector<8x8xf32>
    %142 = vector.extract_strided_slice %137 {offsets = [2, 0, 0], sizes = [1, 8, 8], strides = [1, 1, 1]} : vector<4x8x8xf32> to vector<1x8x8xf32>
    %143 = vector.shape_cast %142 : vector<1x8x8xf32> to vector<8x8xf32>
    %144 = vector.extract_strided_slice %137 {offsets = [3, 0, 0], sizes = [1, 8, 8], strides = [1, 1, 1]} : vector<4x8x8xf32> to vector<1x8x8xf32>
    %145 = vector.shape_cast %144 : vector<1x8x8xf32> to vector<8x8xf32>
    %146 = tpu.concatenate %139, %141, %143, %145 in 1 : vector<8x8xf32>, vector<8x8xf32>, vector<8x8xf32>, vector<8x8xf32> -> vector<8x32xf32>
    %147 = arith.truncf %146 : vector<8x32xf32> to vector<8x32xbf16>
    %c0_32 = arith.constant 0 : index
    %c0_33 = arith.constant 0 : index
    %148 = vector.load %arg8[%c0_32, %c0_33] : memref<32x32xbf16, #tpu.memory_space<vmem>>, vector<32x32xbf16>
    %cst_34 = arith.constant dense<0.000000e+00> : vector<8x32xf32>
    %149 = tpu.matmul %147, %148, %cst_34 {dimension_numbers = #tpu.dot_dimension_numbers<[1], [0], [0], [1], [0, 0, 1, 1], [], []>} : vector<8x32xbf16>, vector<32x32xbf16>, vector<8x32xf32> -> vector<8x32xf32>
    %c0_35 = arith.constant 0 : index
    %c0_36 = arith.constant 0 : index
    %150 = vector.load %arg9[%c0_35, %c0_36] : memref<1x32xf32, #tpu.memory_space<vmem>>, vector<1x32xf32>
    %151 = vector.broadcast %150 : vector<1x32xf32> to vector<8x32xf32>
    %152 = arith.addf %149, %151 : vector<8x32xf32>
    %153 = arith.addf %3, %152 : vector<8x32xf32>
    %cst_37 = arith.constant dense<0.000000e+00> : vector<8xf32>
    %154 = vector.multi_reduction <add>, %153, %cst_37 [1] : vector<8x32xf32> to vector<8xf32>
    %155 = vector.shape_cast %154 : vector<8xf32> to vector<8x1xf32>
    %cst_38 = arith.constant 3.200000e+01 : f32
    %156 = vector.broadcast %cst_38 : f32 to vector<8x1xf32>
    %157 = arith.divf %155, %156 : vector<8x1xf32>
    %158 = vector.broadcast %157 : vector<8x1xf32> to vector<8x32xf32>
    %159 = arith.subf %153, %158 : vector<8x32xf32>
    %160 = arith.mulf %159, %159 : vector<8x32xf32>
    %cst_39 = arith.constant dense<0.000000e+00> : vector<8xf32>
    %161 = vector.multi_reduction <add>, %160, %cst_39 [1] : vector<8x32xf32> to vector<8xf32>
    %162 = vector.shape_cast %161 : vector<8xf32> to vector<8x1xf32>
    %cst_40 = arith.constant 3.200000e+01 : f32
    %163 = vector.broadcast %cst_40 : f32 to vector<8x1xf32>
    %164 = arith.divf %162, %163 : vector<8x1xf32>
    %165 = vector.broadcast %157 : vector<8x1xf32> to vector<8x32xf32>
    %166 = arith.subf %153, %165 : vector<8x32xf32>
    %cst_41 = arith.constant 9.99999974E-6 : f32
    %167 = vector.broadcast %cst_41 : f32 to vector<8x1xf32>
    %168 = arith.addf %164, %167 : vector<8x1xf32>
    %169 = math.rsqrt %168 : vector<8x1xf32>
    %170 = vector.broadcast %169 : vector<8x1xf32> to vector<8x32xf32>
    %171 = arith.mulf %166, %170 : vector<8x32xf32>
    %c0_42 = arith.constant 0 : index
    %c0_43 = arith.constant 0 : index
    %172 = vector.load %arg16[%c0_42, %c0_43] : memref<1x32xf32, #tpu.memory_space<vmem>>, vector<1x32xf32>
    %173 = vector.broadcast %172 : vector<1x32xf32> to vector<8x32xf32>
    %174 = arith.mulf %171, %173 : vector<8x32xf32>
    %c0_44 = arith.constant 0 : index
    %c0_45 = arith.constant 0 : index
    %175 = vector.load %arg17[%c0_44, %c0_45] : memref<1x32xf32, #tpu.memory_space<vmem>>, vector<1x32xf32>
    %176 = vector.broadcast %175 : vector<1x32xf32> to vector<8x32xf32>
    %177 = arith.addf %174, %176 : vector<8x32xf32>
    %178 = arith.truncf %177 : vector<8x32xf32> to vector<8x32xbf16>
    %c0_46 = arith.constant 0 : index
    %c0_47 = arith.constant 0 : index
    %179 = vector.load %arg10[%c0_46, %c0_47] : memref<32x32xbf16, #tpu.memory_space<vmem>>, vector<32x32xbf16>
    %cst_48 = arith.constant dense<0.000000e+00> : vector<8x32xf32>
    %180 = tpu.matmul %178, %179, %cst_48 {dimension_numbers = #tpu.dot_dimension_numbers<[1], [0], [0], [1], [0, 0, 1, 1], [], []>} : vector<8x32xbf16>, vector<32x32xbf16>, vector<8x32xf32> -> vector<8x32xf32>
    %c0_49 = arith.constant 0 : index
    %c0_50 = arith.constant 0 : index
    %181 = vector.load %arg11[%c0_49, %c0_50] : memref<1x32xf32, #tpu.memory_space<vmem>>, vector<1x32xf32>
    %182 = vector.broadcast %181 : vector<1x32xf32> to vector<8x32xf32>
    %183 = arith.addf %180, %182 : vector<8x32xf32>
    %c0_51 = arith.constant 0 : index
    %c0_52 = arith.constant 0 : index
    %184 = vector.load %arg28[%c0_51, %c0_52] : memref<16x64xf32, #tpu.memory_space<vmem>>, vector<16x64xf32>
    %185 = vector.extract_strided_slice %184 {offsets = [0, 0], sizes = [16, 32], strides = [1, 1]} : vector<16x64xf32> to vector<16x32xf32>
    %186 = vector.extract_strided_slice %184 {offsets = [0, 32], sizes = [16, 32], strides = [1, 1]} : vector<16x64xf32> to vector<16x32xf32>
    %c0_53 = arith.constant 0 : index
    %c0_54 = arith.constant 0 : index
    %c0_55 = arith.constant 0 : index
    %187 = vector.load %arg5[%c0_53, %c0_54, %c0_55] : memref<1x8x16xi8, #tpu.memory_space<vmem>>, vector<1x8x16xi8>
    %188 = vector.shape_cast %187 : vector<1x8x16xi8> to vector<8x16xi8>
    %189 = arith.sitofp %188 : vector<8x16xi8> to vector<8x16xf32>
    %cst_56 = arith.constant 0.000000e+00 : f32
    %190 = vector.broadcast %cst_56 : f32 to vector<8x16xf32>
    %191 = arith.cmpf ogt, %189, %190 : vector<8x16xf32>
    %cst_57 = arith.constant 0.000000e+00 : f32
    %cst_58 = arith.constant -1.000000e+09 : f32
    %192 = vector.broadcast %cst_57 : f32 to vector<8x16xf32>
    %193 = vector.broadcast %cst_58 : f32 to vector<8x16xf32>
    %194 = arith.select %191, %192, %193 : vector<8x16xi1>, vector<8x16xf32>
    %cst_59 = arith.constant 0.353553385 : f32
    %195 = vector.broadcast %cst_59 : f32 to vector<8x32xf32>
    %196 = arith.mulf %183, %195 : vector<8x32xf32>
    %197 = vector.extract_strided_slice %196 {offsets = [0, 0], sizes = [8, 8], strides = [1, 1]} : vector<8x32xf32> to vector<8x8xf32>
    %198 = vector.extract_strided_slice %196 {offsets = [0, 8], sizes = [8, 8], strides = [1, 1]} : vector<8x32xf32> to vector<8x8xf32>
    %199 = vector.extract_strided_slice %196 {offsets = [0, 16], sizes = [8, 8], strides = [1, 1]} : vector<8x32xf32> to vector<8x8xf32>
    %200 = vector.extract_strided_slice %196 {offsets = [0, 24], sizes = [8, 8], strides = [1, 1]} : vector<8x32xf32> to vector<8x8xf32>
    %201 = vector.shape_cast %197 : vector<8x8xf32> to vector<1x8x8xf32>
    %202 = vector.shape_cast %198 : vector<8x8xf32> to vector<1x8x8xf32>
    %203 = vector.shape_cast %199 : vector<8x8xf32> to vector<1x8x8xf32>
    %204 = vector.shape_cast %200 : vector<8x8xf32> to vector<1x8x8xf32>
    %205 = tpu.concatenate %201, %202, %203, %204 in 0 : vector<1x8x8xf32>, vector<1x8x8xf32>, vector<1x8x8xf32>, vector<1x8x8xf32> -> vector<4x8x8xf32>
    %206 = arith.truncf %205 : vector<4x8x8xf32> to vector<4x8x8xbf16>
    %207 = vector.extract_strided_slice %185 {offsets = [0, 0], sizes = [16, 8], strides = [1, 1]} : vector<16x32xf32> to vector<16x8xf32>
    %208 = vector.extract_strided_slice %185 {offsets = [0, 8], sizes = [16, 8], strides = [1, 1]} : vector<16x32xf32> to vector<16x8xf32>
    %209 = vector.extract_strided_slice %185 {offsets = [0, 16], sizes = [16, 8], strides = [1, 1]} : vector<16x32xf32> to vector<16x8xf32>
    %210 = vector.extract_strided_slice %185 {offsets = [0, 24], sizes = [16, 8], strides = [1, 1]} : vector<16x32xf32> to vector<16x8xf32>
    %211 = vector.shape_cast %207 : vector<16x8xf32> to vector<1x16x8xf32>
    %212 = vector.shape_cast %208 : vector<16x8xf32> to vector<1x16x8xf32>
    %213 = vector.shape_cast %209 : vector<16x8xf32> to vector<1x16x8xf32>
    %214 = vector.shape_cast %210 : vector<16x8xf32> to vector<1x16x8xf32>
    %215 = tpu.concatenate %211, %212, %213, %214 in 0 : vector<1x16x8xf32>, vector<1x16x8xf32>, vector<1x16x8xf32>, vector<1x16x8xf32> -> vector<4x16x8xf32>
    %216 = arith.truncf %215 : vector<4x16x8xf32> to vector<4x16x8xbf16>
    %217 = vector.extract_strided_slice %186 {offsets = [0, 0], sizes = [16, 8], strides = [1, 1]} : vector<16x32xf32> to vector<16x8xf32>
    %218 = vector.extract_strided_slice %186 {offsets = [0, 8], sizes = [16, 8], strides = [1, 1]} : vector<16x32xf32> to vector<16x8xf32>
    %219 = vector.extract_strided_slice %186 {offsets = [0, 16], sizes = [16, 8], strides = [1, 1]} : vector<16x32xf32> to vector<16x8xf32>
    %220 = vector.extract_strided_slice %186 {offsets = [0, 24], sizes = [16, 8], strides = [1, 1]} : vector<16x32xf32> to vector<16x8xf32>
    %221 = vector.shape_cast %217 : vector<16x8xf32> to vector<1x16x8xf32>
    %222 = vector.shape_cast %218 : vector<16x8xf32> to vector<1x16x8xf32>
    %223 = vector.shape_cast %219 : vector<16x8xf32> to vector<1x16x8xf32>
    %224 = vector.shape_cast %220 : vector<16x8xf32> to vector<1x16x8xf32>
    %225 = tpu.concatenate %221, %222, %223, %224 in 0 : vector<1x16x8xf32>, vector<1x16x8xf32>, vector<1x16x8xf32>, vector<1x16x8xf32> -> vector<4x16x8xf32>
    %226 = arith.truncf %225 : vector<4x16x8xf32> to vector<4x16x8xbf16>
    %cst_60 = arith.constant dense<0.000000e+00> : vector<4x8x16xf32>
    %227 = tpu.matmul %206, %216, %cst_60 {dimension_numbers = #tpu.dot_dimension_numbers<[2], [2], [1], [1], [0, 0, 0, 1, 1, 1], [0], [0]>} : vector<4x8x8xbf16>, vector<4x16x8xbf16>, vector<4x8x16xf32> -> vector<4x8x16xf32>
    %228 = vector.shape_cast %194 : vector<8x16xf32> to vector<1x8x16xf32>
    %229 = vector.broadcast %228 : vector<1x8x16xf32> to vector<4x8x16xf32>
    %230 = arith.addf %227, %229 : vector<4x8x16xf32>
    %cst_61 = arith.constant dense<0xFF800000> : vector<4x8xf32>
    %231 = vector.multi_reduction <maximumf>, %230, %cst_61 [2] : vector<4x8x16xf32> to vector<4x8xf32>
    %232 = vector.shape_cast %231 : vector<4x8xf32> to vector<4x8x1xf32>
    %233 = vector.broadcast %232 : vector<4x8x1xf32> to vector<4x8x16xf32>
    %234 = arith.subf %230, %233 : vector<4x8x16xf32>
    %235 = math.exp %234 : vector<4x8x16xf32>
    %cst_62 = arith.constant dense<0.000000e+00> : vector<4x8xf32>
    %236 = vector.multi_reduction <add>, %235, %cst_62 [2] : vector<4x8x16xf32> to vector<4x8xf32>
    %237 = vector.shape_cast %236 : vector<4x8xf32> to vector<4x8x1xf32>
    %238 = tpu.reciprocal %237 {approx = true} : vector<4x8x1xf32> -> vector<4x8x1xf32>
    %239 = vector.broadcast %238 : vector<4x8x1xf32> to vector<4x8x16xf32>
    %240 = arith.mulf %235, %239 : vector<4x8x16xf32>
    %241 = arith.truncf %240 : vector<4x8x16xf32> to vector<4x8x16xbf16>
    %cst_63 = arith.constant dense<0.000000e+00> : vector<4x8x8xf32>
    %242 = tpu.matmul %241, %226, %cst_63 {dimension_numbers = #tpu.dot_dimension_numbers<[2], [1], [1], [2], [0, 0, 0, 1, 1, 2], [0], [0]>} : vector<4x8x16xbf16>, vector<4x16x8xbf16>, vector<4x8x8xf32> -> vector<4x8x8xf32>
    %243 = vector.extract_strided_slice %242 {offsets = [0, 0, 0], sizes = [1, 8, 8], strides = [1, 1, 1]} : vector<4x8x8xf32> to vector<1x8x8xf32>
    %244 = vector.shape_cast %243 : vector<1x8x8xf32> to vector<8x8xf32>
    %245 = vector.extract_strided_slice %242 {offsets = [1, 0, 0], sizes = [1, 8, 8], strides = [1, 1, 1]} : vector<4x8x8xf32> to vector<1x8x8xf32>
    %246 = vector.shape_cast %245 : vector<1x8x8xf32> to vector<8x8xf32>
    %247 = vector.extract_strided_slice %242 {offsets = [2, 0, 0], sizes = [1, 8, 8], strides = [1, 1, 1]} : vector<4x8x8xf32> to vector<1x8x8xf32>
    %248 = vector.shape_cast %247 : vector<1x8x8xf32> to vector<8x8xf32>
    %249 = vector.extract_strided_slice %242 {offsets = [3, 0, 0], sizes = [1, 8, 8], strides = [1, 1, 1]} : vector<4x8x8xf32> to vector<1x8x8xf32>
    %250 = vector.shape_cast %249 : vector<1x8x8xf32> to vector<8x8xf32>
    %251 = tpu.concatenate %244, %246, %248, %250 in 1 : vector<8x8xf32>, vector<8x8xf32>, vector<8x8xf32>, vector<8x8xf32> -> vector<8x32xf32>
    %252 = arith.truncf %251 : vector<8x32xf32> to vector<8x32xbf16>
    %c0_64 = arith.constant 0 : index
    %c0_65 = arith.constant 0 : index
    %253 = vector.load %arg14[%c0_64, %c0_65] : memref<32x32xbf16, #tpu.memory_space<vmem>>, vector<32x32xbf16>
    %cst_66 = arith.constant dense<0.000000e+00> : vector<8x32xf32>
    %254 = tpu.matmul %252, %253, %cst_66 {dimension_numbers = #tpu.dot_dimension_numbers<[1], [0], [0], [1], [0, 0, 1, 1], [], []>} : vector<8x32xbf16>, vector<32x32xbf16>, vector<8x32xf32> -> vector<8x32xf32>
    %c0_67 = arith.constant 0 : index
    %c0_68 = arith.constant 0 : index
    %255 = vector.load %arg15[%c0_67, %c0_68] : memref<1x32xf32, #tpu.memory_space<vmem>>, vector<1x32xf32>
    %256 = vector.broadcast %255 : vector<1x32xf32> to vector<8x32xf32>
    %257 = arith.addf %254, %256 : vector<8x32xf32>
    %258 = arith.addf %153, %257 : vector<8x32xf32>
    %cst_69 = arith.constant dense<0.000000e+00> : vector<8xf32>
    %259 = vector.multi_reduction <add>, %258, %cst_69 [1] : vector<8x32xf32> to vector<8xf32>
    %260 = vector.shape_cast %259 : vector<8xf32> to vector<8x1xf32>
    %cst_70 = arith.constant 3.200000e+01 : f32
    %261 = vector.broadcast %cst_70 : f32 to vector<8x1xf32>
    %262 = arith.divf %260, %261 : vector<8x1xf32>
    %263 = vector.broadcast %262 : vector<8x1xf32> to vector<8x32xf32>
    %264 = arith.subf %258, %263 : vector<8x32xf32>
    %265 = arith.mulf %264, %264 : vector<8x32xf32>
    %cst_71 = arith.constant dense<0.000000e+00> : vector<8xf32>
    %266 = vector.multi_reduction <add>, %265, %cst_71 [1] : vector<8x32xf32> to vector<8xf32>
    %267 = vector.shape_cast %266 : vector<8xf32> to vector<8x1xf32>
    %cst_72 = arith.constant 3.200000e+01 : f32
    %268 = vector.broadcast %cst_72 : f32 to vector<8x1xf32>
    %269 = arith.divf %267, %268 : vector<8x1xf32>
    %270 = vector.broadcast %262 : vector<8x1xf32> to vector<8x32xf32>
    %271 = arith.subf %258, %270 : vector<8x32xf32>
    %cst_73 = arith.constant 9.99999974E-6 : f32
    %272 = vector.broadcast %cst_73 : f32 to vector<8x1xf32>
    %273 = arith.addf %269, %272 : vector<8x1xf32>
    %274 = math.rsqrt %273 : vector<8x1xf32>
    %275 = vector.broadcast %274 : vector<8x1xf32> to vector<8x32xf32>
    %276 = arith.mulf %271, %275 : vector<8x32xf32>
    %c0_74 = arith.constant 0 : index
    %c0_75 = arith.constant 0 : index
    %277 = vector.load %arg18[%c0_74, %c0_75] : memref<1x32xf32, #tpu.memory_space<vmem>>, vector<1x32xf32>
    %278 = vector.broadcast %277 : vector<1x32xf32> to vector<8x32xf32>
    %279 = arith.mulf %276, %278 : vector<8x32xf32>
    %c0_76 = arith.constant 0 : index
    %c0_77 = arith.constant 0 : index
    %280 = vector.load %arg19[%c0_76, %c0_77] : memref<1x32xf32, #tpu.memory_space<vmem>>, vector<1x32xf32>
    %281 = vector.broadcast %280 : vector<1x32xf32> to vector<8x32xf32>
    %282 = arith.addf %279, %281 : vector<8x32xf32>
    %283 = arith.truncf %282 : vector<8x32xf32> to vector<8x32xbf16>
    %c0_78 = arith.constant 0 : index
    %c0_79 = arith.constant 0 : index
    %284 = vector.load %arg20[%c0_78, %c0_79] : memref<32x64xbf16, #tpu.memory_space<vmem>>, vector<32x64xbf16>
    %cst_80 = arith.constant dense<0.000000e+00> : vector<8x64xf32>
    %285 = tpu.matmul %283, %284, %cst_80 {dimension_numbers = #tpu.dot_dimension_numbers<[1], [0], [0], [1], [0, 0, 1, 1], [], []>} : vector<8x32xbf16>, vector<32x64xbf16>, vector<8x64xf32> -> vector<8x64xf32>
    %c0_81 = arith.constant 0 : index
    %c0_82 = arith.constant 0 : index
    %286 = vector.load %arg21[%c0_81, %c0_82] : memref<1x64xf32, #tpu.memory_space<vmem>>, vector<1x64xf32>
    %287 = vector.broadcast %286 : vector<1x64xf32> to vector<8x64xf32>
    %288 = arith.addf %285, %287 : vector<8x64xf32>
    %cst_83 = arith.constant 0.000000e+00 : f32
    %289 = vector.broadcast %cst_83 : f32 to vector<8x64xf32>
    %290 = arith.maximumf %288, %289 : vector<8x64xf32>
    %291 = arith.truncf %290 : vector<8x64xf32> to vector<8x64xbf16>
    %c0_84 = arith.constant 0 : index
    %c0_85 = arith.constant 0 : index
    %292 = vector.load %arg22[%c0_84, %c0_85] : memref<64x32xbf16, #tpu.memory_space<vmem>>, vector<64x32xbf16>
    %cst_86 = arith.constant dense<0.000000e+00> : vector<8x32xf32>
    %293 = tpu.matmul %291, %292, %cst_86 {dimension_numbers = #tpu.dot_dimension_numbers<[1], [0], [0], [1], [0, 0, 1, 1], [], []>} : vector<8x64xbf16>, vector<64x32xbf16>, vector<8x32xf32> -> vector<8x32xf32>
    %c0_87 = arith.constant 0 : index
    %c0_88 = arith.constant 0 : index
    %294 = vector.load %arg23[%c0_87, %c0_88] : memref<1x32xf32, #tpu.memory_space<vmem>>, vector<1x32xf32>
    %295 = vector.broadcast %294 : vector<1x32xf32> to vector<8x32xf32>
    %296 = arith.addf %293, %295 : vector<8x32xf32>
    %297 = arith.addf %258, %296 : vector<8x32xf32>
    %c0_89 = arith.constant 0 : index
    %c0_90 = arith.constant 0 : index
    %298 = vector.load %arg27[%c0_89, %c0_90] : memref<8x32xf32, #tpu.memory_space<vmem>>, vector<8x32xf32>
    tpu.vector_store %arg27[%c0_89, %c0_90], %297 {strides = array<i32>} : memref<8x32xf32, #tpu.memory_space<vmem>>, vector<8x32xf32>,
    %c1_i32 = arith.constant 1 : i32
    %299 = arith.cmpi eq, %arg1, %c1_i32 : i32
    %300 = arith.extui %299 : i1 to i32
    %c0_i32_91 = arith.constant 0 : i32
    %301 = arith.cmpi ne, %300, %c0_i32_91 : i32
    scf.if %301 {
      %cst_92 = arith.constant dense<0.000000e+00> : vector<8xf32>
      %302 = vector.multi_reduction <add>, %297, %cst_92 [1] : vector<8x32xf32> to vector<8xf32>
      %303 = vector.shape_cast %302 : vector<8xf32> to vector<8x1xf32>
      %cst_93 = arith.constant 3.200000e+01 : f32
      %304 = vector.broadcast %cst_93 : f32 to vector<8x1xf32>
      %305 = arith.divf %303, %304 : vector<8x1xf32>
      %306 = vector.broadcast %305 : vector<8x1xf32> to vector<8x32xf32>
      %307 = arith.subf %297, %306 : vector<8x32xf32>
      %308 = arith.mulf %307, %307 : vector<8x32xf32>
      %cst_94 = arith.constant dense<0.000000e+00> : vector<8xf32>
      %309 = vector.multi_reduction <add>, %308, %cst_94 [1] : vector<8x32xf32> to vector<8xf32>
      %310 = vector.shape_cast %309 : vector<8xf32> to vector<8x1xf32>
      %cst_95 = arith.constant 3.200000e+01 : f32
      %311 = vector.broadcast %cst_95 : f32 to vector<8x1xf32>
      %312 = arith.divf %310, %311 : vector<8x1xf32>
      %313 = vector.broadcast %305 : vector<8x1xf32> to vector<8x32xf32>
      %314 = arith.subf %297, %313 : vector<8x32xf32>
      %cst_96 = arith.constant 9.99999974E-6 : f32
      %315 = vector.broadcast %cst_96 : f32 to vector<8x1xf32>
      %316 = arith.addf %312, %315 : vector<8x1xf32>
      %317 = math.rsqrt %316 : vector<8x1xf32>
      %318 = vector.broadcast %317 : vector<8x1xf32> to vector<8x32xf32>
      %319 = arith.mulf %314, %318 : vector<8x32xf32>
      %c0_97 = arith.constant 0 : index
      %c0_98 = arith.constant 0 : index
      %320 = vector.load %arg24[%c0_97, %c0_98] : memref<1x32xf32, #tpu.memory_space<vmem>>, vector<1x32xf32>
      %321 = vector.broadcast %320 : vector<1x32xf32> to vector<8x32xf32>
      %322 = arith.mulf %319, %321 : vector<8x32xf32>
      %c0_99 = arith.constant 0 : index
      %c0_100 = arith.constant 0 : index
      %323 = vector.load %arg25[%c0_99, %c0_100] : memref<1x32xf32, #tpu.memory_space<vmem>>, vector<1x32xf32>
      %324 = vector.broadcast %323 : vector<1x32xf32> to vector<8x32xf32>
      %325 = arith.addf %322, %324 : vector<8x32xf32>
      %c0_101 = arith.constant 0 : index
      %c0_102 = arith.constant 0 : index
      %c0_103 = arith.constant 0 : index
      %326 = vector.load %arg26[%c0_101, %c0_102, %c0_103] : memref<1x8x32xf32, #tpu.memory_space<vmem>>, vector<1x8x32xf32>
      %327 = vector.shape_cast %326 : vector<1x8x32xf32> to vector<8x32xf32>
      %328 = vector.shape_cast %325 : vector<8x32xf32> to vector<1x8x32xf32>
      tpu.vector_store %arg26[%c0_101, %c0_102, %c0_103], %328 {strides = array<i32>} : memref<1x8x32xf32, #tpu.memory_space<vmem>>, vector<1x8x32xf32>,
    } else {
    }
    return
  }
  func.func @transform_0(%arg0: i32, %arg1: i32) -> (i32, i32, i32) {
    %c0_i32 = arith.constant 0 : i32
    %c0_i32_0 = arith.constant 0 : i32
    %c0_i32_1 = arith.constant 0 : i32
    return %arg0, %c0_i32, %c0_i32_0 : i32, i32, i32
  }
  func.func @transform_1(%arg0: i32, %arg1: i32) -> (i32, i32, i32) {
    %c0_i32 = arith.constant 0 : i32
    %c0_i32_0 = arith.constant 0 : i32
    %c0_i32_1 = arith.constant 0 : i32
    return %arg0, %c0_i32, %c0_i32_0 : i32, i32, i32
  }
  func.func @transform_2(%arg0: i32, %arg1: i32) -> (i32, i32, i32) {
    %c0_i32 = arith.constant 0 : i32
    %c0_i32_0 = arith.constant 0 : i32
    %c0_i32_1 = arith.constant 0 : i32
    return %arg0, %c0_i32, %c0_i32_0 : i32, i32, i32
  }
  func.func @transform_3(%arg0: i32, %arg1: i32) -> (i32, i32, i32) {
    %c0_i32 = arith.constant 0 : i32
    %c0_i32_0 = arith.constant 0 : i32
    %c0_i32_1 = arith.constant 0 : i32
    return %arg0, %c0_i32, %c0_i32_0 : i32, i32, i32
  }
  func.func @transform_4(%arg0: i32, %arg1: i32) -> (i32, i32) {
    %c0_i32 = arith.constant 0 : i32
    %c0_i32_0 = arith.constant 0 : i32
    %c0_i32_1 = arith.constant 0 : i32
    return %c0_i32, %c0_i32_0 : i32, i32
  }
  func.func @transform_5(%arg0: i32, %arg1: i32) -> (i32, i32) {
    %c0_i32 = arith.constant 0 : i32
    %c0_i32_0 = arith.constant 0 : i32
    %c0_i32_1 = arith.constant 0 : i32
    return %c0_i32, %c0_i32_0 : i32, i32
  }
  func.func @transform_6(%arg0: i32, %arg1: i32) -> (i32, i32) {
    %c0_i32 = arith.constant 0 : i32
    %c0_i32_0 = arith.constant 0 : i32
    %c0_i32_1 = arith.constant 0 : i32
    return %c0_i32, %c0_i32_0 : i32, i32
  }
  func.func @transform_7(%arg0: i32, %arg1: i32) -> (i32, i32) {
    %c0_i32 = arith.constant 0 : i32
    %c0_i32_0 = arith.constant 0 : i32
    %c0_i32_1 = arith.constant 0 : i32
    return %c0_i32, %c0_i32_0 : i32, i32
  }
  func.func @transform_8(%arg0: i32, %arg1: i32) -> (i32, i32) {
    %c0_i32 = arith.constant 0 : i32
    %c0_i32_0 = arith.constant 0 : i32
    %c0_i32_1 = arith.constant 0 : i32
    return %c0_i32, %c0_i32_0 : i32, i32
  }
  func.func @transform_9(%arg0: i32, %arg1: i32) -> (i32, i32) {
    %c0_i32 = arith.constant 0 : i32
    %c0_i32_0 = arith.constant 0 : i32
    %c0_i32_1 = arith.constant 0 : i32
    return %c0_i32, %c0_i32_0 : i32, i32
  }
  func.func @transform_10(%arg0: i32, %arg1: i32) -> (i32, i32) {
    %c0_i32 = arith.constant 0 : i32
    %c0_i32_0 = arith.constant 0 : i32
    %c0_i32_1 = arith.constant 0 : i32
    return %c0_i32, %c0_i32_0 : i32, i32
  }
  func.func @transform_11(%arg0: i32, %arg1: i32) -> (i32, i32) {
    %c0_i32 = arith.constant 0 : i32
    %c0_i32_0 = arith.constant 0 : i32
    %c0_i32_1 = arith.constant 0 : i32
    return %c0_i32, %c0_i32_0 : i32, i32
  }
  func.func @transform_12(%arg0: i32, %arg1: i32) -> (i32, i32) {
    %c0_i32 = arith.constant 0 : i32
    %c0_i32_0 = arith.constant 0 : i32
    %c0_i32_1 = arith.constant 0 : i32
    return %c0_i32, %c0_i32_0 : i32, i32
  }
  func.func @transform_13(%arg0: i32, %arg1: i32) -> (i32, i32) {
    %c0_i32 = arith.constant 0 : i32
    %c0_i32_0 = arith.constant 0 : i32
    %c0_i32_1 = arith.constant 0 : i32
    return %c0_i32, %c0_i32_0 : i32, i32
  }
  func.func @transform_14(%arg0: i32, %arg1: i32) -> (i32, i32) {
    %c0_i32 = arith.constant 0 : i32
    %c0_i32_0 = arith.constant 0 : i32
    %c0_i32_1 = arith.constant 0 : i32
    return %c0_i32, %c0_i32_0 : i32, i32
  }
  func.func @transform_15(%arg0: i32, %arg1: i32) -> (i32, i32) {
    %c0_i32 = arith.constant 0 : i32
    %c0_i32_0 = arith.constant 0 : i32
    %c0_i32_1 = arith.constant 0 : i32
    return %c0_i32, %c0_i32_0 : i32, i32
  }
  func.func @transform_16(%arg0: i32, %arg1: i32) -> (i32, i32) {
    %c0_i32 = arith.constant 0 : i32
    %c0_i32_0 = arith.constant 0 : i32
    %c0_i32_1 = arith.constant 0 : i32
    return %c0_i32, %c0_i32_0 : i32, i32
  }
  func.func @transform_17(%arg0: i32, %arg1: i32) -> (i32, i32) {
    %c0_i32 = arith.constant 0 : i32
    %c0_i32_0 = arith.constant 0 : i32
    %c0_i32_1 = arith.constant 0 : i32
    return %c0_i32, %c0_i32_0 : i32, i32
  }
  func.func @transform_18(%arg0: i32, %arg1: i32) -> (i32, i32) {
    %c0_i32 = arith.constant 0 : i32
    %c0_i32_0 = arith.constant 0 : i32
    %c0_i32_1 = arith.constant 0 : i32
    return %c0_i32, %c0_i32_0 : i32, i32
  }
  func.func @transform_19(%arg0: i32, %arg1: i32) -> (i32, i32) {
    %c0_i32 = arith.constant 0 : i32
    %c0_i32_0 = arith.constant 0 : i32
    %c0_i32_1 = arith.constant 0 : i32
    return %c0_i32, %c0_i32_0 : i32, i32
  }
  func.func @transform_20(%arg0: i32, %arg1: i32) -> (i32, i32) {
    %c0_i32 = arith.constant 0 : i32
    %c0_i32_0 = arith.constant 0 : i32
    %c0_i32_1 = arith.constant 0 : i32
    return %c0_i32, %c0_i32_0 : i32, i32
  }
  func.func @transform_21(%arg0: i32, %arg1: i32) -> (i32, i32) {
    %c0_i32 = arith.constant 0 : i32
    %c0_i32_0 = arith.constant 0 : i32
    %c0_i32_1 = arith.constant 0 : i32
    return %c0_i32, %c0_i32_0 : i32, i32
  }
  func.func @transform_22(%arg0: i32, %arg1: i32) -> (i32, i32) {
    %c0_i32 = arith.constant 0 : i32
    %c0_i32_0 = arith.constant 0 : i32
    %c0_i32_1 = arith.constant 0 : i32
    return %c0_i32, %c0_i32_0 : i32, i32
  }
  func.func @transform_23(%arg0: i32, %arg1: i32) -> (i32, i32) {
    %c0_i32 = arith.constant 0 : i32
    %c0_i32_0 = arith.constant 0 : i32
    %c0_i32_1 = arith.constant 0 : i32
    return %c0_i32, %c0_i32_0 : i32, i32
  }
  func.func @transform_24(%arg0: i32, %arg1: i32) -> (i32, i32, i32) {
    %c0_i32 = arith.constant 0 : i32
    %c0_i32_0 = arith.constant 0 : i32
    %c0_i32_1 = arith.constant 0 : i32
    return %arg0, %c0_i32, %c0_i32_0 : i32, i32, i32
  }
}

</mosaic_0001>

<llo_original>
// kernel: decoder_forward.1
$region0: #{decoder_forward.1}
  #allocation0 [shape = 'u32[]', space=smem, size = 0x4, offset = 0x4, fixed_abs, tag = 'smem constant byte address 0x4 - core index']
  #allocation1 [shape = 'u32[144,128]{1,0:T(1,128)}', space=vmem, size = 0x12000, scoped, tag = 'internal scratch']
  #allocation2 [shape = 'f32[8,32]{1,0:T(8,128)}', space=vmem, size = 0x1000, scoped, tag = 'scratch operand']
  #allocation3 [shape = 'f32[16,64]{1,0:T(8,128)}', space=vmem, size = 0x2000, scoped, tag = 'scratch operand']
  %s0 = inlined_call_operand.hbm [shape: f32[2,8,32], index: 0, kind: input, shape index: {}]
  %s1 = inlined_call_operand.hbm [shape: f32[2,16,32], index: 1, kind: input, shape index: {}]
  %s2 = inlined_call_operand.hbm [shape: s8[2,8,8], index: 2, kind: input, shape index: {}]
  %s3 = inlined_call_operand.hbm [shape: s8[2,8,16], index: 3, kind: input, shape index: {}]
  %s4 = inlined_call_operand.hbm [shape: bf16[32,96], index: 4, kind: input, shape index: {}]
  %s5 = inlined_call_operand.hbm [shape: f32[1,96], index: 5, kind: input, shape index: {}]
  %s6 = inlined_call_operand.hbm [shape: bf16[32,32], index: 6, kind: input, shape index: {}]
  %s7 = inlined_call_operand.hbm [shape: f32[1,32], index: 7, kind: input, shape index: {}]
  %s8 = inlined_call_operand.hbm [shape: bf16[32,32], index: 8, kind: input, shape index: {}]
  %s9 = inlined_call_operand.hbm [shape: f32[1,32], index: 9, kind: input, shape index: {}]
  %s10 = inlined_call_operand.hbm [shape: bf16[32,64], index: 10, kind: input, shape index: {}]
  %s11 = inlined_call_operand.hbm [shape: f32[1,64], index: 11, kind: input, shape index: {}]
  %s12 = inlined_call_operand.hbm [shape: bf16[32,32], index: 12, kind: input, shape index: {}]
  %s13 = inlined_call_operand.hbm [shape: f32[1,32], index: 13, kind: input, shape index: {}]
  %s14 = inlined_call_operand.hbm [shape: f32[1,32], index: 14, kind: input, shape index: {}]
  %s15 = inlined_call_operand.hbm [shape: f32[1,32], index: 15, kind: input, shape index: {}]
  %s16 = inlined_call_operand.hbm [shape: f32[1,32], index: 16, kind: input, shape index: {}]
  %s17 = inlined_call_operand.hbm [shape: f32[1,32], index: 17, kind: input, shape index: {}]
  %s18 = inlined_call_operand.hbm [shape: bf16[32,64], index: 18, kind: input, shape index: {}]
  %s19 = inlined_call_operand.hbm [shape: f32[1,64], index: 19, kind: input, shape index: {}]
  %s20 = inlined_call_operand.hbm [shape: bf16[64,32], index: 20, kind: input, shape index: {}]
  %s21 = inlined_call_operand.hbm [shape: f32[1,32], index: 21, kind: input, shape index: {}]
  %s22 = inlined_call_operand.hbm [shape: f32[1,32], index: 22, kind: input, shape index: {}]
  %s23 = inlined_call_operand.hbm [shape: f32[1,32], index: 23, kind: input, shape index: {}]
  %s24 = inlined_call_operand.hbm [shape: f32[2,8,32], index: 24, kind: output, shape index: {}]
  %s25 = sld [smem:[#allocation0]]
  $region233: #{decoder_forward.1} parent=0
    _
  %s27 = ssub.s32 1, %s25
  %s28 = scalar_select 0, %s27, %s25
  $region1: #{decoder_forward.1} parent=0
    #allocation4 [shape = 'u8[8192]{0}', space=vmem, size = 0x2000, scoped, tag = 'input window, operand 0']
    #allocation5 [shape = 's32[2]{0}', space=sflag, size = 0x8, scoped, tag = 'scoped memory for decoder_forward.1']
    #allocation6 [shape = 's32[2]{0}', space=sflag, size = 0x8, scoped, tag = 'scoped memory for decoder_forward.1']
    #allocation7 [shape = 'u8[16384]{0}', space=vmem, size = 0x4000, scoped, tag = 'input window, operand 1']
    #allocation8 [shape = 's32[2]{0}', space=sflag, size = 0x8, scoped, tag = 'scoped memory for decoder_forward.1']
    #allocation9 [shape = 'u8[2048]{0}', space=vmem, size = 0x800, scoped, tag = 'input window, operand 2']
    #allocation10 [shape = 'u8[2048]{0}', space=vmem, size = 0x800, scoped, tag = 'input window, operand 3']
    #allocation11 [shape = 's32[2]{0}', space=sflag, size = 0x8, scoped, tag = 'scoped memory for decoder_forward.1']
    #allocation12 [shape = 'u8[8192]{0}', space=vmem, size = 0x2000, scoped, tag = 'input window, operand 4, single buffered']
    #allocation13 [shape = 'u8[512]{0}', space=vmem, size = 0x400, scoped, tag = 'input window, operand 5, single buffered']
    #allocation14 [shape = 's32[1]{0}', space=sflag, size = 0x4, scoped, tag = 'scoped memory for decoder_forward.1']
    #allocation15 [shape = 'u8[8192]{0}', space=vmem, size = 0x2000, scoped, tag = 'input window, operand 6, single buffered']
    #allocation16 [shape = 'u8[512]{0}', space=vmem, size = 0x400, scoped, tag = 'input window, operand 7, single buffered']
    #allocation17 [shape = 's32[1]{0}', space=sflag, size = 0x4, scoped, tag = 'scoped memory for decoder_forward.1']
    #allocation18 [shape = 'u8[8192]{0}', space=vmem, size = 0x2000, scoped, tag = 'input window, operand 8, single buffered']
    #allocation19 [shape = 'u8[512]{0}', space=vmem, size = 0x400, scoped, tag = 'input window, operand 9, single buffered']
    #allocation20 [shape = 's32[1]{0}', space=sflag, size = 0x4, scoped, tag = 'scoped memory for decoder_forward.1']
    #allocation21 [shape = 'u8[8192]{0}', space=vmem, size = 0x2000, scoped, tag = 'input window, operand 10, single buffered']
    #allocation22 [shape = 'u8[512]{0}', space=vmem, size = 0x400, scoped, tag = 'input window, operand 11, single buffered']
    #allocation23 [shape = 's32[1]{0}', space=sflag, size = 0x4, scoped, tag = 'scoped memory for decoder_forward.1']
    #allocation24 [shape = 'u8[8192]{0}', space=vmem, size = 0x2000, scoped, tag = 'input window, operand 12, single buffered']
    #allocation25 [shape = 'u8[512]{0}', space=vmem, size = 0x400, scoped, tag = 'input window, operand 13, single buffered']
    #allocation26 [shape = 's32[1]{0}', space=sflag, size = 0x4, scoped, tag = 'scoped memory for decoder_forward.1']
    #allocation27 [shape = 'u8[512]{0}', space=vmem, size = 0x400, scoped, tag = 'input window, operand 14, single buffered']
    #allocation28 [shape = 'u8[512]{0}', space=vmem, size = 0x400, scoped, tag = 'input window, operand 15, single buffered']
    #allocation29 [shape = 's32[1]{0}', space=sflag, size = 0x4, scoped, tag = 'scoped memory for decoder_forward.1']
    #allocation30 [shape = 'u8[512]{0}', space=vmem, size = 0x400, scoped, tag = 'input window, operand 16, single buffered']
    #allocation31 [shape = 'u8[512]{0}', space=vmem, size = 0x400, scoped, tag = 'input window, operand 17, single buffered']
    #allocation32 [shape = 's32[1]{0}', space=sflag, size = 0x4, scoped, tag = 'scoped memory for decoder_forward.1']
    #allocation33 [shape = 'u8[8192]{0}', space=vmem, size = 0x2000, scoped, tag = 'input window, operand 18, single buffered']
    #allocation34 [shape = 'u8[512]{0}', space=vmem, size = 0x400, scoped, tag = 'input window, operand 19, single buffered']
    #allocation35 [shape = 's32[1]{0}', space=sflag, size = 0x4, scoped, tag = 'scoped memory for decoder_forward.1']
    #allocation36 [shape = 'u8[16384]{0}', space=vmem, size = 0x4000, scoped, tag = 'input window, operand 20, single buffered']
    #allocation37 [shape = 'u8[512]{0}', space=vmem, size = 0x400, scoped, tag = 'input window, operand 21, single buffered']
    #allocation38 [shape = 's32[1]{0}', space=sflag, size = 0x4, scoped, tag = 'scoped memory for decoder_forward.1']
    #allocation39 [shape = 'u8[512]{0}', space=vmem, size = 0x400, scoped, tag = 'input window, operand 22, single buffered']
    #allocation40 [shape = 'u8[512]{0}', space=vmem, size = 0x400, scoped, tag = 'input window, operand 23, single buffered']
    #allocation41 [shape = 's32[1]{0}', space=sflag, size = 0x4, scoped, tag = 'scoped memory for decoder_forward.1']
    #allocation42 [shape = 'u8[8192]{0}', space=vmem, size = 0x2000, scoped, tag = 'output window, operand 0']
    %29 = vsyncpa [#allocation5], 0
    %s30 = scalar_lea.sflag [#allocation5], 1
    %31 = vsyncpa %s30, 0
    %32 = vsyncpa [#allocation8], 0
    %s33 = scalar_lea.sflag [#allocation8], 1
    %34 = vsyncpa %s33, 0
    %35 = vsyncpa [#allocation11], 0
    %s36 = scalar_lea.sflag [#allocation11], 1
    %37 = vsyncpa %s36, 0
    %38 = vsyncpa [#allocation14], 0
    %39 = vsyncpa [#allocation17], 0
    %40 = vsyncpa [#allocation20], 0
    %41 = vsyncpa [#allocation23], 0
    %42 = vsyncpa [#allocation26], 0
    %43 = vsyncpa [#allocation29], 0
    %44 = vsyncpa [#allocation32], 0
    %45 = vsyncpa [#allocation35], 0
    %46 = vsyncpa [#allocation38], 0
    %47 = vsyncpa [#allocation41], 0
    %48 = vsyncpa [#allocation6], 0
    %s49 = scalar_lea.sflag [#allocation6], 1
    %50 = vsyncpa %s49, 0
    loop: start=0, step=1, limit=6
    $region2: #{decoder_forward.1} parent=1 // loop_pre_header
      _
    $region3: #{decoder_forward.1} parent=1 // loop_header
      %s52 = sphi 0, %s56
      %p53 = scmp.ge.s32.totalorder %s52, 6
      %s59 = sphi 0, %s71
      %s60 = sphi 0, %s67
      %s61 = sphi 0, %s59
      %s62 = sphi 0, %s60
      %s63 = sphi 0, %s61
      %s64 = sphi 0, %s62
      %s74 = sphi 0, %s76
      %s77 = sphi 0, %s74
      %s78 = sphi 0, %s77
      %s94 = sphi 0, %s78
      %s100 = sphi 0, %s102
      %s103 = sphi 0, %s100
      %s104 = sphi 0, %s103
      %s120 = sphi 0, %s104
      %s126 = sphi 0, %s128
      %s129 = sphi 0, %s126
      %s130 = sphi 0, %s129
      %s146 = sphi 0, %s130
      %s152 = sphi 0, %s154
      %s155 = sphi 0, %s152
      %s156 = sphi 0, %s155
      %s172 = sphi 0, %s156
      %s176 = sphi 0, %s176
      %s178 = sphi 0, %s176
      %s179 = sphi 0, %s178
      %s193 = sphi 0, %s179
      %s197 = sphi 0, %s197
      %s199 = sphi 0, %s197
      %s200 = sphi 0, %s199
      %s214 = sphi 0, %s200
      %s218 = sphi 0, %s218
      %s220 = sphi 0, %s218
      %s221 = sphi 0, %s220
      %s235 = sphi 0, %s221
      %s239 = sphi 0, %s239
      %s241 = sphi 0, %s239
      %s242 = sphi 0, %s241
      %s256 = sphi 0, %s242
      %s260 = sphi 0, %s260
      %s262 = sphi 0, %s260
      %s263 = sphi 0, %s262
      %s277 = sphi 0, %s263
      %s281 = sphi 0, %s281
      %s283 = sphi 0, %s281
      %s284 = sphi 0, %s283
      %s298 = sphi 0, %s284
      %s302 = sphi 0, %s302
      %s304 = sphi 0, %s302
      %s305 = sphi 0, %s304
      %s319 = sphi 0, %s305
      %s323 = sphi 0, %s323
      %s325 = sphi 0, %s323
      %s326 = sphi 0, %s325
      %s340 = sphi 0, %s326
      %s344 = sphi 0, %s344
      %s346 = sphi 0, %s344
      %s347 = sphi 0, %s346
      %s361 = sphi 0, %s347
      %s365 = sphi 0, %s365
      %s367 = sphi 0, %s365
      %s368 = sphi 0, %s367
      %s382 = sphi 0, %s368
      %s386 = sphi 0, %s386
      %s388 = sphi 0, %s386
      %s389 = sphi 0, %s388
      %s403 = sphi 0, %s389
      %s407 = sphi 0, %s407
      %s409 = sphi 0, %s407
      %s410 = sphi 0, %s409
      %s424 = sphi 0, %s410
      %s428 = sphi 0, %s428
      %s430 = sphi 0, %s428
      %s431 = sphi 0, %s430
      %s445 = sphi 0, %s431
      %s449 = sphi 0, %s449
      %s451 = sphi 0, %s449
      %s452 = sphi 0, %s451
      %s466 = sphi 0, %s452
      %s470 = sphi 0, %s470
      %s472 = sphi 0, %s470
      %s473 = sphi 0, %s472
      %s487 = sphi 0, %s473
      %s491 = sphi 0, %s491
      %s493 = sphi 0, %s491
      %s494 = sphi 0, %s493
      %s508 = sphi 0, %s494
      %s512 = sphi 0, %s512
      %s514 = sphi 0, %s512
      %s515 = sphi 0, %s514
      %s529 = sphi 0, %s515
      %s533 = sphi 0, %s533
      %s535 = sphi 0, %s533
      %s536 = sphi 0, %s535
      %s550 = sphi 0, %s536
      %s554 = sphi 0, %s554
      %s556 = sphi 0, %s554
      %s557 = sphi 0, %s556
      %s571 = sphi 0, %s557
      %s575 = sphi 0, %s575
      %s577 = sphi 0, %s575
      %s578 = sphi 0, %s577
      %s592 = sphi 0, %s578
      %s598 = sphi 0, %s600
      %s601 = sphi 0, %s598
      %s602 = sphi 0, %s601
      %s618 = sphi 0, %s602
    $region4: #{decoder_forward.1} parent=1 // loop_header_branch
      %55 = sbr.rel (%p53) target = $region8
    $region5: #{decoder_forward.1} parent=1 // loop_body
      %s57 = ssub.s32 %s52, 1
      %s58 = ssub.s32 %s52, 2
      %s65 = sadd.s32 1, %s60
      %p66 = scmp.ge.s32.totalorder %s65, 2
      %s67 = scalar_select %p66, 0, %s65
      %s68 = sadd.s32 1, %s59
      %s69 = scalar_select %p66, %s68, %s59
      %p70 = scmp.ge.s32.totalorder %s69, 2
      %s71 = scalar_select %p70, 0, %s69
      %s72 = ssub.s32 %s59, %s71
      %p73 = scmp.eq.s32.totalorder %s72, 0
      %s75 = sadd.s32 %s74, 1
      %s76 = scalar_select %p73, %s74, %s75
      %p79 = pneg %p73
      %p80 = scmp.eq.s32.totalorder %s52, 3
      %p81 = por %p79, %p80
      %p82 = scmp.ne.s32.totalorder %s74, %s77
      %p83 = scmp.eq.s32.totalorder %s52, 0
      %p84 = por %p82, %p83
      %p85 = scmp.ne.s32.totalorder %s74, %s77
      %p86 = scmp.eq.s32.totalorder %s57, 3
      %p87 = por %p85, %p86
      %p88 = scmp.ne.s32.totalorder %s77, %s78
      %p89 = scmp.eq.s32.totalorder %s57, 0
      %p90 = por %p88, %p89
      %p91 = scmp.ne.s32.totalorder %s77, %s78
      %p92 = scmp.eq.s32.totalorder %s58, 3
      %p93 = por %p91, %p92
      %p95 = scmp.ne.s32.totalorder %s78, %s94
      %p96 = scmp.eq.s32.totalorder %s58, 0
      %p97 = por %p95, %p96
      %s98 = ssub.s32 %s59, %s71
      %p99 = scmp.eq.s32.totalorder %s98, 0
      %s101 = sadd.s32 %s100, 1
      %s102 = scalar_select %p99, %s100, %s101
      %p105 = pneg %p99
      %p106 = scmp.eq.s32.totalorder %s52, 3
      %p107 = por %p105, %p106
      %p108 = scmp.ne.s32.totalorder %s100, %s103
      %p109 = scmp.eq.s32.totalorder %s52, 0
      %p110 = por %p108, %p109
      %p111 = scmp.ne.s32.totalorder %s100, %s103
      %p112 = scmp.eq.s32.totalorder %s57, 3
      %p113 = por %p111, %p112
      %p114 = scmp.ne.s32.totalorder %s103, %s104
      %p115 = scmp.eq.s32.totalorder %s57, 0
      %p116 = por %p114, %p115
      %p117 = scmp.ne.s32.totalorder %s103, %s104
      %p118 = scmp.eq.s32.totalorder %s58, 3
      %p119 = por %p117, %p118
      %p121 = scmp.ne.s32.totalorder %s104, %s120
      %p122 = scmp.eq.s32.totalorder %s58, 0
      %p123 = por %p121, %p122
      %s124 = ssub.s32 %s59, %s71
      %p125 = scmp.eq.s32.totalorder %s124, 0
      %s127 = sadd.s32 %s126, 1
      %s128 = scalar_select %p125, %s126, %s127
      %p131 = pneg %p125
      %p132 = scmp.eq.s32.totalorder %s52, 3
      %p133 = por %p131, %p132
      %p134 = scmp.ne.s32.totalorder %s126, %s129
      %p135 = scmp.eq.s32.totalorder %s52, 0
      %p136 = por %p134, %p135
      %p137 = scmp.ne.s32.totalorder %s126, %s129
      %p138 = scmp.eq.s32.totalorder %s57, 3
      %p139 = por %p137, %p138
      %p140 = scmp.ne.s32.totalorder %s129, %s130
      %p141 = scmp.eq.s32.totalorder %s57, 0
      %p142 = por %p140, %p141
      %p143 = scmp.ne.s32.totalorder %s129, %s130
      %p144 = scmp.eq.s32.totalorder %s58, 3
      %p145 = por %p143, %p144
      %p147 = scmp.ne.s32.totalorder %s130, %s146
      %p148 = scmp.eq.s32.totalorder %s58, 0
      %p149 = por %p147, %p148
      %s150 = ssub.s32 %s59, %s71
      %p151 = scmp.eq.s32.totalorder %s150, 0
      %s153 = sadd.s32 %s152, 1
      %s154 = scalar_select %p151, %s152, %s153
      %p157 = pneg %p151
      %p158 = scmp.eq.s32.totalorder %s52, 3
      %p159 = por %p157, %p158
      %p160 = scmp.ne.s32.totalorder %s152, %s155
      %p161 = scmp.eq.s32.totalorder %s52, 0
      %p162 = por %p160, %p161
      %p163 = scmp.ne.s32.totalorder %s152, %s155
      %p164 = scmp.eq.s32.totalorder %s57, 3
      %p165 = por %p163, %p164
      %p166 = scmp.ne.s32.totalorder %s155, %s156
      %p167 = scmp.eq.s32.totalorder %s57, 0
      %p168 = por %p166, %p167
      %p169 = scmp.ne.s32.totalorder %s155, %s156
      %p170 = scmp.eq.s32.totalorder %s58, 3
      %p171 = por %p169, %p170
      %p173 = scmp.ne.s32.totalorder %s156, %s172
      %p174 = scmp.eq.s32.totalorder %s58, 0
      %p175 = por %p173, %p174
      %s177 = sadd.s32 %s176, 1
      %p180 = scmp.eq.s32.totalorder %s52, 3
      %p181 = scmp.ne.s32.totalorder %s176, %s178
      %p182 = scmp.eq.s32.totalorder %s52, 0
      %p183 = por %p181, %p182
      %p184 = scmp.ne.s32.totalorder %s176, %s178
      %p185 = scmp.eq.s32.totalorder %s57, 3
      %p186 = por %p184, %p185
      %p187 = scmp.ne.s32.totalorder %s178, %s179
      %p188 = scmp.eq.s32.totalorder %s57, 0
      %p189 = por %p187, %p188
      %p190 = scmp.ne.s32.totalorder %s178, %s179
      %p191 = scmp.eq.s32.totalorder %s58, 3
      %p192 = por %p190, %p191
      %p194 = scmp.ne.s32.totalorder %s179, %s193
      %p195 = scmp.eq.s32.totalorder %s58, 0
      %p196 = por %p194, %p195
      %s198 = sadd.s32 %s197, 1
      %p201 = scmp.eq.s32.totalorder %s52, 3
      %p202 = scmp.ne.s32.totalorder %s197, %s199
      %p203 = scmp.eq.s32.totalorder %s52, 0
      %p204 = por %p202, %p203
      %p205 = scmp.ne.s32.totalorder %s197, %s199
      %p206 = scmp.eq.s32.totalorder %s57, 3
      %p207 = por %p205, %p206
      %p208 = scmp.ne.s32.totalorder %s199, %s200
      %p209 = scmp.eq.s32.totalorder %s57, 0
      %p210 = por %p208, %p209
      %p211 = scmp.ne.s32.totalorder %s199, %s200
      %p212 = scmp.eq.s32.totalorder %s58, 3
      %p213 = por %p211, %p212
      %p215 = scmp.ne.s32.totalorder %s200, %s214
      %p216 = scmp.eq.s32.totalorder %s58, 0
      %p217 = por %p215, %p216
      %s219 = sadd.s32 %s218, 1
      %p222 = scmp.eq.s32.totalorder %s52, 3
      %p223 = scmp.ne.s32.totalorder %s218, %s220
      %p224 = scmp.eq.s32.totalorder %s52, 0
      %p225 = por %p223, %p224
      %p226 = scmp.ne.s32.totalorder %s218, %s220
      %p227 = scmp.eq.s32.totalorder %s57, 3
      %p228 = por %p226, %p227
      %p229 = scmp.ne.s32.totalorder %s220, %s221
      %p230 = scmp.eq.s32.totalorder %s57, 0
      %p231 = por %p229, %p230
      %p232 = scmp.ne.s32.totalorder %s220, %s221
      %p233 = scmp.eq.s32.totalorder %s58, 3
      %p234 = por %p232, %p233
      %p236 = scmp.ne.s32.totalorder %s221, %s235
      %p237 = scmp.eq.s32.totalorder %s58, 0
      %p238 = por %p236, %p237
      %s240 = sadd.s32 %s239, 1
      %p243 = scmp.eq.s32.totalorder %s52, 3
      %p244 = scmp.ne.s32.totalorder %s239, %s241
      %p245 = scmp.eq.s32.totalorder %s52, 0
      %p246 = por %p244, %p245
      %p247 = scmp.ne.s32.totalorder %s239, %s241
      %p248 = scmp.eq.s32.totalorder %s57, 3
      %p249 = por %p247, %p248
      %p250 = scmp.ne.s32.totalorder %s241, %s242
      %p251 = scmp.eq.s32.totalorder %s57, 0
      %p252 = por %p250, %p251
      %p253 = scmp.ne.s32.totalorder %s241, %s242
      %p254 = scmp.eq.s32.totalorder %s58, 3
      %p255 = por %p253, %p254
      %p257 = scmp.ne.s32.totalorder %s242, %s256
      %p258 = scmp.eq.s32.totalorder %s58, 0
      %p259 = por %p257, %p258
      %s261 = sadd.s32 %s260, 1
      %p264 = scmp.eq.s32.totalorder %s52, 3
      %p265 = scmp.ne.s32.totalorder %s260, %s262
      %p266 = scmp.eq.s32.totalorder %s52, 0
      %p267 = por %p265, %p266
      %p268 = scmp.ne.s32.totalorder %s260, %s262
      %p269 = scmp.eq.s32.totalorder %s57, 3
      %p270 = por %p268, %p269
      %p271 = scmp.ne.s32.totalorder %s262, %s263
      %p272 = scmp.eq.s32.totalorder %s57, 0
      %p273 = por %p271, %p272
      %p274 = scmp.ne.s32.totalorder %s262, %s263
      %p275 = scmp.eq.s32.totalorder %s58, 3
      %p276 = por %p274, %p275
      %p278 = scmp.ne.s32.totalorder %s263, %s277
      %p279 = scmp.eq.s32.totalorder %s58, 0
      %p280 = por %p278, %p279
      %s282 = sadd.s32 %s281, 1
      %p285 = scmp.eq.s32.totalorder %s52, 3
      %p286 = scmp.ne.s32.totalorder %s281, %s283
      %p287 = scmp.eq.s32.totalorder %s52, 0
      %p288 = por %p286, %p287
      %p289 = scmp.ne.s32.totalorder %s281, %s283
      %p290 = scmp.eq.s32.totalorder %s57, 3
      %p291 = por %p289, %p290
      %p292 = scmp.ne.s32.totalorder %s283, %s284
      %p293 = scmp.eq.s32.totalorder %s57, 0
      %p294 = por %p292, %p293
      %p295 = scmp.ne.s32.totalorder %s283, %s284
      %p296 = scmp.eq.s32.totalorder %s58, 3
      %p297 = por %p295, %p296
      %p299 = scmp.ne.s32.totalorder %s284, %s298
      %p300 = scmp.eq.s32.totalorder %s58, 0
      %p301 = por %p299, %p300
      %s303 = sadd.s32 %s302, 1
      %p306 = scmp.eq.s32.totalorder %s52, 3
      %p307 = scmp.ne.s32.totalorder %s302, %s304
      %p308 = scmp.eq.s32.totalorder %s52, 0
      %p309 = por %p307, %p308
      %p310 = scmp.ne.s32.totalorder %s302, %s304
      %p311 = scmp.eq.s32.totalorder %s57, 3
      %p312 = por %p310, %p311
      %p313 = scmp.ne.s32.totalorder %s304, %s305
      %p314 = scmp.eq.s32.totalorder %s57, 0
      %p315 = por %p313, %p314
      %p316 = scmp.ne.s32.totalorder %s304, %s305
      %p317 = scmp.eq.s32.totalorder %s58, 3
      %p318 = por %p316, %p317
      %p320 = scmp.ne.s32.totalorder %s305, %s319
      %p321 = scmp.eq.s32.totalorder %s58, 0
      %p322 = por %p320, %p321
      %s324 = sadd.s32 %s323, 1
      %p327 = scmp.eq.s32.totalorder %s52, 3
      %p328 = scmp.ne.s32.totalorder %s323, %s325
      %p329 = scmp.eq.s32.totalorder %s52, 0
      %p330 = por %p328, %p329
      %p331 = scmp.ne.s32.totalorder %s323, %s325
      %p332 = scmp.eq.s32.totalorder %s57, 3
      %p333 = por %p331, %p332
      %p334 = scmp.ne.s32.totalorder %s325, %s326
      %p335 = scmp.eq.s32.totalorder %s57, 0
      %p336 = por %p334, %p335
      %p337 = scmp.ne.s32.totalorder %s325, %s326
      %p338 = scmp.eq.s32.totalorder %s58, 3
      %p339 = por %p337, %p338
      %p341 = scmp.ne.s32.totalorder %s326, %s340
      %p342 = scmp.eq.s32.totalorder %s58, 0
      %p343 = por %p341, %p342
      %s345 = sadd.s32 %s344, 1
      %p348 = scmp.eq.s32.totalorder %s52, 3
      %p349 = scmp.ne.s32.totalorder %s344, %s346
      %p350 = scmp.eq.s32.totalorder %s52, 0
      %p351 = por %p349, %p350
      %p352 = scmp.ne.s32.totalorder %s344, %s346
      %p353 = scmp.eq.s32.totalorder %s57, 3
      %p354 = por %p352, %p353
      %p355 = scmp.ne.s32.totalorder %s346, %s347
      %p356 = scmp.eq.s32.totalorder %s57, 0
      %p357 = por %p355, %p356
      %p358 = scmp.ne.s32.totalorder %s346, %s347
      %p359 = scmp.eq.s32.totalorder %s58, 3
      %p360 = por %p358, %p359
      %p362 = scmp.ne.s32.totalorder %s347, %s361
      %p363 = scmp.eq.s32.totalorder %s58, 0
      %p364 = por %p362, %p363
      %s366 = sadd.s32 %s365, 1
      %p369 = scmp.eq.s32.totalorder %s52, 3
      %p370 = scmp.ne.s32.totalorder %s365, %s367
      %p371 = scmp.eq.s32.totalorder %s52, 0
      %p372 = por %p370, %p371
      %p373 = scmp.ne.s32.totalorder %s365, %s367
      %p374 = scmp.eq.s32.totalorder %s57, 3
      %p375 = por %p373, %p374
      %p376 = scmp.ne.s32.totalorder %s367, %s368
      %p377 = scmp.eq.s32.totalorder %s57, 0
      %p378 = por %p376, %p377
      %p379 = scmp.ne.s32.totalorder %s367, %s368
      %p380 = scmp.eq.s32.totalorder %s58, 3
      %p381 = por %p379, %p380
      %p383 = scmp.ne.s32.totalorder %s368, %s382
      %p384 = scmp.eq.s32.totalorder %s58, 0
      %p385 = por %p383, %p384
      %s387 = sadd.s32 %s386, 1
      %p390 = scmp.eq.s32.totalorder %s52, 3
      %p391 = scmp.ne.s32.totalorder %s386, %s388
      %p392 = scmp.eq.s32.totalorder %s52, 0
      %p393 = por %p391, %p392
      %p394 = scmp.ne.s32.totalorder %s386, %s388
      %p395 = scmp.eq.s32.totalorder %s57, 3
      %p396 = por %p394, %p395
      %p397 = scmp.ne.s32.totalorder %s388, %s389
      %p398 = scmp.eq.s32.totalorder %s57, 0
      %p399 = por %p397, %p398
      %p400 = scmp.ne.s32.totalorder %s388, %s389
      %p401 = scmp.eq.s32.totalorder %s58, 3
      %p402 = por %p400, %p401
      %p404 = scmp.ne.s32.totalorder %s389, %s403
      %p405 = scmp.eq.s32.totalorder %s58, 0
      %p406 = por %p404, %p405
      %s408 = sadd.s32 %s407, 1
      %p411 = scmp.eq.s32.totalorder %s52, 3
      %p412 = scmp.ne.s32.totalorder %s407, %s409
      %p413 = scmp.eq.s32.totalorder %s52, 0
      %p414 = por %p412, %p413
      %p415 = scmp.ne.s32.totalorder %s407, %s409
      %p416 = scmp.eq.s32.totalorder %s57, 3
      %p417 = por %p415, %p416
      %p418 = scmp.ne.s32.totalorder %s409, %s410
      %p419 = scmp.eq.s32.totalorder %s57, 0
      %p420 = por %p418, %p419
      %p421 = scmp.ne.s32.totalorder %s409, %s410
      %p422 = scmp.eq.s32.totalorder %s58, 3
      %p423 = por %p421, %p422
      %p425 = scmp.ne.s32.totalorder %s410, %s424
      %p426 = scmp.eq.s32.totalorder %s58, 0
      %p427 = por %p425, %p426
      %s429 = sadd.s32 %s428, 1
      %p432 = scmp.eq.s32.totalorder %s52, 3
      %p433 = scmp.ne.s32.totalorder %s428, %s430
      %p434 = scmp.eq.s32.totalorder %s52, 0
      %p435 = por %p433, %p434
      %p436 = scmp.ne.s32.totalorder %s428, %s430
      %p437 = scmp.eq.s32.totalorder %s57, 3
      %p438 = por %p436, %p437
      %p439 = scmp.ne.s32.totalorder %s430, %s431
      %p440 = scmp.eq.s32.totalorder %s57, 0
      %p441 = por %p439, %p440
      %p442 = scmp.ne.s32.totalorder %s430, %s431
      %p443 = scmp.eq.s32.totalorder %s58, 3
      %p444 = por %p442, %p443
      %p446 = scmp.ne.s32.totalorder %s431, %s445
      %p447 = scmp.eq.s32.totalorder %s58, 0
      %p448 = por %p446, %p447
      %s450 = sadd.s32 %s449, 1
      %p453 = scmp.eq.s32.totalorder %s52, 3
      %p454 = scmp.ne.s32.totalorder %s449, %s451
      %p455 = scmp.eq.s32.totalorder %s52, 0
      %p456 = por %p454, %p455
      %p457 = scmp.ne.s32.totalorder %s449, %s451
      %p458 = scmp.eq.s32.totalorder %s57, 3
      %p459 = por %p457, %p458
      %p460 = scmp.ne.s32.totalorder %s451, %s452
      %p461 = scmp.eq.s32.totalorder %s57, 0
      %p462 = por %p460, %p461
      %p463 = scmp.ne.s32.totalorder %s451, %s452
      %p464 = scmp.eq.s32.totalorder %s58, 3
      %p465 = por %p463, %p464
      %p467 = scmp.ne.s32.totalorder %s452, %s466
      %p468 = scmp.eq.s32.totalorder %s58, 0
      %p469 = por %p467, %p468
      %s471 = sadd.s32 %s470, 1
      %p474 = scmp.eq.s32.totalorder %s52, 3
      %p475 = scmp.ne.s32.totalorder %s470, %s472
      %p476 = scmp.eq.s32.totalorder %s52, 0
      %p477 = por %p475, %p476
      %p478 = scmp.ne.s32.totalorder %s470, %s472
      %p479 = scmp.eq.s32.totalorder %s57, 3
      %p480 = por %p478, %p479
      %p481 = scmp.ne.s32.totalorder %s472, %s473
      %p482 = scmp.eq.s32.totalorder %s57, 0
      %p483 = por %p481, %p482
      %p484 = scmp.ne.s32.totalorder %s472, %s473
      %p485 = scmp.eq.s32.totalorder %s58, 3
      %p486 = por %p484, %p485
      %p488 = scmp.ne.s32.totalorder %s473, %s487
      %p489 = scmp.eq.s32.totalorder %s58, 0
      %p490 = por %p488, %p489
      %s492 = sadd.s32 %s491, 1
      %p495 = scmp.eq.s32.totalorder %s52, 3
      %p496 = scmp.ne.s32.totalorder %s491, %s493
      %p497 = scmp.eq.s32.totalorder %s52, 0
      %p498 = por %p496, %p497
      %p499 = scmp.ne.s32.totalorder %s491, %s493
      %p500 = scmp.eq.s32.totalorder %s57, 3
      %p501 = por %p499, %p500
      %p502 = scmp.ne.s32.totalorder %s493, %s494
      %p503 = scmp.eq.s32.totalorder %s57, 0
      %p504 = por %p502, %p503
      %p505 = scmp.ne.s32.totalorder %s493, %s494
      %p506 = scmp.eq.s32.totalorder %s58, 3
      %p507 = por %p505, %p506
      %p509 = scmp.ne.s32.totalorder %s494, %s508
      %p510 = scmp.eq.s32.totalorder %s58, 0
      %p511 = por %p509, %p510
      %s513 = sadd.s32 %s512, 1
      %p516 = scmp.eq.s32.totalorder %s52, 3
      %p517 = scmp.ne.s32.totalorder %s512, %s514
      %p518 = scmp.eq.s32.totalorder %s52, 0
      %p519 = por %p517, %p518
      %p520 = scmp.ne.s32.totalorder %s512, %s514
      %p521 = scmp.eq.s32.totalorder %s57, 3
      %p522 = por %p520, %p521
      %p523 = scmp.ne.s32.totalorder %s514, %s515
      %p524 = scmp.eq.s32.totalorder %s57, 0
      %p525 = por %p523, %p524
      %p526 = scmp.ne.s32.totalorder %s514, %s515
      %p527 = scmp.eq.s32.totalorder %s58, 3
      %p528 = por %p526, %p527
      %p530 = scmp.ne.s32.totalorder %s515, %s529
      %p531 = scmp.eq.s32.totalorder %s58, 0
      %p532 = por %p530, %p531
      %s534 = sadd.s32 %s533, 1
      %p537 = scmp.eq.s32.totalorder %s52, 3
      %p538 = scmp.ne.s32.totalorder %s533, %s535
      %p539 = scmp.eq.s32.totalorder %s52, 0
      %p540 = por %p538, %p539
      %p541 = scmp.ne.s32.totalorder %s533, %s535
      %p542 = scmp.eq.s32.totalorder %s57, 3
      %p543 = por %p541, %p542
      %p544 = scmp.ne.s32.totalorder %s535, %s536
      %p545 = scmp.eq.s32.totalorder %s57, 0
      %p546 = por %p544, %p545
      %p547 = scmp.ne.s32.totalorder %s535, %s536
      %p548 = scmp.eq.s32.totalorder %s58, 3
      %p549 = por %p547, %p548
      %p551 = scmp.ne.s32.totalorder %s536, %s550
      %p552 = scmp.eq.s32.totalorder %s58, 0
      %p553 = por %p551, %p552
      %s555 = sadd.s32 %s554, 1
      %p558 = scmp.eq.s32.totalorder %s52, 3
      %p559 = scmp.ne.s32.totalorder %s554, %s556
      %p560 = scmp.eq.s32.totalorder %s52, 0
      %p561 = por %p559, %p560
      %p562 = scmp.ne.s32.totalorder %s554, %s556
      %p563 = scmp.eq.s32.totalorder %s57, 3
      %p564 = por %p562, %p563
      %p565 = scmp.ne.s32.totalorder %s556, %s557
      %p566 = scmp.eq.s32.totalorder %s57, 0
      %p567 = por %p565, %p566
      %p568 = scmp.ne.s32.totalorder %s556, %s557
      %p569 = scmp.eq.s32.totalorder %s58, 3
      %p570 = por %p568, %p569
      %p572 = scmp.ne.s32.totalorder %s557, %s571
      %p573 = scmp.eq.s32.totalorder %s58, 0
      %p574 = por %p572, %p573
      %s576 = sadd.s32 %s575, 1
      %p579 = scmp.eq.s32.totalorder %s52, 3
      %p580 = scmp.ne.s32.totalorder %s575, %s577
      %p581 = scmp.eq.s32.totalorder %s52, 0
      %p582 = por %p580, %p581
      %p583 = scmp.ne.s32.totalorder %s575, %s577
      %p584 = scmp.eq.s32.totalorder %s57, 3
      %p585 = por %p583, %p584
      %p586 = scmp.ne.s32.totalorder %s577, %s578
      %p587 = scmp.eq.s32.totalorder %s57, 0
      %p588 = por %p586, %p587
      %p589 = scmp.ne.s32.totalorder %s577, %s578
      %p590 = scmp.eq.s32.totalorder %s58, 3
      %p591 = por %p589, %p590
      %p593 = scmp.ne.s32.totalorder %s578, %s592
      %p594 = scmp.eq.s32.totalorder %s58, 0
      %p595 = por %p593, %p594
      %s596 = ssub.s32 %s59, %s71
      %p597 = scmp.eq.s32.totalorder %s596, 0
      %s599 = sadd.s32 %s598, 1
      %s600 = scalar_select %p597, %s598, %s599
      %p603 = pneg %p597
      %p604 = scmp.eq.s32.totalorder %s52, 3
      %p605 = por %p603, %p604
      %p606 = scmp.ne.s32.totalorder %s598, %s601
      %p607 = scmp.eq.s32.totalorder %s52, 0
      %p608 = por %p606, %p607
      %p609 = scmp.ne.s32.totalorder %s598, %s601
      %p610 = scmp.eq.s32.totalorder %s57, 3
      %p611 = por %p609, %p610
      %p612 = scmp.ne.s32.totalorder %s601, %s602
      %p613 = scmp.eq.s32.totalorder %s57, 0
      %p614 = por %p612, %p613
      %p615 = scmp.ne.s32.totalorder %s601, %s602
      %p616 = scmp.eq.s32.totalorder %s58, 3
      %p617 = por %p615, %p616
      %p619 = scmp.ne.s32.totalorder %s602, %s618
      %p620 = scmp.eq.s32.totalorder %s58, 0
      %p621 = por %p619, %p620
      %p622 = scmp.le.s32.totalorder 1, %s52
      %p623 = scmp.lt.s32.totalorder %s52, 5
      %p624 = pnand %p622, %p623
      %p625 = pneg %p624
      // Predicated region
      $region9: #{decoder_forward.1} parent=5 // pred_check
        _
      $region10: #{decoder_forward.1} parent=5 // pred_check_branch
        %627 = sbr.rel (%p624) target = $region12
      $region11: #{decoder_forward.1} parent=5 // pred_region
        %s628 = ssub.s32 %s52, 1
        // Predicated region
        $region13: #{decoder_forward.1} parent=11 // pred_check
          %p629 = pneg %p189
        $region14: #{decoder_forward.1} parent=11 // pred_check_branch
          %631 = sbr.rel (%p629) target = $region16
        $region15: #{decoder_forward.1} parent=11 // pred_region
          %s633 = ssub.s32 256, 256
          %634 = vsyncadd [#allocation11], %s633
          %s635 = sshll.u32 [#allocation12], 4
          %s636 = int_to_ptr.vmem [resolvable:$true] %s635
          %641 = dma.hbm_to_vmem [thread:$0]  %s4, 256, %s636, [#allocation11], 64, 64, 4
        $region16: #{decoder_forward.1} parent=11 // pred_fallthru
          _
        // Predicated region
        $region17: #{decoder_forward.1} parent=11 // pred_check
          %p642 = pneg %p210
        $region18: #{decoder_forward.1} parent=11 // pred_check_branch
          %644 = sbr.rel (%p642) target = $region20
        $region19: #{decoder_forward.1} parent=11 // pred_region
          %s646 = ssub.s32 16, 16
          %647 = vsyncadd [#allocation14], %s646
          %s649 = sshll.u32 [#allocation13], 4
          %s650 = int_to_ptr.vmem [resolvable:$true] %s649
          %652 = dma.hbm_to_vmem [thread:$0]  %s5, 16, %s650, [#allocation14]
        $region20: #{decoder_forward.1} parent=11 // pred_fallthru
          _
        // Predicated region
        $region21: #{decoder_forward.1} parent=11 // pred_check
          %p653 = pneg %p231
        $region22: #{decoder_forward.1} parent=11 // pred_check_branch
          %655 = sbr.rel (%p653) target = $region24
        $region23: #{decoder_forward.1} parent=11 // pred_region
          %s657 = ssub.s32 256, 256
          %658 = vsyncadd [#allocation14], %s657
          %s659 = sshll.u32 [#allocation15], 4
          %s660 = int_to_ptr.vmem [resolvable:$true] %s659
          %665 = dma.hbm_to_vmem [thread:$0]  %s6, 256, %s660, [#allocation14], 64, 64, 4
        $region24: #{decoder_forward.1} parent=11 // pred_fallthru
          _
        // Predicated region
        $region25: #{decoder_forward.1} parent=11 // pred_check
          %p666 = pneg %p252
        $region26: #{decoder_forward.1} parent=11 // pred_check_branch
          %668 = sbr.rel (%p666) target = $region28
        $region27: #{decoder_forward.1} parent=11 // pred_region
          %s670 = ssub.s32 16, 16
          %671 = vsyncadd [#allocation17], %s670
          %s673 = sshll.u32 [#allocation16], 4
          %s674 = int_to_ptr.vmem [resolvable:$true] %s673
          %676 = dma.hbm_to_vmem [thread:$0]  %s7, 16, %s674, [#allocation17]
        $region28: #{decoder_forward.1} parent=11 // pred_fallthru
          _
        // Predicated region
        $region29: #{decoder_forward.1} parent=11 // pred_check
          %p677 = pneg %p273
        $region30: #{decoder_forward.1} parent=11 // pred_check_branch
          %679 = sbr.rel (%p677) target = $region32
        $region31: #{decoder_forward.1} parent=11 // pred_region
          %s681 = ssub.s32 256, 256
          %682 = vsyncadd [#allocation17], %s681
          %s683 = sshll.u32 [#allocation18], 4
          %s684 = int_to_ptr.vmem [resolvable:$true] %s683
          %689 = dma.hbm_to_vmem [thread:$0]  %s8, 256, %s684, [#allocation17], 64, 64, 4
        $region32: #{decoder_forward.1} parent=11 // pred_fallthru
          _
        // Predicated region
        $region33: #{decoder_forward.1} parent=11 // pred_check
          %p690 = pneg %p294
        $region34: #{decoder_forward.1} parent=11 // pred_check_branch
          %692 = sbr.rel (%p690) target = $region36
        $region35: #{decoder_forward.1} parent=11 // pred_region
          %s694 = ssub.s32 16, 16
          %695 = vsyncadd [#allocation20], %s694
          %s697 = sshll.u32 [#allocation19], 4
          %s698 = int_to_ptr.vmem [resolvable:$true] %s697
          %700 = dma.hbm_to_vmem [thread:$0]  %s9, 16, %s698, [#allocation20]
        $region36: #{decoder_forward.1} parent=11 // pred_fallthru
          _
        // Predicated region
        $region37: #{decoder_forward.1} parent=11 // pred_check
          %p701 = pneg %p315
        $region38: #{decoder_forward.1} parent=11 // pred_check_branch
          %703 = sbr.rel (%p701) target = $region40
        $region39: #{decoder_forward.1} parent=11 // pred_region
          %s705 = ssub.s32 256, 256
          %706 = vsyncadd [#allocation20], %s705
          %s707 = sshll.u32 [#allocation21], 4
          %s708 = int_to_ptr.vmem [resolvable:$true] %s707
          %713 = dma.hbm_to_vmem [thread:$0]  %s10, 256, %s708, [#allocation20], 64, 64, 4
        $region40: #{decoder_forward.1} parent=11 // pred_fallthru
          _
        // Predicated region
        $region41: #{decoder_forward.1} parent=11 // pred_check
          %p714 = pneg %p336
        $region42: #{decoder_forward.1} parent=11 // pred_check_branch
          %716 = sbr.rel (%p714) target = $region44
        $region43: #{decoder_forward.1} parent=11 // pred_region
          %s718 = ssub.s32 16, 16
          %719 = vsyncadd [#allocation23], %s718
          %s721 = sshll.u32 [#allocation22], 4
          %s722 = int_to_ptr.vmem [resolvable:$true] %s721
          %724 = dma.hbm_to_vmem [thread:$0]  %s11, 16, %s722, [#allocation23]
        $region44: #{decoder_forward.1} parent=11 // pred_fallthru
          _
        // Predicated region
        $region45: #{decoder_forward.1} parent=11 // pred_check
          %p725 = pneg %p357
        $region46: #{decoder_forward.1} parent=11 // pred_check_branch
          %727 = sbr.rel (%p725) target = $region48
        $region47: #{decoder_forward.1} parent=11 // pred_region
          %s729 = ssub.s32 256, 256
          %730 = vsyncadd [#allocation23], %s729
          %s731 = sshll.u32 [#allocation24], 4
          %s732 = int_to_ptr.vmem [resolvable:$true] %s731
          %737 = dma.hbm_to_vmem [thread:$0]  %s12, 256, %s732, [#allocation23], 64, 64, 4
        $region48: #{decoder_forward.1} parent=11 // pred_fallthru
          _
        // Predicated region
        $region49: #{decoder_forward.1} parent=11 // pred_check
          %p738 = pneg %p378
        $region50: #{decoder_forward.1} parent=11 // pred_check_branch
          %740 = sbr.rel (%p738) target = $region52
        $region51: #{decoder_forward.1} parent=11 // pred_region
          %s742 = ssub.s32 16, 16
          %743 = vsyncadd [#allocation26], %s742
          %s745 = sshll.u32 [#allocation25], 4
          %s746 = int_to_ptr.vmem [resolvable:$true] %s745
          %748 = dma.hbm_to_vmem [thread:$0]  %s13, 16, %s746, [#allocation26]
        $region52: #{decoder_forward.1} parent=11 // pred_fallthru
          _
        // Predicated region
        $region53: #{decoder_forward.1} parent=11 // pred_check
          %p749 = pneg %p399
        $region54: #{decoder_forward.1} parent=11 // pred_check_branch
          %751 = sbr.rel (%p749) target = $region56
        $region55: #{decoder_forward.1} parent=11 // pred_region
          %s753 = ssub.s32 16, 16
          %754 = vsyncadd [#allocation26], %s753
          %s756 = sshll.u32 [#allocation27], 4
          %s757 = int_to_ptr.vmem [resolvable:$true] %s756
          %759 = dma.hbm_to_vmem [thread:$0]  %s14, 16, %s757, [#allocation26]
        $region56: #{decoder_forward.1} parent=11 // pred_fallthru
          _
        // Predicated region
        $region57: #{decoder_forward.1} parent=11 // pred_check
          %p760 = pneg %p420
        $region58: #{decoder_forward.1} parent=11 // pred_check_branch
          %762 = sbr.rel (%p760) target = $region60
        $region59: #{decoder_forward.1} parent=11 // pred_region
          %s764 = ssub.s32 16, 16
          %765 = vsyncadd [#allocation29], %s764
          %s767 = sshll.u32 [#allocation28], 4
          %s768 = int_to_ptr.vmem [resolvable:$true] %s767
          %770 = dma.hbm_to_vmem [thread:$0]  %s15, 16, %s768, [#allocation29]
        $region60: #{decoder_forward.1} parent=11 // pred_fallthru
          _
        // Predicated region
        $region61: #{decoder_forward.1} parent=11 // pred_check
          %p771 = pneg %p441
        $region62: #{decoder_forward.1} parent=11 // pred_check_branch
          %773 = sbr.rel (%p771) target = $region64
        $region63: #{decoder_forward.1} parent=11 // pred_region
          %s775 = ssub.s32 16, 16
          %776 = vsyncadd [#allocation29], %s775
          %s778 = sshll.u32 [#allocation30], 4
          %s779 = int_to_ptr.vmem [resolvable:$true] %s778
          %781 = dma.hbm_to_vmem [thread:$0]  %s16, 16, %s779, [#allocation29]
        $region64: #{decoder_forward.1} parent=11 // pred_fallthru
          _
        // Predicated region
        $region65: #{decoder_forward.1} parent=11 // pred_check
          %p782 = pneg %p462
        $region66: #{decoder_forward.1} parent=11 // pred_check_branch
          %784 = sbr.rel (%p782) target = $region68
        $region67: #{decoder_forward.1} parent=11 // pred_region
          %s786 = ssub.s32 16, 16
          %787 = vsyncadd [#allocation32], %s786
          %s789 = sshll.u32 [#allocation31], 4
          %s790 = int_to_ptr.vmem [resolvable:$true] %s789
          %792 = dma.hbm_to_vmem [thread:$0]  %s17, 16, %s790, [#allocation32]
        $region68: #{decoder_forward.1} parent=11 // pred_fallthru
          _
        // Predicated region
        $region69: #{decoder_forward.1} parent=11 // pred_check
          %p793 = pneg %p483
        $region70: #{decoder_forward.1} parent=11 // pred_check_branch
          %795 = sbr.rel (%p793) target = $region72
        $region71: #{decoder_forward.1} parent=11 // pred_region
          %s797 = ssub.s32 256, 256
          %798 = vsyncadd [#allocation32], %s797
          %s799 = sshll.u32 [#allocation33], 4
          %s800 = int_to_ptr.vmem [resolvable:$true] %s799
          %805 = dma.hbm_to_vmem [thread:$0]  %s18, 256, %s800, [#allocation32], 64, 64, 4
        $region72: #{decoder_forward.1} parent=11 // pred_fallthru
          _
        // Predicated region
        $region73: #{decoder_forward.1} parent=11 // pred_check
          %p806 = pneg %p504
        $region74: #{decoder_forward.1} parent=11 // pred_check_branch
          %808 = sbr.rel (%p806) target = $region76
        $region75: #{decoder_forward.1} parent=11 // pred_region
          %s810 = ssub.s32 16, 16
          %811 = vsyncadd [#allocation35], %s810
          %s813 = sshll.u32 [#allocation34], 4
          %s814 = int_to_ptr.vmem [resolvable:$true] %s813
          %816 = dma.hbm_to_vmem [thread:$0]  %s19, 16, %s814, [#allocation35]
        $region76: #{decoder_forward.1} parent=11 // pred_fallthru
          _
        // Predicated region
        $region77: #{decoder_forward.1} parent=11 // pred_check
          %p817 = pneg %p525
        $region78: #{decoder_forward.1} parent=11 // pred_check_branch
          %819 = sbr.rel (%p817) target = $region80
        $region79: #{decoder_forward.1} parent=11 // pred_region
          %s821 = ssub.s32 512, 512
          %822 = vsyncadd [#allocation35], %s821
          %s823 = sshll.u32 [#allocation36], 4
          %s824 = int_to_ptr.vmem [resolvable:$true] %s823
          %829 = dma.hbm_to_vmem [thread:$0]  %s20, 512, %s824, [#allocation35], 64, 64, 4
        $region80: #{decoder_forward.1} parent=11 // pred_fallthru
          _
        // Predicated region
        $region81: #{decoder_forward.1} parent=11 // pred_check
          %p830 = pneg %p546
        $region82: #{decoder_forward.1} parent=11 // pred_check_branch
          %832 = sbr.rel (%p830) target = $region84
        $region83: #{decoder_forward.1} parent=11 // pred_region
          %s834 = ssub.s32 16, 16
          %835 = vsyncadd [#allocation38], %s834
          %s837 = sshll.u32 [#allocation37], 4
          %s838 = int_to_ptr.vmem [resolvable:$true] %s837
          %840 = dma.hbm_to_vmem [thread:$0]  %s21, 16, %s838, [#allocation38]
        $region84: #{decoder_forward.1} parent=11 // pred_fallthru
          _
        // Predicated region
        $region85: #{decoder_forward.1} parent=11 // pred_check
          %p841 = pneg %p567
        $region86: #{decoder_forward.1} parent=11 // pred_check_branch
          %843 = sbr.rel (%p841) target = $region88
        $region87: #{decoder_forward.1} parent=11 // pred_region
          %s845 = ssub.s32 16, 16
          %846 = vsyncadd [#allocation38], %s845
          %s848 = sshll.u32 [#allocation39], 4
          %s849 = int_to_ptr.vmem [resolvable:$true] %s848
          %851 = dma.hbm_to_vmem [thread:$0]  %s22, 16, %s849, [#allocation38]
        $region88: #{decoder_forward.1} parent=11 // pred_fallthru
          _
        // Predicated region
        $region89: #{decoder_forward.1} parent=11 // pred_check
          %p852 = pneg %p588
        $region90: #{decoder_forward.1} parent=11 // pred_check_branch
          %854 = sbr.rel (%p852) target = $region92
        $region91: #{decoder_forward.1} parent=11 // pred_region
          %s856 = ssub.s32 16, 16
          %857 = vsyncadd [#allocation41], %s856
          %s859 = sshll.u32 [#allocation40], 4
          %s860 = int_to_ptr.vmem [resolvable:$true] %s859
          %862 = dma.hbm_to_vmem [thread:$0]  %s23, 16, %s860, [#allocation41]
        $region92: #{decoder_forward.1} parent=11 // pred_fallthru
          _
      $region12: #{decoder_forward.1} parent=5 // pred_fallthru
        _
      %p863 = scmp.lt.s32.totalorder %s52, 4
      // Predicated region
      $region93: #{decoder_forward.1} parent=5 // pred_check
        %p864 = pneg %p863
      $region94: #{decoder_forward.1} parent=5 // pred_check_branch
        %866 = sbr.rel (%p864) target = $region96
      $region95: #{decoder_forward.1} parent=5 // pred_region
        // Predicated region
        $region97: #{decoder_forward.1} parent=95 // pred_check
          %p867 = pneg %p84
        $region98: #{decoder_forward.1} parent=95 // pred_check_branch
          %869 = sbr.rel (%p867) target = $region100
        $region99: #{decoder_forward.1} parent=95 // pred_region
          %s870 = sand.u32 %s74, 1
          %s871 = scalar_lea.sflag [#allocation5], %s870
          %s872 = sand.u32 %s74, 1
          %s873 = smul.addr %s872, 8
          %s874 = scalar_lea.vmem [#allocation4], %s873
          %s876 = ssub.s32 128, 128
          %877 = vsyncadd %s871, %s876
          %s878 = smul.addr %s59, 128
          %s879 = scalar_lea.hbm %s0, %s878
          %s881 = sshll.u32 %s874, 4
          %s882 = int_to_ptr.vmem [resolvable:$true] %s881
          %884 = dma.hbm_to_vmem [thread:$0]  %s879, 128, %s882, %s871
        $region100: #{decoder_forward.1} parent=95 // pred_fallthru
          _
        // Predicated region
        $region101: #{decoder_forward.1} parent=95 // pred_check
          %p885 = pneg %p110
        $region102: #{decoder_forward.1} parent=95 // pred_check_branch
          %887 = sbr.rel (%p885) target = $region104
        $region103: #{decoder_forward.1} parent=95 // pred_region
          %s888 = sand.u32 %s52, 1
          %s889 = scalar_lea.sflag [#allocation8], %s888
          %s890 = sand.u32 %s100, 1
          %s891 = smul.addr %s890, 16
          %s892 = scalar_lea.vmem [#allocation7], %s891
          %s894 = ssub.s32 256, 256
          %895 = vsyncadd %s889, %s894
          %s896 = smul.addr %s59, 2
          %s897 = smul.addr %s896, 128
          %s898 = scalar_lea.hbm %s1, %s897
          %s899 = sshll.u32 %s892, 4
          %s900 = int_to_ptr.vmem [resolvable:$true] %s899
          %905 = dma.hbm_to_vmem [thread:$0]  %s898, 256, %s900, %s889, 128, 128, 8
        $region104: #{decoder_forward.1} parent=95 // pred_fallthru
          _
        // Predicated region
        $region105: #{decoder_forward.1} parent=95 // pred_check
          %p906 = pneg %p136
        $region106: #{decoder_forward.1} parent=95 // pred_check_branch
          %908 = sbr.rel (%p906) target = $region108
        $region107: #{decoder_forward.1} parent=95 // pred_region
          %s909 = sand.u32 %s52, 1
          %s910 = scalar_lea.sflag [#allocation8], %s909
          %s911 = sand.u32 %s126, 1
          %s912 = smul.addr %s911, 2
          %s913 = scalar_lea.vmem [#allocation9], %s912
          %s915 = ssub.s32 32, 32
          %916 = vsyncadd %s910, %s915
          %s917 = smul.addr %s59, 32
          %s918 = scalar_lea.hbm %s2, %s917
          %s920 = sshll.u32 %s913, 4
          %s921 = int_to_ptr.vmem [resolvable:$true] %s920
          %923 = dma.hbm_to_vmem [thread:$0]  %s918, 32, %s921, %s910
        $region108: #{decoder_forward.1} parent=95 // pred_fallthru
          _
        // Predicated region
        $region109: #{decoder_forward.1} parent=95 // pred_check
          %p924 = pneg %p162
        $region110: #{decoder_forward.1} parent=95 // pred_check_branch
          %926 = sbr.rel (%p924) target = $region112
        $region111: #{decoder_forward.1} parent=95 // pred_region
          %s927 = sand.u32 %s52, 1
          %s928 = scalar_lea.sflag [#allocation11], %s927
          %s929 = sand.u32 %s152, 1
          %s930 = smul.addr %s929, 2
          %s931 = scalar_lea.vmem [#allocation10], %s930
          %s933 = ssub.s32 32, 32
          %934 = vsyncadd %s928, %s933
          %s935 = smul.addr %s59, 32
          %s936 = scalar_lea.hbm %s3, %s935
          %s938 = sshll.u32 %s931, 4
          %s939 = int_to_ptr.vmem [resolvable:$true] %s938
          %941 = dma.hbm_to_vmem [thread:$0]  %s936, 32, %s939, %s928
        $region112: #{decoder_forward.1} parent=95 // pred_fallthru
          _
      $region96: #{decoder_forward.1} parent=5 // pred_fallthru
        _
      %p942 = scmp.le.s32.totalorder 1, %s52
      %p943 = scmp.lt.s32.totalorder %s52, 5
      %p944 = pnand %p942, %p943
      %p945 = pneg %p944
      // Predicated region
      $region113: #{decoder_forward.1} parent=5 // pred_check
        _
      $region114: #{decoder_forward.1} parent=5 // pred_check_branch
        %947 = sbr.rel (%p944) target = $region116
      $region115: #{decoder_forward.1} parent=5 // pred_region
        %s948 = ssub.s32 %s52, 1
        %s949 = sand.u32 %s77, 1
        %s950 = scalar_lea.sflag [#allocation5], %s949
        %s951 = sand.u32 %s77, 1
        %s952 = smul.addr %s951, 8
        %s953 = scalar_lea.vmem [#allocation4], %s952
        // Predicated region
        $region117: #{decoder_forward.1} parent=115 // pred_check
          %p954 = pneg %p90
        $region118: #{decoder_forward.1} parent=115 // pred_check_branch
          %956 = sbr.rel (%p954) target = $region120
        $region119: #{decoder_forward.1} parent=115 // pred_region
          %957 = dma.done %s950, 128
        $region120: #{decoder_forward.1} parent=115 // pred_fallthru
          _
        %s958 = sand.u32 %s57, 1
        %s959 = scalar_lea.sflag [#allocation8], %s958
        %s960 = sand.u32 %s103, 1
        %s961 = smul.addr %s960, 16
        %s962 = scalar_lea.vmem [#allocation7], %s961
        // Predicated region
        $region121: #{decoder_forward.1} parent=115 // pred_check
          %p963 = pneg %p116
        $region122: #{decoder_forward.1} parent=115 // pred_check_branch
          %965 = sbr.rel (%p963) target = $region124
        $region123: #{decoder_forward.1} parent=115 // pred_region
          %966 = dma.done %s959, 256
        $region124: #{decoder_forward.1} parent=115 // pred_fallthru
          _
        %s967 = sand.u32 %s57, 1
        %s968 = scalar_lea.sflag [#allocation8], %s967
        %s969 = sand.u32 %s129, 1
        %s970 = smul.addr %s969, 2
        %s971 = scalar_lea.vmem [#allocation9], %s970
        // Predicated region
        $region125: #{decoder_forward.1} parent=115 // pred_check
          %p972 = pneg %p142
        $region126: #{decoder_forward.1} parent=115 // pred_check_branch
          %974 = sbr.rel (%p972) target = $region128
        $region127: #{decoder_forward.1} parent=115 // pred_region
          %975 = dma.done %s968, 32
        $region128: #{decoder_forward.1} parent=115 // pred_fallthru
          _
        %s976 = sand.u32 %s57, 1
        %s977 = scalar_lea.sflag [#allocation11], %s976
        %s978 = sand.u32 %s155, 1
        %s979 = smul.addr %s978, 2
        %s980 = scalar_lea.vmem [#allocation10], %s979
        // Predicated region
        $region129: #{decoder_forward.1} parent=115 // pred_check
          %p981 = pneg %p168
        $region130: #{decoder_forward.1} parent=115 // pred_check_branch
          %983 = sbr.rel (%p981) target = $region132
        $region131: #{decoder_forward.1} parent=115 // pred_region
          %984 = dma.done %s977, 32
        $region132: #{decoder_forward.1} parent=115 // pred_fallthru
          _
        // Predicated region
        $region133: #{decoder_forward.1} parent=115 // pred_check
          %p985 = pneg %p189
        $region134: #{decoder_forward.1} parent=115 // pred_check_branch
          %987 = sbr.rel (%p985) target = $region136
        $region135: #{decoder_forward.1} parent=115 // pred_region
          %988 = dma.done [#allocation11], 256
        $region136: #{decoder_forward.1} parent=115 // pred_fallthru
          _
        // Predicated region
        $region137: #{decoder_forward.1} parent=115 // pred_check
          %p989 = pneg %p210
        $region138: #{decoder_forward.1} parent=115 // pred_check_branch
          %991 = sbr.rel (%p989) target = $region140
        $region139: #{decoder_forward.1} parent=115 // pred_region
          %992 = dma.done [#allocation14], 16
        $region140: #{decoder_forward.1} parent=115 // pred_fallthru
          _
        // Predicated region
        $region141: #{decoder_forward.1} parent=115 // pred_check
          %p993 = pneg %p231
        $region142: #{decoder_forward.1} parent=115 // pred_check_branch
          %995 = sbr.rel (%p993) target = $region144
        $region143: #{decoder_forward.1} parent=115 // pred_region
          %996 = dma.done [#allocation14], 256
        $region144: #{decoder_forward.1} parent=115 // pred_fallthru
          _
        // Predicated region
        $region145: #{decoder_forward.1} parent=115 // pred_check
          %p997 = pneg %p252
        $region146: #{decoder_forward.1} parent=115 // pred_check_branch
          %999 = sbr.rel (%p997) target = $region148
        $region147: #{decoder_forward.1} parent=115 // pred_region
          %1000 = dma.done [#allocation17], 16
        $region148: #{decoder_forward.1} parent=115 // pred_fallthru
          _
        // Predicated region
        $region149: #{decoder_forward.1} parent=115 // pred_check
          %p1001 = pneg %p273
        $region150: #{decoder_forward.1} parent=115 // pred_check_branch
          %1003 = sbr.rel (%p1001) target = $region152
        $region151: #{decoder_forward.1} parent=115 // pred_region
          %1004 = dma.done [#allocation17], 256
        $region152: #{decoder_forward.1} parent=115 // pred_fallthru
          _
        // Predicated region
        $region153: #{decoder_forward.1} parent=115 // pred_check
          %p1005 = pneg %p294
        $region154: #{decoder_forward.1} parent=115 // pred_check_branch
          %1007 = sbr.rel (%p1005) target = $region156
        $region155: #{decoder_forward.1} parent=115 // pred_region
          %1008 = dma.done [#allocation20], 16
        $region156: #{decoder_forward.1} parent=115 // pred_fallthru
          _
        // Predicated region
        $region157: #{decoder_forward.1} parent=115 // pred_check
          %p1009 = pneg %p315
        $region158: #{decoder_forward.1} parent=115 // pred_check_branch
          %1011 = sbr.rel (%p1009) target = $region160
        $region159: #{decoder_forward.1} parent=115 // pred_region
          %1012 = dma.done [#allocation20], 256
        $region160: #{decoder_forward.1} parent=115 // pred_fallthru
          _
        // Predicated region
        $region161: #{decoder_forward.1} parent=115 // pred_check
          %p1013 = pneg %p336
        $region162: #{decoder_forward.1} parent=115 // pred_check_branch
          %1015 = sbr.rel (%p1013) target = $region164
        $region163: #{decoder_forward.1} parent=115 // pred_region
          %1016 = dma.done [#allocation23], 16
        $region164: #{decoder_forward.1} parent=115 // pred_fallthru
          _
        // Predicated region
        $region165: #{decoder_forward.1} parent=115 // pred_check
          %p1017 = pneg %p357
        $region166: #{decoder_forward.1} parent=115 // pred_check_branch
          %1019 = sbr.rel (%p1017) target = $region168
        $region167: #{decoder_forward.1} parent=115 // pred_region
          %1020 = dma.done [#allocation23], 256
        $region168: #{decoder_forward.1} parent=115 // pred_fallthru
          _
        // Predicated region
        $region169: #{decoder_forward.1} parent=115 // pred_check
          %p1021 = pneg %p378
        $region170: #{decoder_forward.1} parent=115 // pred_check_branch
          %1023 = sbr.rel (%p1021) target = $region172
        $region171: #{decoder_forward.1} parent=115 // pred_region
          %1024 = dma.done [#allocation26], 16
        $region172: #{decoder_forward.1} parent=115 // pred_fallthru
          _
        // Predicated region
        $region173: #{decoder_forward.1} parent=115 // pred_check
          %p1025 = pneg %p399
        $region174: #{decoder_forward.1} parent=115 // pred_check_branch
          %1027 = sbr.rel (%p1025) target = $region176
        $region175: #{decoder_forward.1} parent=115 // pred_region
          %1028 = dma.done [#allocation26], 16
        $region176: #{decoder_forward.1} parent=115 // pred_fallthru
          _
        // Predicated region
        $region177: #{decoder_forward.1} parent=115 // pred_check
          %p1029 = pneg %p420
        $region178: #{decoder_forward.1} parent=115 // pred_check_branch
          %1031 = sbr.rel (%p1029) target = $region180
        $region179: #{decoder_forward.1} parent=115 // pred_region
          %1032 = dma.done [#allocation29], 16
        $region180: #{decoder_forward.1} parent=115 // pred_fallthru
          _
        // Predicated region
        $region181: #{decoder_forward.1} parent=115 // pred_check
          %p1033 = pneg %p441
        $region182: #{decoder_forward.1} parent=115 // pred_check_branch
          %1035 = sbr.rel (%p1033) target = $region184
        $region183: #{decoder_forward.1} parent=115 // pred_region
          %1036 = dma.done [#allocation29], 16
        $region184: #{decoder_forward.1} parent=115 // pred_fallthru
          _
        // Predicated region
        $region185: #{decoder_forward.1} parent=115 // pred_check
          %p1037 = pneg %p462
        $region186: #{decoder_forward.1} parent=115 // pred_check_branch
          %1039 = sbr.rel (%p1037) target = $region188
        $region187: #{decoder_forward.1} parent=115 // pred_region
          %1040 = dma.done [#allocation32], 16
        $region188: #{decoder_forward.1} parent=115 // pred_fallthru
          _
        // Predicated region
        $region189: #{decoder_forward.1} parent=115 // pred_check
          %p1041 = pneg %p483
        $region190: #{decoder_forward.1} parent=115 // pred_check_branch
          %1043 = sbr.rel (%p1041) target = $region192
        $region191: #{decoder_forward.1} parent=115 // pred_region
          %1044 = dma.done [#allocation32], 256
        $region192: #{decoder_forward.1} parent=115 // pred_fallthru
          _
        // Predicated region
        $region193: #{decoder_forward.1} parent=115 // pred_check
          %p1045 = pneg %p504
        $region194: #{decoder_forward.1} parent=115 // pred_check_branch
          %1047 = sbr.rel (%p1045) target = $region196
        $region195: #{decoder_forward.1} parent=115 // pred_region
          %1048 = dma.done [#allocation35], 16
        $region196: #{decoder_forward.1} parent=115 // pred_fallthru
          _
        // Predicated region
        $region197: #{decoder_forward.1} parent=115 // pred_check
          %p1049 = pneg %p525
        $region198: #{decoder_forward.1} parent=115 // pred_check_branch
          %1051 = sbr.rel (%p1049) target = $region200
        $region199: #{decoder_forward.1} parent=115 // pred_region
          %1052 = dma.done [#allocation35], 512
        $region200: #{decoder_forward.1} parent=115 // pred_fallthru
          _
        // Predicated region
        $region201: #{decoder_forward.1} parent=115 // pred_check
          %p1053 = pneg %p546
        $region202: #{decoder_forward.1} parent=115 // pred_check_branch
          %1055 = sbr.rel (%p1053) target = $region204
        $region203: #{decoder_forward.1} parent=115 // pred_region
          %1056 = dma.done [#allocation38], 16
        $region204: #{decoder_forward.1} parent=115 // pred_fallthru
          _
        // Predicated region
        $region205: #{decoder_forward.1} parent=115 // pred_check
          %p1057 = pneg %p567
        $region206: #{decoder_forward.1} parent=115 // pred_check_branch
          %1059 = sbr.rel (%p1057) target = $region208
        $region207: #{decoder_forward.1} parent=115 // pred_region
          %1060 = dma.done [#allocation38], 16
        $region208: #{decoder_forward.1} parent=115 // pred_fallthru
          _
        // Predicated region
        $region209: #{decoder_forward.1} parent=115 // pred_check
          %p1061 = pneg %p588
        $region210: #{decoder_forward.1} parent=115 // pred_check_branch
          %1063 = sbr.rel (%p1061) target = $region212
        $region211: #{decoder_forward.1} parent=115 // pred_region
          %1064 = dma.done [#allocation41], 16
        $region212: #{decoder_forward.1} parent=115 // pred_fallthru
          _
        %s1065 = sand.u32 %s77, 1
        %s1066 = scalar_lea.sflag [#allocation5], %s1065
        %s1067 = sand.u32 %s77, 1
        %s1068 = smul.addr %s1067, 8
        %s1069 = scalar_lea.vmem [#allocation4], %s1068
        %p1070 = pneg %p90
        %p1071 = pneg %p87
        %s1072 = sand.u32 %s57, 1
        %s1073 = scalar_lea.sflag [#allocation8], %s1072
        %s1074 = sand.u32 %s103, 1
        %s1075 = smul.addr %s1074, 16
        %s1076 = scalar_lea.vmem [#allocation7], %s1075
        %p1077 = pneg %p116
        %p1078 = pneg %p113
        %s1079 = sand.u32 %s57, 1
        %s1080 = scalar_lea.sflag [#allocation8], %s1079
        %s1081 = sand.u32 %s129, 1
        %s1082 = smul.addr %s1081, 2
        %s1083 = scalar_lea.vmem [#allocation9], %s1082
        %p1084 = pneg %p142
        %p1085 = pneg %p139
        %s1086 = sand.u32 %s57, 1
        %s1087 = scalar_lea.sflag [#allocation11], %s1086
        %s1088 = sand.u32 %s155, 1
        %s1089 = smul.addr %s1088, 2
        %s1090 = scalar_lea.vmem [#allocation10], %s1089
        %p1091 = pneg %p168
        %p1092 = pneg %p165
        %p1093 = pneg %p189
        %p1094 = pneg %p186
        %p1095 = pneg %p210
        %p1096 = pneg %p207
        %p1097 = pneg %p231
        %p1098 = pneg %p228
        %p1099 = pneg %p252
        %p1100 = pneg %p249
        %p1101 = pneg %p273
        %p1102 = pneg %p270
        %p1103 = pneg %p294
        %p1104 = pneg %p291
        %p1105 = pneg %p315
        %p1106 = pneg %p312
        %p1107 = pneg %p336
        %p1108 = pneg %p333
        %p1109 = pneg %p357
        %p1110 = pneg %p354
        %p1111 = pneg %p378
        %p1112 = pneg %p375
        %p1113 = pneg %p399
        %p1114 = pneg %p396
        %p1115 = pneg %p420
        %p1116 = pneg %p417
        %p1117 = pneg %p441
        %p1118 = pneg %p438
        %p1119 = pneg %p462
        %p1120 = pneg %p459
        %p1121 = pneg %p483
        %p1122 = pneg %p480
        %p1123 = pneg %p504
        %p1124 = pneg %p501
        %p1125 = pneg %p525
        %p1126 = pneg %p522
        %p1127 = pneg %p546
        %p1128 = pneg %p543
        %p1129 = pneg %p567
        %p1130 = pneg %p564
        %p1131 = pneg %p588
        %p1132 = pneg %p585
        %p1133 = pneg %p614
        %p1134 = pneg %p611
        %s1135 = sand.u32 %s601, 1
        %s1136 = scalar_lea.sflag [#allocation6], %s1135
        %s1137 = sand.u32 %s601, 1
        %s1138 = smul.addr %s1137, 8
        %s1139 = scalar_lea.vmem [#allocation42], %s1138
        %p1141 = scmp.eq.s32.totalorder %s62, 0
        // Predicated region
        $region213: #{decoder_forward.1} parent=115 // pred_check
          %p1142 = pneg %p1141
        $region214: #{decoder_forward.1} parent=115 // pred_check_branch
          %1144 = sbr.rel (%p1142) target = $region216
        $region215: #{decoder_forward.1} parent=115 // pred_region
          %v1145 = vld [vmem:[%s953] sm:$0xff]
          %vm1146 = vcmask 261120
          %1147 = vst.msk [vmem:[#allocation2] sm:$0xff] %vm1146, %v1145
          %v1148 = vld [vmem:[%s962] sm:$0xff]
          %v1149 = vld [vmem:[%s962 + $0x8] sm:$0xff]
          %v1150 = vpack.c.bf16 %v1149, %v1148
          %v1151 = vld [vmem:[#allocation21] sm:$0xf]
          %v1152 = vld [vmem:[#allocation21 + $0x4] sm:$0xf]
          %v1153 = vld [vmem:[#allocation21 + $0x8] sm:$0xf]
          %v1154 = vld [vmem:[#allocation21 + $0xc] sm:$0xf]
          %v1155 = vld [vmem:[#allocation22] sm:$0x1]
          %v1157 = vlaneseq
          %v1158 = vshrl.u32 %v1157, 7
          %v1159 = vsub.s32 0, %v1158
          %v1160 = vrot.slane %v1155, %v1159
          %v1166 = vunpack.c.l.b16 %v1151
          %v1167 = vunpack.c.l.b16 %v1152
          %v1168 = vunpack.c.l.b16 %v1153
          %v1169 = vunpack.c.l.b16 %v1154
          %v1170 = vpack.c.b16 %v1167, %v1166
          %v1171 = vpack.c.b16 %v1169, %v1168
          %v1175 = vsel %vm1146, %v1150, 0
          %1177 = vmatprep.subr.bf16.mxu0 0
          %1178 = vmatpush1.bf16.msra.mxu0 %v1170
          %1179 = vmatprep.subr.bf16.mxu0 0
          %1180 = vmatpush1.bf16.msra.mxu0 %v1171
          %1181 = vmatprep.subr.bf16.mxu0 0
          %1182 = vmatpush1.bf16.msra.mxu0 0
          %1183 = vmatprep.subr.bf16.mxu0 0
          %1184 = vmatpush1.bf16.msra.mxu0 0
          %1185 = vmatprep.subr.bf16.mxu0 0
          %1186 = vmatpush1.bf16.msra.mxu0 0
          %1187 = vmatprep.subr.bf16.mxu0 0
          %1188 = vmatpush1.bf16.msra.mxu0 0
          %1189 = vmatprep.subr.bf16.mxu0 0
          %1190 = vmatpush1.bf16.msra.mxu0 0
          %1191 = vmatprep.subr.bf16.mxu0 0
          %1192 = vmatpush1.bf16.msra.mxu0 0
          %1193 = vmatprep.subr.bf16.mxu0 0
          %1194 = vmatpush1.bf16.msra.mxu0 0
          %1195 = vmatprep.subr.bf16.mxu0 0
          %1196 = vmatpush1.bf16.msra.mxu0 0
          %1197 = vmatprep.subr.bf16.mxu0 0
          %1198 = vmatpush1.bf16.msra.mxu0 0
          %1199 = vmatprep.subr.bf16.mxu0 0
          %1200 = vmatpush1.bf16.msra.mxu0 0
          %1201 = vmatprep.subr.bf16.mxu0 0
          %1202 = vmatpush1.bf16.msra.mxu0 0
          %1203 = vmatprep.subr.bf16.mxu0 0
          %1204 = vmatpush1.bf16.msra.mxu0 0
          %1205 = vmatprep.subr.bf16.mxu0 0
          %1206 = vmatpush1.bf16.msra.mxu0 0
          %1207 = vmatprep.subr.bf16.mxu0 0
          %1208 = vmatpush1.bf16.msra.mxu0 0
          %1209 = vmatprep.mubr.bf16.mxu0 0
          %1210 = vmatmul.mubr.bf16.gmra.mrb[0].mxu0 %v1175
          %v1211 = vpop.f32.mrb[0].mxu0
          %v1212 = vadd.f32 %v1160, %v1211
          %v1213 = vpop.f32.mrb[0].mxu0
          %v1214 = vpop.f32.mrb[0].mxu0
          %v1215 = vadd.f32 %v1160, %v1214
          %v1216 = vpop.f32.mrb[0].mxu0
          %1217 = vdwg.mxu0
          %vm1218 = vcmask 523264
          %1219 = vst.msk [vmem:[#allocation3] sm:$0xff] %vm1218, %v1212
          %1220 = vst.msk [vmem:[#allocation3 + $0x8] sm:$0xff] %vm1218, %v1215
        $region216: #{decoder_forward.1} parent=115 // pred_fallthru
          _
        %v1221 = vld [vmem:[#allocation2] sm:$0xff]
        %v1222 = vpack.c.bf16 %v1221, %v1221
        %v1223 = vld [vmem:[#allocation12] sm:$0xf]
        %v1224 = vld [vmem:[#allocation12 + $0x4] sm:$0xf]
        %v1225 = vld [vmem:[#allocation12 + $0x8] sm:$0xf]
        %v1226 = vld [vmem:[#allocation12 + $0xc] sm:$0xf]
        %v1227 = vld [vmem:[#allocation13] sm:$0x1]
        %v1229 = vlaneseq
        %v1230 = vshrl.u32 %v1229, 7
        %v1231 = vsub.s32 0, %v1230
        %v1232 = vrot.slane %v1227, %v1231
        %v1238 = vunpack.c.l.b16 %v1223
        %v1239 = vunpack.c.l.b16 %v1224
        %v1240 = vunpack.c.l.b16 %v1225
        %v1241 = vunpack.c.l.b16 %v1226
        %v1242 = vpack.c.b16 %v1239, %v1238
        %v1243 = vpack.c.b16 %v1241, %v1240
        %vm1246 = vcmask 261120
        %v1248 = vsel %vm1246, %v1222, 0
        %1250 = vmatprep.subr.bf16.mxu0 0
        %1251 = vmatpush1.bf16.msra.mxu0 %v1242
        %1252 = vmatprep.subr.bf16.mxu0 0
        %1253 = vmatpush1.bf16.msra.mxu0 %v1243
        %1254 = vmatprep.subr.bf16.mxu0 0
        %1255 = vmatpush1.bf16.msra.mxu0 0
        %1256 = vmatprep.subr.bf16.mxu0 0
        %1257 = vmatpush1.bf16.msra.mxu0 0
        %1258 = vmatprep.subr.bf16.mxu0 0
        %1259 = vmatpush1.bf16.msra.mxu0 0
        %1260 = vmatprep.subr.bf16.mxu0 0
        %1261 = vmatpush1.bf16.msra.mxu0 0
        %1262 = vmatprep.subr.bf16.mxu0 0
        %1263 = vmatpush1.bf16.msra.mxu0 0
        %1264 = vmatprep.subr.bf16.mxu0 0
        %1265 = vmatpush1.bf16.msra.mxu0 0
        %1266 = vmatprep.subr.bf16.mxu0 0
        %1267 = vmatpush1.bf16.msra.mxu0 0
        %1268 = vmatprep.subr.bf16.mxu0 0
        %1269 = vmatpush1.bf16.msra.mxu0 0
        %1270 = vmatprep.subr.bf16.mxu0 0
        %1271 = vmatpush1.bf16.msra.mxu0 0
        %1272 = vmatprep.subr.bf16.mxu0 0
        %1273 = vmatpush1.bf16.msra.mxu0 0
        %1274 = vmatprep.subr.bf16.mxu0 0
        %1275 = vmatpush1.bf16.msra.mxu0 0
        %1276 = vmatprep.subr.bf16.mxu0 0
        %1277 = vmatpush1.bf16.msra.mxu0 0
        %1278 = vmatprep.subr.bf16.mxu0 0
        %1279 = vmatpush1.bf16.msra.mxu0 0
        %1280 = vmatprep.subr.bf16.mxu0 0
        %1281 = vmatpush1.bf16.msra.mxu0 0
        %1282 = vmatprep.mubr.bf16.mxu0 0
        %1283 = vmatmul.mubr.bf16.gmra.mrb[0].mxu0 %v1248
        %v1284 = vpop.f32.mrb[0].mxu0
        %v1285 = vadd.f32 %v1232, %v1284
        %v1286 = vpop.f32.mrb[0].mxu0
        %v1287 = vpop.f32.mrb[0].mxu0
        %v1288 = vpop.f32.mrb[0].mxu0
        %1289 = vdwg.mxu0
        %v1290 = vmul.f32 %v1285, 0.35355338
        %1292 = vrot.lane.b32.xlu0 %v1290, 120
        %v1293 = vpop.permute.xlu0 %1292
        %1295 = vrot.lane.b32.xlu0 %v1290, 112
        %v1296 = vpop.permute.xlu0 %1295
        %1298 = vrot.lane.b32.xlu0 %v1290, 104
        %v1299 = vpop.permute.xlu0 %1298
        %v1301 = vpack.c.bf16 %v1290, %v1290
        %v1302 = vpack.c.bf16 %v1293, %v1293
        %v1303 = vpack.c.bf16 %v1296, %v1296
        %v1304 = vpack.c.bf16 %v1299, %v1299
        %1306 = vrot.lane.b32.xlu0 %v1285, 120
        %v1307 = vpop.permute.xlu0 %1306
        %1309 = vrot.lane.b32.xlu0 %v1285, 112
        %v1310 = vpop.permute.xlu0 %1309
        %1312 = vrot.lane.b32.xlu0 %v1285, 104
        %v1313 = vpop.permute.xlu0 %1312
        %v1315 = vpack.c.bf16 %v1285, %v1285
        %v1316 = vpack.c.bf16 %v1307, %v1307
        %v1317 = vpack.c.bf16 %v1310, %v1310
        %v1318 = vpack.c.bf16 %v1313, %v1313
        %1320 = vrot.lane.b32.xlu0 %v1315, 96
        %v1321 = vpop.permute.xlu0 %1320
        %vm1322 = vcmask 64512
        %v1324 = vsel %vm1322, %v1301, 0
        %v1327 = vsel %vm1322, %v1321, 0
        %1329 = vmatprep.subr.bf16.mxu0 0
        %1330 = vmatpush1.bf16.xpose.msra.mxu0 %v1327
        %1331 = vmatprep.subr.bf16.mxu0 0
        %1332 = vmatpush1.bf16.xpose.msra.mxu0 0
        %1333 = vmatprep.subr.bf16.mxu0 0
        %1334 = vmatpush1.bf16.xpose.msra.mxu0 0
        %1335 = vmatprep.subr.bf16.mxu0 0
        %1336 = vmatpush1.bf16.xpose.msra.mxu0 0
        %1337 = vmatprep.subr.bf16.mxu0 0
        %1338 = vmatpush1.bf16.xpose.msra.mxu0 0
        %1339 = vmatprep.subr.bf16.mxu0 0
        %1340 = vmatpush1.bf16.xpose.msra.mxu0 0
        %1341 = vmatprep.subr.bf16.mxu0 0
        %1342 = vmatpush1.bf16.xpose.msra.mxu0 0
        %1343 = vmatprep.subr.bf16.mxu0 0
        %1344 = vmatpush1.bf16.xpose.msra.mxu0 0
        %1345 = vmatprep.subr.bf16.mxu0 0
        %1346 = vmatpush1.bf16.xpose.msra.mxu0 0
        %1347 = vmatprep.subr.bf16.mxu0 0
        %1348 = vmatpush1.bf16.xpose.msra.mxu0 0
        %1349 = vmatprep.subr.bf16.mxu0 0
        %1350 = vmatpush1.bf16.xpose.msra.mxu0 0
        %1351 = vmatprep.subr.bf16.mxu0 0
        %1352 = vmatpush1.bf16.xpose.msra.mxu0 0
        %1353 = vmatprep.subr.bf16.mxu0 0
        %1354 = vmatpush1.bf16.xpose.msra.mxu0 0
        %1355 = vmatprep.subr.bf16.mxu0 0
        %1356 = vmatpush1.bf16.xpose.msra.mxu0 0
        %1357 = vmatprep.subr.bf16.mxu0 0
        %1358 = vmatpush1.bf16.xpose.msra.mxu0 0
        %1359 = vmatprep.subr.bf16.mxu0 0
        %1360 = vmatpush1.bf16.xpose.msra.mxu0 0
        %1361 = vmatprep.mubr.bf16.mxu0 0
        %1362 = vmatmul.mubr.bf16.gmra.mrb[0].mxu0 %v1324
        %v1363 = vpop.f32.mrb[0].mxu0
        %v1364 = vadd.f32 0.0, %v1363
        %v1365 = vpop.f32.mrb[0].mxu0
        %v1366 = vpop.f32.mrb[0].mxu0
        %v1367 = vpop.f32.mrb[0].mxu0
        %1368 = vdwg.mxu0
        %1370 = vrot.lane.b32.xlu0 %v1316, 96
        %v1371 = vpop.permute.xlu0 %1370
        %v1373 = vsel %vm1322, %v1302, 0
        %v1376 = vsel %vm1322, %v1371, 0
        %1378 = vmatprep.subr.bf16.mxu0 0
        %1379 = vmatpush1.bf16.xpose.msra.mxu0 %v1376
        %1380 = vmatprep.subr.bf16.mxu0 0
        %1381 = vmatpush1.bf16.xpose.msra.mxu0 0
        %1382 = vmatprep.subr.bf16.mxu0 0
        %1383 = vmatpush1.bf16.xpose.msra.mxu0 0
        %1384 = vmatprep.subr.bf16.mxu0 0
        %1385 = vmatpush1.bf16.xpose.msra.mxu0 0
        %1386 = vmatprep.subr.bf16.mxu0 0
        %1387 = vmatpush1.bf16.xpose.msra.mxu0 0
        %1388 = vmatprep.subr.bf16.mxu0 0
        %1389 = vmatpush1.bf16.xpose.msra.mxu0 0
        %1390 = vmatprep.subr.bf16.mxu0 0
        %1391 = vmatpush1.bf16.xpose.msra.mxu0 0
        %1392 = vmatprep.subr.bf16.mxu0 0
        %1393 = vmatpush1.bf16.xpose.msra.mxu0 0
        %1394 = vmatprep.subr.bf16.mxu0 0
        %1395 = vmatpush1.bf16.xpose.msra.mxu0 0
        %1396 = vmatprep.subr.bf16.mxu0 0
        %1397 = vmatpush1.bf16.xpose.msra.mxu0 0
        %1398 = vmatprep.subr.bf16.mxu0 0
        %1399 = vmatpush1.bf16.xpose.msra.mxu0 0
        %1400 = vmatprep.subr.bf16.mxu0 0
        %1401 = vmatpush1.bf16.xpose.msra.mxu0 0
        %1402 = vmatprep.subr.bf16.mxu0 0
        %1403 = vmatpush1.bf16.xpose.msra.mxu0 0
        %1404 = vmatprep.subr.bf16.mxu0 0
        %1405 = vmatpush1.bf16.xpose.msra.mxu0 0
        %1406 = vmatprep.subr.bf16.mxu0 0
        %1407 = vmatpush1.bf16.xpose.msra.mxu0 0
        %1408 = vmatprep.subr.bf16.mxu0 0
        %1409 = vmatpush1.bf16.xpose.msra.mxu0 0
        %1410 = vmatprep.mubr.bf16.mxu0 0
        %1411 = vmatmul.mubr.bf16.gmra.mrb[0].mxu0 %v1373
        %v1412 = vpop.f32.mrb[0].mxu0
        %v1413 = vadd.f32 0.0, %v1412
        %v1414 = vpop.f32.mrb[0].mxu0
        %v1415 = vpop.f32.mrb[0].mxu0
        %v1416 = vpop.f32.mrb[0].mxu0
        %1417 = vdwg.mxu0
        %1419 = vrot.lane.b32.xlu0 %v1317, 96
        %v1420 = vpop.permute.xlu0 %1419
        %v1422 = vsel %vm1322, %v1303, 0
        %v1425 = vsel %vm1322, %v1420, 0
        %1427 = vmatprep.subr.bf16.mxu0 0
        %1428 = vmatpush1.bf16.xpose.msra.mxu0 %v1425
        %1429 = vmatprep.subr.bf16.mxu0 0
        %1430 = vmatpush1.bf16.xpose.msra.mxu0 0
        %1431 = vmatprep.subr.bf16.mxu0 0
        %1432 = vmatpush1.bf16.xpose.msra.mxu0 0
        %1433 = vmatprep.subr.bf16.mxu0 0
        %1434 = vmatpush1.bf16.xpose.msra.mxu0 0
        %1435 = vmatprep.subr.bf16.mxu0 0
        %1436 = vmatpush1.bf16.xpose.msra.mxu0 0
        %1437 = vmatprep.subr.bf16.mxu0 0
        %1438 = vmatpush1.bf16.xpose.msra.mxu0 0
        %1439 = vmatprep.subr.bf16.mxu0 0
        %1440 = vmatpush1.bf16.xpose.msra.mxu0 0
        %1441 = vmatprep.subr.bf16.mxu0 0
        %1442 = vmatpush1.bf16.xpose.msra.mxu0 0
        %1443 = vmatprep.subr.bf16.mxu0 0
        %1444 = vmatpush1.bf16.xpose.msra.mxu0 0
        %1445 = vmatprep.subr.bf16.mxu0 0
        %1446 = vmatpush1.bf16.xpose.msra.mxu0 0
        %1447 = vmatprep.subr.bf16.mxu0 0
        %1448 = vmatpush1.bf16.xpose.msra.mxu0 0
        %1449 = vmatprep.subr.bf16.mxu0 0
        %1450 = vmatpush1.bf16.xpose.msra.mxu0 0
        %1451 = vmatprep.subr.bf16.mxu0 0
        %1452 = vmatpush1.bf16.xpose.msra.mxu0 0
        %1453 = vmatprep.subr.bf16.mxu0 0
        %1454 = vmatpush1.bf16.xpose.msra.mxu0 0
        %1455 = vmatprep.subr.bf16.mxu0 0
        %1456 = vmatpush1.bf16.xpose.msra.mxu0 0
        %1457 = vmatprep.subr.bf16.mxu0 0
        %1458 = vmatpush1.bf16.xpose.msra.mxu0 0
        %1459 = vmatprep.mubr.bf16.mxu0 0
        %1460 = vmatmul.mubr.bf16.gmra.mrb[0].mxu0 %v1422
        %v1461 = vpop.f32.mrb[0].mxu0
        %v1462 = vadd.f32 0.0, %v1461
        %v1463 = vpop.f32.mrb[0].mxu0
        %v1464 = vpop.f32.mrb[0].mxu0
        %v1465 = vpop.f32.mrb[0].mxu0
        %1466 = vdwg.mxu0
        %1468 = vrot.lane.b32.xlu0 %v1318, 96
        %v1469 = vpop.permute.xlu0 %1468
        %v1471 = vsel %vm1322, %v1304, 0
        %v1474 = vsel %vm1322, %v1469, 0
        %1476 = vmatprep.subr.bf16.mxu0 0
        %1477 = vmatpush1.bf16.xpose.msra.mxu0 %v1474
        %1478 = vmatprep.subr.bf16.mxu0 0
        %1479 = vmatpush1.bf16.xpose.msra.mxu0 0
        %1480 = vmatprep.subr.bf16.mxu0 0
        %1481 = vmatpush1.bf16.xpose.msra.mxu0 0
        %1482 = vmatprep.subr.bf16.mxu0 0
        %1483 = vmatpush1.bf16.xpose.msra.mxu0 0
        %1484 = vmatprep.subr.bf16.mxu0 0
        %1485 = vmatpush1.bf16.xpose.msra.mxu0 0
        %1486 = vmatprep.subr.bf16.mxu0 0
        %1487 = vmatpush1.bf16.xpose.msra.mxu0 0
        %1488 = vmatprep.subr.bf16.mxu0 0
        %1489 = vmatpush1.bf16.xpose.msra.mxu0 0
        %1490 = vmatprep.subr.bf16.mxu0 0
        %1491 = vmatpush1.bf16.xpose.msra.mxu0 0
        %1492 = vmatprep.subr.bf16.mxu0 0
        %1493 = vmatpush1.bf16.xpose.msra.mxu0 0
        %1494 = vmatprep.subr.bf16.mxu0 0
        %1495 = vmatpush1.bf16.xpose.msra.mxu0 0
        %1496 = vmatprep.subr.bf16.mxu0 0
        %1497 = vmatpush1.bf16.xpose.msra.mxu0 0
        %1498 = vmatprep.subr.bf16.mxu0 0
        %1499 = vmatpush1.bf16.xpose.msra.mxu0 0
        %1500 = vmatprep.subr.bf16.mxu0 0
        %1501 = vmatpush1.bf16.xpose.msra.mxu0 0
        %1502 = vmatprep.subr.bf16.mxu0 0
        %1503 = vmatpush1.bf16.xpose.msra.mxu0 0
        %1504 = vmatprep.subr.bf16.mxu0 0
        %1505 = vmatpush1.bf16.xpose.msra.mxu0 0
        %1506 = vmatprep.subr.bf16.mxu0 0
        %1507 = vmatpush1.bf16.xpose.msra.mxu0 0
        %1508 = vmatprep.mubr.bf16.mxu0 0
        %1509 = vmatmul.mubr.bf16.gmra.mrb[0].mxu0 %v1471
        %v1510 = vpop.f32.mrb[0].mxu0
        %v1511 = vadd.f32 0.0, %v1510
        %v1512 = vpop.f32.mrb[0].mxu0
        %v1513 = vpop.f32.mrb[0].mxu0
        %v1514 = vpop.f32.mrb[0].mxu0
        %1515 = vdwg.mxu0
        %v1516 = vsel %vm1322, %v1364, -inf
        %1517 = vmax.xlane.f32.xlu0 %v1516
        %v1518 = vpop.xlane.xlu0 %1517
        %v1519 = vsel %vm1322, %v1413, -inf
        %1520 = vmax.xlane.f32.xlu0 %v1519
        %v1521 = vpop.xlane.xlu0 %1520
        %v1522 = vsel %vm1322, %v1462, -inf
        %1523 = vmax.xlane.f32.xlu0 %v1522
        %v1524 = vpop.xlane.xlu0 %1523
        %v1525 = vsel %vm1322, %v1511, -inf
        %1526 = vmax.xlane.f32.xlu0 %v1525
        %v1527 = vpop.xlane.xlu0 %1526
        %v1528 = vsub.f32 %v1364, %v1518
        %v1529 = vsub.f32 %v1413, %v1521
        %v1530 = vsub.f32 %v1462, %v1524
        %v1531 = vsub.f32 %v1511, %v1527
        %v1532 = vmul.f32 %v1528, 1.442695
        %v1533 = vpow.pop %v1532
        %v1534 = vmul.f32 %v1529, 1.442695
        %v1535 = vpow.pop %v1534
        %v1536 = vmul.f32 %v1530, 1.442695
        %v1537 = vpow.pop %v1536
        %v1538 = vmul.f32 %v1531, 1.442695
        %v1539 = vpow.pop %v1538
        %v1540 = vsel %vm1322, %v1533, 0.0
        %1541 = vadd.xlane.f32.xlu0 %v1540
        %v1542 = vpop.xlane.xlu0 %1541
        %v1543 = vsel %vm1322, %v1535, 0.0
        %1544 = vadd.xlane.f32.xlu0 %v1543
        %v1545 = vpop.xlane.xlu0 %1544
        %v1546 = vsel %vm1322, %v1537, 0.0
        %1547 = vadd.xlane.f32.xlu0 %v1546
        %v1548 = vpop.xlane.xlu0 %1547
        %v1549 = vsel %vm1322, %v1539, 0.0
        %1550 = vadd.xlane.f32.xlu0 %v1549
        %v1551 = vpop.xlane.xlu0 %1550
        %v1552 = vrcp.pop %v1542
        %v1553 = vrcp.pop %v1545
        %v1554 = vrcp.pop %v1548
        %v1555 = vrcp.pop %v1551
        %v1556 = vmul.f32 %v1533, %v1552
        %v1557 = vmul.f32 %v1535, %v1553
        %v1558 = vmul.f32 %v1537, %v1554
        %v1559 = vmul.f32 %v1539, %v1555
        %v1560 = vpack.c.bf16 %v1556, %v1556
        %v1561 = vpack.c.bf16 %v1557, %v1557
        %v1562 = vpack.c.bf16 %v1558, %v1558
        %v1563 = vpack.c.bf16 %v1559, %v1559
        %1564 = vrot.lane.b32.xlu0 %v1315, 64
        %v1565 = vpop.permute.xlu0 %1564
        %v1567 = vsel %vm1322, %v1560, 0
        %vm1569 = vcmask 1043456
        %v1571 = vsel %vm1569, %v1565, 0
        %1573 = vmatprep.subr.bf16.mxu0 0
        %1574 = vmatpush1.bf16.msra.mxu0 %v1571
        %1575 = vmatprep.subr.bf16.mxu0 0
        %1576 = vmatpush1.bf16.msra.mxu0 0
        %1577 = vmatprep.subr.bf16.mxu0 0
        %1578 = vmatpush1.bf16.msra.mxu0 0
        %1579 = vmatprep.subr.bf16.mxu0 0
        %1580 = vmatpush1.bf16.msra.mxu0 0
        %1581 = vmatprep.subr.bf16.mxu0 0
        %1582 = vmatpush1.bf16.msra.mxu0 0
        %1583 = vmatprep.subr.bf16.mxu0 0
        %1584 = vmatpush1.bf16.msra.mxu0 0
        %1585 = vmatprep.subr.bf16.mxu0 0
        %1586 = vmatpush1.bf16.msra.mxu0 0
        %1587 = vmatprep.subr.bf16.mxu0 0
        %1588 = vmatpush1.bf16.msra.mxu0 0
        %1589 = vmatprep.subr.bf16.mxu0 0
        %1590 = vmatpush1.bf16.msra.mxu0 0
        %1591 = vmatprep.subr.bf16.mxu0 0
        %1592 = vmatpush1.bf16.msra.mxu0 0
        %1593 = vmatprep.subr.bf16.mxu0 0
        %1594 = vmatpush1.bf16.msra.mxu0 0
        %1595 = vmatprep.subr.bf16.mxu0 0
        %1596 = vmatpush1.bf16.msra.mxu0 0
        %1597 = vmatprep.subr.bf16.mxu0 0
        %1598 = vmatpush1.bf16.msra.mxu0 0
        %1599 = vmatprep.subr.bf16.mxu0 0
        %1600 = vmatpush1.bf16.msra.mxu0 0
        %1601 = vmatprep.subr.bf16.mxu0 0
        %1602 = vmatpush1.bf16.msra.mxu0 0
        %1603 = vmatprep.subr.bf16.mxu0 0
        %1604 = vmatpush1.bf16.msra.mxu0 0
        %1605 = vmatprep.mubr.bf16.mxu0 0
        %1606 = vmatmul.mubr.bf16.gmra.mrb[0].mxu0 %v1567
        %v1607 = vpop.f32.mrb[0].mxu0
        %v1608 = vadd.f32 0.0, %v1607
        %v1609 = vpop.f32.mrb[0].mxu0
        %v1610 = vpop.f32.mrb[0].mxu0
        %v1611 = vpop.f32.mrb[0].mxu0
        %1612 = vdwg.mxu0
        %1613 = vrot.lane.b32.xlu0 %v1316, 64
        %v1614 = vpop.permute.xlu0 %1613
        %v1616 = vsel %vm1322, %v1561, 0
        %v1619 = vsel %vm1569, %v1614, 0
        %1621 = vmatprep.subr.bf16.mxu0 0
        %1622 = vmatpush1.bf16.msra.mxu0 %v1619
        %1623 = vmatprep.subr.bf16.mxu0 0
        %1624 = vmatpush1.bf16.msra.mxu0 0
        %1625 = vmatprep.subr.bf16.mxu0 0
        %1626 = vmatpush1.bf16.msra.mxu0 0
        %1627 = vmatprep.subr.bf16.mxu0 0
        %1628 = vmatpush1.bf16.msra.mxu0 0
        %1629 = vmatprep.subr.bf16.mxu0 0
        %1630 = vmatpush1.bf16.msra.mxu0 0
        %1631 = vmatprep.subr.bf16.mxu0 0
        %1632 = vmatpush1.bf16.msra.mxu0 0
        %1633 = vmatprep.subr.bf16.mxu0 0
        %1634 = vmatpush1.bf16.msra.mxu0 0
        %1635 = vmatprep.subr.bf16.mxu0 0
        %1636 = vmatpush1.bf16.msra.mxu0 0
        %1637 = vmatprep.subr.bf16.mxu0 0
        %1638 = vmatpush1.bf16.msra.mxu0 0
        %1639 = vmatprep.subr.bf16.mxu0 0
        %1640 = vmatpush1.bf16.msra.mxu0 0
        %1641 = vmatprep.subr.bf16.mxu0 0
        %1642 = vmatpush1.bf16.msra.mxu0 0
        %1643 = vmatprep.subr.bf16.mxu0 0
        %1644 = vmatpush1.bf16.msra.mxu0 0
        %1645 = vmatprep.subr.bf16.mxu0 0
        %1646 = vmatpush1.bf16.msra.mxu0 0
        %1647 = vmatprep.subr.bf16.mxu0 0
        %1648 = vmatpush1.bf16.msra.mxu0 0
        %1649 = vmatprep.subr.bf16.mxu0 0
        %1650 = vmatpush1.bf16.msra.mxu0 0
        %1651 = vmatprep.subr.bf16.mxu0 0
        %1652 = vmatpush1.bf16.msra.mxu0 0
        %1653 = vmatprep.mubr.bf16.mxu0 0
        %1654 = vmatmul.mubr.bf16.gmra.mrb[0].mxu0 %v1616
        %v1655 = vpop.f32.mrb[0].mxu0
        %v1656 = vadd.f32 0.0, %v1655
        %v1657 = vpop.f32.mrb[0].mxu0
        %v1658 = vpop.f32.mrb[0].mxu0
        %v1659 = vpop.f32.mrb[0].mxu0
        %1660 = vdwg.mxu0
        %1661 = vrot.lane.b32.xlu0 %v1317, 64
        %v1662 = vpop.permute.xlu0 %1661
        %v1664 = vsel %vm1322, %v1562, 0
        %v1667 = vsel %vm1569, %v1662, 0
        %1669 = vmatprep.subr.bf16.mxu0 0
        %1670 = vmatpush1.bf16.msra.mxu0 %v1667
        %1671 = vmatprep.subr.bf16.mxu0 0
        %1672 = vmatpush1.bf16.msra.mxu0 0
        %1673 = vmatprep.subr.bf16.mxu0 0
        %1674 = vmatpush1.bf16.msra.mxu0 0
        %1675 = vmatprep.subr.bf16.mxu0 0
        %1676 = vmatpush1.bf16.msra.mxu0 0
        %1677 = vmatprep.subr.bf16.mxu0 0
        %1678 = vmatpush1.bf16.msra.mxu0 0
        %1679 = vmatprep.subr.bf16.mxu0 0
        %1680 = vmatpush1.bf16.msra.mxu0 0
        %1681 = vmatprep.subr.bf16.mxu0 0
        %1682 = vmatpush1.bf16.msra.mxu0 0
        %1683 = vmatprep.subr.bf16.mxu0 0
        %1684 = vmatpush1.bf16.msra.mxu0 0
        %1685 = vmatprep.subr.bf16.mxu0 0
        %1686 = vmatpush1.bf16.msra.mxu0 0
        %1687 = vmatprep.subr.bf16.mxu0 0
        %1688 = vmatpush1.bf16.msra.mxu0 0
        %1689 = vmatprep.subr.bf16.mxu0 0
        %1690 = vmatpush1.bf16.msra.mxu0 0
        %1691 = vmatprep.subr.bf16.mxu0 0
        %1692 = vmatpush1.bf16.msra.mxu0 0
        %1693 = vmatprep.subr.bf16.mxu0 0
        %1694 = vmatpush1.bf16.msra.mxu0 0
        %1695 = vmatprep.subr.bf16.mxu0 0
        %1696 = vmatpush1.bf16.msra.mxu0 0
        %1697 = vmatprep.subr.bf16.mxu0 0
        %1698 = vmatpush1.bf16.msra.mxu0 0
        %1699 = vmatprep.subr.bf16.mxu0 0
        %1700 = vmatpush1.bf16.msra.mxu0 0
        %1701 = vmatprep.mubr.bf16.mxu0 0
        %1702 = vmatmul.mubr.bf16.gmra.mrb[0].mxu0 %v1664
        %v1703 = vpop.f32.mrb[0].mxu0
        %v1704 = vadd.f32 0.0, %v1703
        %v1705 = vpop.f32.mrb[0].mxu0
        %v1706 = vpop.f32.mrb[0].mxu0
        %v1707 = vpop.f32.mrb[0].mxu0
        %1708 = vdwg.mxu0
        %1709 = vrot.lane.b32.xlu0 %v1318, 64
        %v1710 = vpop.permute.xlu0 %1709
        %v1712 = vsel %vm1322, %v1563, 0
        %v1715 = vsel %vm1569, %v1710, 0
        %1717 = vmatprep.subr.bf16.mxu0 0
        %1718 = vmatpush1.bf16.msra.mxu0 %v1715
        %1719 = vmatprep.subr.bf16.mxu0 0
        %1720 = vmatpush1.bf16.msra.mxu0 0
        %1721 = vmatprep.subr.bf16.mxu0 0
        %1722 = vmatpush1.bf16.msra.mxu0 0
        %1723 = vmatprep.subr.bf16.mxu0 0
        %1724 = vmatpush1.bf16.msra.mxu0 0
        %1725 = vmatprep.subr.bf16.mxu0 0
        %1726 = vmatpush1.bf16.msra.mxu0 0
        %1727 = vmatprep.subr.bf16.mxu0 0
        %1728 = vmatpush1.bf16.msra.mxu0 0
        %1729 = vmatprep.subr.bf16.mxu0 0
        %1730 = vmatpush1.bf16.msra.mxu0 0
        %1731 = vmatprep.subr.bf16.mxu0 0
        %1732 = vmatpush1.bf16.msra.mxu0 0
        %1733 = vmatprep.subr.bf16.mxu0 0
        %1734 = vmatpush1.bf16.msra.mxu0 0
        %1735 = vmatprep.subr.bf16.mxu0 0
        %1736 = vmatpush1.bf16.msra.mxu0 0
        %1737 = vmatprep.subr.bf16.mxu0 0
        %1738 = vmatpush1.bf16.msra.mxu0 0
        %1739 = vmatprep.subr.bf16.mxu0 0
        %1740 = vmatpush1.bf16.msra.mxu0 0
        %1741 = vmatprep.subr.bf16.mxu0 0
        %1742 = vmatpush1.bf16.msra.mxu0 0
        %1743 = vmatprep.subr.bf16.mxu0 0
        %1744 = vmatpush1.bf16.msra.mxu0 0
        %1745 = vmatprep.subr.bf16.mxu0 0
        %1746 = vmatpush1.bf16.msra.mxu0 0
        %1747 = vmatprep.subr.bf16.mxu0 0
        %1748 = vmatpush1.bf16.msra.mxu0 0
        %1749 = vmatprep.mubr.bf16.mxu0 0
        %1750 = vmatmul.mubr.bf16.gmra.mrb[0].mxu0 %v1712
        %v1751 = vpop.f32.mrb[0].mxu0
        %v1752 = vadd.f32 0.0, %v1751
        %v1753 = vpop.f32.mrb[0].mxu0
        %v1754 = vpop.f32.mrb[0].mxu0
        %v1755 = vpop.f32.mrb[0].mxu0
        %1756 = vdwg.mxu0
        %1758 = vrot.lane.b32.xlu0 %v1656, 8
        %v1759 = vpop.permute.xlu0 %1758
        %1762 = vrot.lane.b32.xlu0 %v1704, 16
        %v1763 = vpop.permute.xlu0 %1762
        %1766 = vrot.lane.b32.xlu0 %v1752, 24
        %v1767 = vpop.permute.xlu0 %1766
        %v1769 = vsel %vm1322, %v1608, %v1759
        %vm1770 = vcmask 130048
        %v1771 = vsel %vm1770, %v1769, %v1763
        %vm1772 = vcmask 195584
        %v1773 = vsel %vm1772, %v1771, %v1767
        %v1774 = vpack.c.bf16 %v1773, %v1773
        %v1775 = vld [vmem:[#allocation15] sm:$0xf]
        %v1776 = vld [vmem:[#allocation15 + $0x4] sm:$0xf]
        %v1777 = vld [vmem:[#allocation15 + $0x8] sm:$0xf]
        %v1778 = vld [vmem:[#allocation15 + $0xc] sm:$0xf]
        %v1779 = vld [vmem:[#allocation16] sm:$0x1]
        %v1781 = vlaneseq
        %v1782 = vshrl.u32 %v1781, 7
        %v1783 = vsub.s32 0, %v1782
        %v1784 = vrot.slane %v1779, %v1783
        %v1790 = vunpack.c.l.b16 %v1775
        %v1791 = vunpack.c.l.b16 %v1776
        %v1792 = vunpack.c.l.b16 %v1777
        %v1793 = vunpack.c.l.b16 %v1778
        %v1794 = vpack.c.b16 %v1791, %v1790
        %v1795 = vpack.c.b16 %v1793, %v1792
        %v1799 = vsel %vm1246, %v1774, 0
        %1801 = vmatprep.subr.bf16.mxu0 0
        %1802 = vmatpush1.bf16.msra.mxu0 %v1794
        %1803 = vmatprep.subr.bf16.mxu0 0
        %1804 = vmatpush1.bf16.msra.mxu0 %v1795
        %1805 = vmatprep.subr.bf16.mxu0 0
        %1806 = vmatpush1.bf16.msra.mxu0 0
        %1807 = vmatprep.subr.bf16.mxu0 0
        %1808 = vmatpush1.bf16.msra.mxu0 0
        %1809 = vmatprep.subr.bf16.mxu0 0
        %1810 = vmatpush1.bf16.msra.mxu0 0
        %1811 = vmatprep.subr.bf16.mxu0 0
        %1812 = vmatpush1.bf16.msra.mxu0 0
        %1813 = vmatprep.subr.bf16.mxu0 0
        %1814 = vmatpush1.bf16.msra.mxu0 0
        %1815 = vmatprep.subr.bf16.mxu0 0
        %1816 = vmatpush1.bf16.msra.mxu0 0
        %1817 = vmatprep.subr.bf16.mxu0 0
        %1818 = vmatpush1.bf16.msra.mxu0 0
        %1819 = vmatprep.subr.bf16.mxu0 0
        %1820 = vmatpush1.bf16.msra.mxu0 0
        %1821 = vmatprep.subr.bf16.mxu0 0
        %1822 = vmatpush1.bf16.msra.mxu0 0
        %1823 = vmatprep.subr.bf16.mxu0 0
        %1824 = vmatpush1.bf16.msra.mxu0 0
        %1825 = vmatprep.subr.bf16.mxu0 0
        %1826 = vmatpush1.bf16.msra.mxu0 0
        %1827 = vmatprep.subr.bf16.mxu0 0
        %1828 = vmatpush1.bf16.msra.mxu0 0
        %1829 = vmatprep.subr.bf16.mxu0 0
        %1830 = vmatpush1.bf16.msra.mxu0 0
        %1831 = vmatprep.subr.bf16.mxu0 0
        %1832 = vmatpush1.bf16.msra.mxu0 0
        %1833 = vmatprep.mubr.bf16.mxu0 0
        %1834 = vmatmul.mubr.bf16.gmra.mrb[0].mxu0 %v1799
        %v1835 = vpop.f32.mrb[0].mxu0
        %v1836 = vadd.f32 %v1784, %v1835
        %v1837 = vpop.f32.mrb[0].mxu0
        %v1838 = vpop.f32.mrb[0].mxu0
        %v1839 = vpop.f32.mrb[0].mxu0
        %1840 = vdwg.mxu0
        %v1841 = vld [vmem:[%s971] sm:$0x3]
        %v1842 = vunpack.c.0.s8 %v1841
        %v1843 = vcvt.s32.f32 %v1842
        %vm1844 = vcmp.gt.f32.partialorder %v1843, 0.0
        %v1845 = vsel %vm1844, 0.0, -1e+09
        %v1846 = vpack.c.bf16 %v1836, %v1836
        %v1848 = vsel %vm1246, %v1846, 0
        %1850 = vmatprep.subr.bf16.mxu0 0
        %1851 = vmatpush1.bf16.msra.mxu0 %v1242
        %1852 = vmatprep.subr.bf16.mxu0 0
        %1853 = vmatpush1.bf16.msra.mxu0 %v1243
        %1854 = vmatprep.subr.bf16.mxu0 0
        %1855 = vmatpush1.bf16.msra.mxu0 0
        %1856 = vmatprep.subr.bf16.mxu0 0
        %1857 = vmatpush1.bf16.msra.mxu0 0
        %1858 = vmatprep.subr.bf16.mxu0 0
        %1859 = vmatpush1.bf16.msra.mxu0 0
        %1860 = vmatprep.subr.bf16.mxu0 0
        %1861 = vmatpush1.bf16.msra.mxu0 0
        %1862 = vmatprep.subr.bf16.mxu0 0
        %1863 = vmatpush1.bf16.msra.mxu0 0
        %1864 = vmatprep.subr.bf16.mxu0 0
        %1865 = vmatpush1.bf16.msra.mxu0 0
        %1866 = vmatprep.subr.bf16.mxu0 0
        %1867 = vmatpush1.bf16.msra.mxu0 0
        %1868 = vmatprep.subr.bf16.mxu0 0
        %1869 = vmatpush1.bf16.msra.mxu0 0
        %1870 = vmatprep.subr.bf16.mxu0 0
        %1871 = vmatpush1.bf16.msra.mxu0 0
        %1872 = vmatprep.subr.bf16.mxu0 0
        %1873 = vmatpush1.bf16.msra.mxu0 0
        %1874 = vmatprep.subr.bf16.mxu0 0
        %1875 = vmatpush1.bf16.msra.mxu0 0
        %1876 = vmatprep.subr.bf16.mxu0 0
        %1877 = vmatpush1.bf16.msra.mxu0 0
        %1878 = vmatprep.subr.bf16.mxu0 0
        %1879 = vmatpush1.bf16.msra.mxu0 0
        %1880 = vmatprep.subr.bf16.mxu0 0
        %1881 = vmatpush1.bf16.msra.mxu0 0
        %1882 = vmatprep.mubr.bf16.mxu0 0
        %1883 = vmatmul.mubr.bf16.gmra.mrb[0].mxu0 %v1848
        %v1884 = vpop.f32.mrb[0].mxu0
        %v1885 = vadd.f32 %v1232, %v1884
        %v1886 = vpop.f32.mrb[0].mxu0
        %v1887 = vpop.f32.mrb[0].mxu0
        %v1888 = vpop.f32.mrb[0].mxu0
        %1889 = vdwg.mxu0
        %v1890 = vmul.f32 %v1885, 0.35355338
        %1892 = vrot.lane.b32.xlu0 %v1890, 120
        %v1893 = vpop.permute.xlu0 %1892
        %1895 = vrot.lane.b32.xlu0 %v1890, 112
        %v1896 = vpop.permute.xlu0 %1895
        %1898 = vrot.lane.b32.xlu0 %v1890, 104
        %v1899 = vpop.permute.xlu0 %1898
        %v1901 = vpack.c.bf16 %v1890, %v1890
        %v1902 = vpack.c.bf16 %v1893, %v1893
        %v1903 = vpack.c.bf16 %v1896, %v1896
        %v1904 = vpack.c.bf16 %v1899, %v1899
        %1906 = vrot.lane.b32.xlu0 %v1885, 120
        %v1907 = vpop.permute.xlu0 %1906
        %1909 = vrot.lane.b32.xlu0 %v1885, 112
        %v1910 = vpop.permute.xlu0 %1909
        %1912 = vrot.lane.b32.xlu0 %v1885, 104
        %v1913 = vpop.permute.xlu0 %1912
        %v1915 = vpack.c.bf16 %v1885, %v1885
        %v1916 = vpack.c.bf16 %v1907, %v1907
        %v1917 = vpack.c.bf16 %v1910, %v1910
        %v1918 = vpack.c.bf16 %v1913, %v1913
        %1920 = vrot.lane.b32.xlu0 %v1915, 96
        %v1921 = vpop.permute.xlu0 %1920
        %v1923 = vsel %vm1322, %v1901, 0
        %v1926 = vsel %vm1322, %v1921, 0
        %1928 = vmatprep.subr.bf16.mxu0 0
        %1929 = vmatpush1.bf16.xpose.msra.mxu0 %v1926
        %1930 = vmatprep.subr.bf16.mxu0 0
        %1931 = vmatpush1.bf16.xpose.msra.mxu0 0
        %1932 = vmatprep.subr.bf16.mxu0 0
        %1933 = vmatpush1.bf16.xpose.msra.mxu0 0
        %1934 = vmatprep.subr.bf16.mxu0 0
        %1935 = vmatpush1.bf16.xpose.msra.mxu0 0
        %1936 = vmatprep.subr.bf16.mxu0 0
        %1937 = vmatpush1.bf16.xpose.msra.mxu0 0
        %1938 = vmatprep.subr.bf16.mxu0 0
        %1939 = vmatpush1.bf16.xpose.msra.mxu0 0
        %1940 = vmatprep.subr.bf16.mxu0 0
        %1941 = vmatpush1.bf16.xpose.msra.mxu0 0
        %1942 = vmatprep.subr.bf16.mxu0 0
        %1943 = vmatpush1.bf16.xpose.msra.mxu0 0
        %1944 = vmatprep.subr.bf16.mxu0 0
        %1945 = vmatpush1.bf16.xpose.msra.mxu0 0
        %1946 = vmatprep.subr.bf16.mxu0 0
        %1947 = vmatpush1.bf16.xpose.msra.mxu0 0
        %1948 = vmatprep.subr.bf16.mxu0 0
        %1949 = vmatpush1.bf16.xpose.msra.mxu0 0
        %1950 = vmatprep.subr.bf16.mxu0 0
        %1951 = vmatpush1.bf16.xpose.msra.mxu0 0
        %1952 = vmatprep.subr.bf16.mxu0 0
        %1953 = vmatpush1.bf16.xpose.msra.mxu0 0
        %1954 = vmatprep.subr.bf16.mxu0 0
        %1955 = vmatpush1.bf16.xpose.msra.mxu0 0
        %1956 = vmatprep.subr.bf16.mxu0 0
        %1957 = vmatpush1.bf16.xpose.msra.mxu0 0
        %1958 = vmatprep.subr.bf16.mxu0 0
        %1959 = vmatpush1.bf16.xpose.msra.mxu0 0
        %1960 = vmatprep.mubr.bf16.mxu0 0
        %1961 = vmatmul.mubr.bf16.gmra.mrb[0].mxu0 %v1923
        %v1962 = vpop.f32.mrb[0].mxu0
        %v1963 = vadd.f32 %v1845, %v1962
        %v1964 = vpop.f32.mrb[0].mxu0
        %v1965 = vpop.f32.mrb[0].mxu0
        %v1966 = vpop.f32.mrb[0].mxu0
        %1967 = vdwg.mxu0
        %1969 = vrot.lane.b32.xlu0 %v1916, 96
        %v1970 = vpop.permute.xlu0 %1969
        %v1972 = vsel %vm1322, %v1902, 0
        %v1975 = vsel %vm1322, %v1970, 0
        %1977 = vmatprep.subr.bf16.mxu0 0
        %1978 = vmatpush1.bf16.xpose.msra.mxu0 %v1975
        %1979 = vmatprep.subr.bf16.mxu0 0
        %1980 = vmatpush1.bf16.xpose.msra.mxu0 0
        %1981 = vmatprep.subr.bf16.mxu0 0
        %1982 = vmatpush1.bf16.xpose.msra.mxu0 0
        %1983 = vmatprep.subr.bf16.mxu0 0
        %1984 = vmatpush1.bf16.xpose.msra.mxu0 0
        %1985 = vmatprep.subr.bf16.mxu0 0
        %1986 = vmatpush1.bf16.xpose.msra.mxu0 0
        %1987 = vmatprep.subr.bf16.mxu0 0
        %1988 = vmatpush1.bf16.xpose.msra.mxu0 0
        %1989 = vmatprep.subr.bf16.mxu0 0
        %1990 = vmatpush1.bf16.xpose.msra.mxu0 0
        %1991 = vmatprep.subr.bf16.mxu0 0
        %1992 = vmatpush1.bf16.xpose.msra.mxu0 0
        %1993 = vmatprep.subr.bf16.mxu0 0
        %1994 = vmatpush1.bf16.xpose.msra.mxu0 0
        %1995 = vmatprep.subr.bf16.mxu0 0
        %1996 = vmatpush1.bf16.xpose.msra.mxu0 0
        %1997 = vmatprep.subr.bf16.mxu0 0
        %1998 = vmatpush1.bf16.xpose.msra.mxu0 0
        %1999 = vmatprep.subr.bf16.mxu0 0
        %2000 = vmatpush1.bf16.xpose.msra.mxu0 0
        %2001 = vmatprep.subr.bf16.mxu0 0
        %2002 = vmatpush1.bf16.xpose.msra.mxu0 0
        %2003 = vmatprep.subr.bf16.mxu0 0
        %2004 = vmatpush1.bf16.xpose.msra.mxu0 0
        %2005 = vmatprep.subr.bf16.mxu0 0
        %2006 = vmatpush1.bf16.xpose.msra.mxu0 0
        %2007 = vmatprep.subr.bf16.mxu0 0
        %2008 = vmatpush1.bf16.xpose.msra.mxu0 0
        %2009 = vmatprep.mubr.bf16.mxu0 0
        %2010 = vmatmul.mubr.bf16.gmra.mrb[0].mxu0 %v1972
        %v2011 = vpop.f32.mrb[0].mxu0
        %v2012 = vadd.f32 %v1845, %v2011
        %v2013 = vpop.f32.mrb[0].mxu0
        %v2014 = vpop.f32.mrb[0].mxu0
        %v2015 = vpop.f32.mrb[0].mxu0
        %2016 = vdwg.mxu0
        %2018 = vrot.lane.b32.xlu0 %v1917, 96
        %v2019 = vpop.permute.xlu0 %2018
        %v2021 = vsel %vm1322, %v1903, 0
        %v2024 = vsel %vm1322, %v2019, 0
        %2026 = vmatprep.subr.bf16.mxu0 0
        %2027 = vmatpush1.bf16.xpose.msra.mxu0 %v2024
        %2028 = vmatprep.subr.bf16.mxu0 0
        %2029 = vmatpush1.bf16.xpose.msra.mxu0 0
        %2030 = vmatprep.subr.bf16.mxu0 0
        %2031 = vmatpush1.bf16.xpose.msra.mxu0 0
        %2032 = vmatprep.subr.bf16.mxu0 0
        %2033 = vmatpush1.bf16.xpose.msra.mxu0 0
        %2034 = vmatprep.subr.bf16.mxu0 0
        %2035 = vmatpush1.bf16.xpose.msra.mxu0 0
        %2036 = vmatprep.subr.bf16.mxu0 0
        %2037 = vmatpush1.bf16.xpose.msra.mxu0 0
        %2038 = vmatprep.subr.bf16.mxu0 0
        %2039 = vmatpush1.bf16.xpose.msra.mxu0 0
        %2040 = vmatprep.subr.bf16.mxu0 0
        %2041 = vmatpush1.bf16.xpose.msra.mxu0 0
        %2042 = vmatprep.subr.bf16.mxu0 0
        %2043 = vmatpush1.bf16.xpose.msra.mxu0 0
        %2044 = vmatprep.subr.bf16.mxu0 0
        %2045 = vmatpush1.bf16.xpose.msra.mxu0 0
        %2046 = vmatprep.subr.bf16.mxu0 0
        %2047 = vmatpush1.bf16.xpose.msra.mxu0 0
        %2048 = vmatprep.subr.bf16.mxu0 0
        %2049 = vmatpush1.bf16.xpose.msra.mxu0 0
        %2050 = vmatprep.subr.bf16.mxu0 0
        %2051 = vmatpush1.bf16.xpose.msra.mxu0 0
        %2052 = vmatprep.subr.bf16.mxu0 0
        %2053 = vmatpush1.bf16.xpose.msra.mxu0 0
        %2054 = vmatprep.subr.bf16.mxu0 0
        %2055 = vmatpush1.bf16.xpose.msra.mxu0 0
        %2056 = vmatprep.subr.bf16.mxu0 0
        %2057 = vmatpush1.bf16.xpose.msra.mxu0 0
        %2058 = vmatprep.mubr.bf16.mxu0 0
        %2059 = vmatmul.mubr.bf16.gmra.mrb[0].mxu0 %v2021
        %v2060 = vpop.f32.mrb[0].mxu0
        %v2061 = vadd.f32 %v1845, %v2060
        %v2062 = vpop.f32.mrb[0].mxu0
        %v2063 = vpop.f32.mrb[0].mxu0
        %v2064 = vpop.f32.mrb[0].mxu0
        %2065 = vdwg.mxu0
        %2067 = vrot.lane.b32.xlu0 %v1918, 96
        %v2068 = vpop.permute.xlu0 %2067
        %v2070 = vsel %vm1322, %v1904, 0
        %v2073 = vsel %vm1322, %v2068, 0
        %2075 = vmatprep.subr.bf16.mxu0 0
        %2076 = vmatpush1.bf16.xpose.msra.mxu0 %v2073
        %2077 = vmatprep.subr.bf16.mxu0 0
        %2078 = vmatpush1.bf16.xpose.msra.mxu0 0
        %2079 = vmatprep.subr.bf16.mxu0 0
        %2080 = vmatpush1.bf16.xpose.msra.mxu0 0
        %2081 = vmatprep.subr.bf16.mxu0 0
        %2082 = vmatpush1.bf16.xpose.msra.mxu0 0
        %2083 = vmatprep.subr.bf16.mxu0 0
        %2084 = vmatpush1.bf16.xpose.msra.mxu0 0
        %2085 = vmatprep.subr.bf16.mxu0 0
        %2086 = vmatpush1.bf16.xpose.msra.mxu0 0
        %2087 = vmatprep.subr.bf16.mxu0 0
        %2088 = vmatpush1.bf16.xpose.msra.mxu0 0
        %2089 = vmatprep.subr.bf16.mxu0 0
        %2090 = vmatpush1.bf16.xpose.msra.mxu0 0
        %2091 = vmatprep.subr.bf16.mxu0 0
        %2092 = vmatpush1.bf16.xpose.msra.mxu0 0
        %2093 = vmatprep.subr.bf16.mxu0 0
        %2094 = vmatpush1.bf16.xpose.msra.mxu0 0
        %2095 = vmatprep.subr.bf16.mxu0 0
        %2096 = vmatpush1.bf16.xpose.msra.mxu0 0
        %2097 = vmatprep.subr.bf16.mxu0 0
        %2098 = vmatpush1.bf16.xpose.msra.mxu0 0
        %2099 = vmatprep.subr.bf16.mxu0 0
        %2100 = vmatpush1.bf16.xpose.msra.mxu0 0
        %2101 = vmatprep.subr.bf16.mxu0 0
        %2102 = vmatpush1.bf16.xpose.msra.mxu0 0
        %2103 = vmatprep.subr.bf16.mxu0 0
        %2104 = vmatpush1.bf16.xpose.msra.mxu0 0
        %2105 = vmatprep.subr.bf16.mxu0 0
        %2106 = vmatpush1.bf16.xpose.msra.mxu0 0
        %2107 = vmatprep.mubr.bf16.mxu0 0
        %2108 = vmatmul.mubr.bf16.gmra.mrb[0].mxu0 %v2070
        %v2109 = vpop.f32.mrb[0].mxu0
        %v2110 = vadd.f32 %v1845, %v2109
        %v2111 = vpop.f32.mrb[0].mxu0
        %v2112 = vpop.f32.mrb[0].mxu0
        %v2113 = vpop.f32.mrb[0].mxu0
        %2114 = vdwg.mxu0
        %v2115 = vsel %vm1322, %v1963, -inf
        %2116 = vmax.xlane.f32.xlu0 %v2115
        %v2117 = vpop.xlane.xlu0 %2116
        %v2118 = vsel %vm1322, %v2012, -inf
        %2119 = vmax.xlane.f32.xlu0 %v2118
        %v2120 = vpop.xlane.xlu0 %2119
        %v2121 = vsel %vm1322, %v2061, -inf
        %2122 = vmax.xlane.f32.xlu0 %v2121
        %v2123 = vpop.xlane.xlu0 %2122
        %v2124 = vsel %vm1322, %v2110, -inf
        %2125 = vmax.xlane.f32.xlu0 %v2124
        %v2126 = vpop.xlane.xlu0 %2125
        %v2127 = vsub.f32 %v1963, %v2117
        %v2128 = vsub.f32 %v2012, %v2120
        %v2129 = vsub.f32 %v2061, %v2123
        %v2130 = vsub.f32 %v2110, %v2126
        %v2131 = vmul.f32 %v2127, 1.442695
        %v2132 = vpow.pop %v2131
        %v2133 = vmul.f32 %v2128, 1.442695
        %v2134 = vpow.pop %v2133
        %v2135 = vmul.f32 %v2129, 1.442695
        %v2136 = vpow.pop %v2135
        %v2137 = vmul.f32 %v2130, 1.442695
        %v2138 = vpow.pop %v2137
        %v2139 = vsel %vm1322, %v2132, 0.0
        %2140 = vadd.xlane.f32.xlu0 %v2139
        %v2141 = vpop.xlane.xlu0 %2140
        %v2142 = vsel %vm1322, %v2134, 0.0
        %2143 = vadd.xlane.f32.xlu0 %v2142
        %v2144 = vpop.xlane.xlu0 %2143
        %v2145 = vsel %vm1322, %v2136, 0.0
        %2146 = vadd.xlane.f32.xlu0 %v2145
        %v2147 = vpop.xlane.xlu0 %2146
        %v2148 = vsel %vm1322, %v2138, 0.0
        %2149 = vadd.xlane.f32.xlu0 %v2148
        %v2150 = vpop.xlane.xlu0 %2149
        %v2151 = vrcp.pop %v2141
        %v2152 = vrcp.pop %v2144
        %v2153 = vrcp.pop %v2147
        %v2154 = vrcp.pop %v2150
        %v2155 = vmul.f32 %v2132, %v2151
        %v2156 = vmul.f32 %v2134, %v2152
        %v2157 = vmul.f32 %v2136, %v2153
        %v2158 = vmul.f32 %v2138, %v2154
        %v2159 = vpack.c.bf16 %v2155, %v2155
        %v2160 = vpack.c.bf16 %v2156, %v2156
        %v2161 = vpack.c.bf16 %v2157, %v2157
        %v2162 = vpack.c.bf16 %v2158, %v2158
        %2163 = vrot.lane.b32.xlu0 %v1915, 64
        %v2164 = vpop.permute.xlu0 %2163
        %v2166 = vsel %vm1322, %v2159, 0
        %v2169 = vsel %vm1569, %v2164, 0
        %2171 = vmatprep.subr.bf16.mxu0 0
        %2172 = vmatpush1.bf16.msra.mxu0 %v2169
        %2173 = vmatprep.subr.bf16.mxu0 0
        %2174 = vmatpush1.bf16.msra.mxu0 0
        %2175 = vmatprep.subr.bf16.mxu0 0
        %2176 = vmatpush1.bf16.msra.mxu0 0
        %2177 = vmatprep.subr.bf16.mxu0 0
        %2178 = vmatpush1.bf16.msra.mxu0 0
        %2179 = vmatprep.subr.bf16.mxu0 0
        %2180 = vmatpush1.bf16.msra.mxu0 0
        %2181 = vmatprep.subr.bf16.mxu0 0
        %2182 = vmatpush1.bf16.msra.mxu0 0
        %2183 = vmatprep.subr.bf16.mxu0 0
        %2184 = vmatpush1.bf16.msra.mxu0 0
        %2185 = vmatprep.subr.bf16.mxu0 0
        %2186 = vmatpush1.bf16.msra.mxu0 0
        %2187 = vmatprep.subr.bf16.mxu0 0
        %2188 = vmatpush1.bf16.msra.mxu0 0
        %2189 = vmatprep.subr.bf16.mxu0 0
        %2190 = vmatpush1.bf16.msra.mxu0 0
        %2191 = vmatprep.subr.bf16.mxu0 0
        %2192 = vmatpush1.bf16.msra.mxu0 0
        %2193 = vmatprep.subr.bf16.mxu0 0
        %2194 = vmatpush1.bf16.msra.mxu0 0
        %2195 = vmatprep.subr.bf16.mxu0 0
        %2196 = vmatpush1.bf16.msra.mxu0 0
        %2197 = vmatprep.subr.bf16.mxu0 0
        %2198 = vmatpush1.bf16.msra.mxu0 0
        %2199 = vmatprep.subr.bf16.mxu0 0
        %2200 = vmatpush1.bf16.msra.mxu0 0
        %2201 = vmatprep.subr.bf16.mxu0 0
        %2202 = vmatpush1.bf16.msra.mxu0 0
        %2203 = vmatprep.mubr.bf16.mxu0 0
        %2204 = vmatmul.mubr.bf16.gmra.mrb[0].mxu0 %v2166
        %v2205 = vpop.f32.mrb[0].mxu0
        %v2206 = vadd.f32 0.0, %v2205
        %v2207 = vpop.f32.mrb[0].mxu0
        %v2208 = vpop.f32.mrb[0].mxu0
        %v2209 = vpop.f32.mrb[0].mxu0
        %2210 = vdwg.mxu0
        %2211 = vrot.lane.b32.xlu0 %v1916, 64
        %v2212 = vpop.permute.xlu0 %2211
        %v2214 = vsel %vm1322, %v2160, 0
        %v2217 = vsel %vm1569, %v2212, 0
        %2219 = vmatprep.subr.bf16.mxu0 0
        %2220 = vmatpush1.bf16.msra.mxu0 %v2217
        %2221 = vmatprep.subr.bf16.mxu0 0
        %2222 = vmatpush1.bf16.msra.mxu0 0
        %2223 = vmatprep.subr.bf16.mxu0 0
        %2224 = vmatpush1.bf16.msra.mxu0 0
        %2225 = vmatprep.subr.bf16.mxu0 0
        %2226 = vmatpush1.bf16.msra.mxu0 0
        %2227 = vmatprep.subr.bf16.mxu0 0
        %2228 = vmatpush1.bf16.msra.mxu0 0
        %2229 = vmatprep.subr.bf16.mxu0 0
        %2230 = vmatpush1.bf16.msra.mxu0 0
        %2231 = vmatprep.subr.bf16.mxu0 0
        %2232 = vmatpush1.bf16.msra.mxu0 0
        %2233 = vmatprep.subr.bf16.mxu0 0
        %2234 = vmatpush1.bf16.msra.mxu0 0
        %2235 = vmatprep.subr.bf16.mxu0 0
        %2236 = vmatpush1.bf16.msra.mxu0 0
        %2237 = vmatprep.subr.bf16.mxu0 0
        %2238 = vmatpush1.bf16.msra.mxu0 0
        %2239 = vmatprep.subr.bf16.mxu0 0
        %2240 = vmatpush1.bf16.msra.mxu0 0
        %2241 = vmatprep.subr.bf16.mxu0 0
        %2242 = vmatpush1.bf16.msra.mxu0 0
        %2243 = vmatprep.subr.bf16.mxu0 0
        %2244 = vmatpush1.bf16.msra.mxu0 0
        %2245 = vmatprep.subr.bf16.mxu0 0
        %2246 = vmatpush1.bf16.msra.mxu0 0
        %2247 = vmatprep.subr.bf16.mxu0 0
        %2248 = vmatpush1.bf16.msra.mxu0 0
        %2249 = vmatprep.subr.bf16.mxu0 0
        %2250 = vmatpush1.bf16.msra.mxu0 0
        %2251 = vmatprep.mubr.bf16.mxu0 0
        %2252 = vmatmul.mubr.bf16.gmra.mrb[0].mxu0 %v2214
        %v2253 = vpop.f32.mrb[0].mxu0
        %v2254 = vadd.f32 0.0, %v2253
        %v2255 = vpop.f32.mrb[0].mxu0
        %v2256 = vpop.f32.mrb[0].mxu0
        %v2257 = vpop.f32.mrb[0].mxu0
        %2258 = vdwg.mxu0
        %2259 = vrot.lane.b32.xlu0 %v1917, 64
        %v2260 = vpop.permute.xlu0 %2259
        %v2262 = vsel %vm1322, %v2161, 0
        %v2265 = vsel %vm1569, %v2260, 0
        %2267 = vmatprep.subr.bf16.mxu0 0
        %2268 = vmatpush1.bf16.msra.mxu0 %v2265
        %2269 = vmatprep.subr.bf16.mxu0 0
        %2270 = vmatpush1.bf16.msra.mxu0 0
        %2271 = vmatprep.subr.bf16.mxu0 0
        %2272 = vmatpush1.bf16.msra.mxu0 0
        %2273 = vmatprep.subr.bf16.mxu0 0
        %2274 = vmatpush1.bf16.msra.mxu0 0
        %2275 = vmatprep.subr.bf16.mxu0 0
        %2276 = vmatpush1.bf16.msra.mxu0 0
        %2277 = vmatprep.subr.bf16.mxu0 0
        %2278 = vmatpush1.bf16.msra.mxu0 0
        %2279 = vmatprep.subr.bf16.mxu0 0
        %2280 = vmatpush1.bf16.msra.mxu0 0
        %2281 = vmatprep.subr.bf16.mxu0 0
        %2282 = vmatpush1.bf16.msra.mxu0 0
        %2283 = vmatprep.subr.bf16.mxu0 0
        %2284 = vmatpush1.bf16.msra.mxu0 0
        %2285 = vmatprep.subr.bf16.mxu0 0
        %2286 = vmatpush1.bf16.msra.mxu0 0
        %2287 = vmatprep.subr.bf16.mxu0 0
        %2288 = vmatpush1.bf16.msra.mxu0 0
        %2289 = vmatprep.subr.bf16.mxu0 0
        %2290 = vmatpush1.bf16.msra.mxu0 0
        %2291 = vmatprep.subr.bf16.mxu0 0
        %2292 = vmatpush1.bf16.msra.mxu0 0
        %2293 = vmatprep.subr.bf16.mxu0 0
        %2294 = vmatpush1.bf16.msra.mxu0 0
        %2295 = vmatprep.subr.bf16.mxu0 0
        %2296 = vmatpush1.bf16.msra.mxu0 0
        %2297 = vmatprep.subr.bf16.mxu0 0
        %2298 = vmatpush1.bf16.msra.mxu0 0
        %2299 = vmatprep.mubr.bf16.mxu0 0
        %2300 = vmatmul.mubr.bf16.gmra.mrb[0].mxu0 %v2262
        %v2301 = vpop.f32.mrb[0].mxu0
        %v2302 = vadd.f32 0.0, %v2301
        %v2303 = vpop.f32.mrb[0].mxu0
        %v2304 = vpop.f32.mrb[0].mxu0
        %v2305 = vpop.f32.mrb[0].mxu0
        %2306 = vdwg.mxu0
        %2307 = vrot.lane.b32.xlu0 %v1918, 64
        %v2308 = vpop.permute.xlu0 %2307
        %v2310 = vsel %vm1322, %v2162, 0
        %v2313 = vsel %vm1569, %v2308, 0
        %2315 = vmatprep.subr.bf16.mxu0 0
        %2316 = vmatpush1.bf16.msra.mxu0 %v2313
        %2317 = vmatprep.subr.bf16.mxu0 0
        %2318 = vmatpush1.bf16.msra.mxu0 0
        %2319 = vmatprep.subr.bf16.mxu0 0
        %2320 = vmatpush1.bf16.msra.mxu0 0
        %2321 = vmatprep.subr.bf16.mxu0 0
        %2322 = vmatpush1.bf16.msra.mxu0 0
        %2323 = vmatprep.subr.bf16.mxu0 0
        %2324 = vmatpush1.bf16.msra.mxu0 0
        %2325 = vmatprep.subr.bf16.mxu0 0
        %2326 = vmatpush1.bf16.msra.mxu0 0
        %2327 = vmatprep.subr.bf16.mxu0 0
        %2328 = vmatpush1.bf16.msra.mxu0 0
        %2329 = vmatprep.subr.bf16.mxu0 0
        %2330 = vmatpush1.bf16.msra.mxu0 0
        %2331 = vmatprep.subr.bf16.mxu0 0
        %2332 = vmatpush1.bf16.msra.mxu0 0
        %2333 = vmatprep.subr.bf16.mxu0 0
        %2334 = vmatpush1.bf16.msra.mxu0 0
        %2335 = vmatprep.subr.bf16.mxu0 0
        %2336 = vmatpush1.bf16.msra.mxu0 0
        %2337 = vmatprep.subr.bf16.mxu0 0
        %2338 = vmatpush1.bf16.msra.mxu0 0
        %2339 = vmatprep.subr.bf16.mxu0 0
        %2340 = vmatpush1.bf16.msra.mxu0 0
        %2341 = vmatprep.subr.bf16.mxu0 0
        %2342 = vmatpush1.bf16.msra.mxu0 0
        %2343 = vmatprep.subr.bf16.mxu0 0
        %2344 = vmatpush1.bf16.msra.mxu0 0
        %2345 = vmatprep.subr.bf16.mxu0 0
        %2346 = vmatpush1.bf16.msra.mxu0 0
        %2347 = vmatprep.mubr.bf16.mxu0 0
        %2348 = vmatmul.mubr.bf16.gmra.mrb[0].mxu0 %v2310
        %v2349 = vpop.f32.mrb[0].mxu0
        %v2350 = vadd.f32 0.0, %v2349
        %v2351 = vpop.f32.mrb[0].mxu0
        %v2352 = vpop.f32.mrb[0].mxu0
        %v2353 = vpop.f32.mrb[0].mxu0
        %2354 = vdwg.mxu0
        %2356 = vrot.lane.b32.xlu0 %v2254, 8
        %v2357 = vpop.permute.xlu0 %2356
        %2360 = vrot.lane.b32.xlu0 %v2302, 16
        %v2361 = vpop.permute.xlu0 %2360
        %2364 = vrot.lane.b32.xlu0 %v2350, 24
        %v2365 = vpop.permute.xlu0 %2364
        %v2367 = vsel %vm1322, %v2206, %v2357
        %v2368 = vsel %vm1770, %v2367, %v2361
        %v2369 = vsel %vm1772, %v2368, %v2365
        %v2370 = vpack.c.bf16 %v2369, %v2369
        %v2372 = vsel %vm1246, %v2370, 0
        %2374 = vmatprep.subr.bf16.mxu0 0
        %2375 = vmatpush1.bf16.msra.mxu0 %v1794
        %2376 = vmatprep.subr.bf16.mxu0 0
        %2377 = vmatpush1.bf16.msra.mxu0 %v1795
        %2378 = vmatprep.subr.bf16.mxu0 0
        %2379 = vmatpush1.bf16.msra.mxu0 0
        %2380 = vmatprep.subr.bf16.mxu0 0
        %2381 = vmatpush1.bf16.msra.mxu0 0
        %2382 = vmatprep.subr.bf16.mxu0 0
        %2383 = vmatpush1.bf16.msra.mxu0 0
        %2384 = vmatprep.subr.bf16.mxu0 0
        %2385 = vmatpush1.bf16.msra.mxu0 0
        %2386 = vmatprep.subr.bf16.mxu0 0
        %2387 = vmatpush1.bf16.msra.mxu0 0
        %2388 = vmatprep.subr.bf16.mxu0 0
        %2389 = vmatpush1.bf16.msra.mxu0 0
        %2390 = vmatprep.subr.bf16.mxu0 0
        %2391 = vmatpush1.bf16.msra.mxu0 0
        %2392 = vmatprep.subr.bf16.mxu0 0
        %2393 = vmatpush1.bf16.msra.mxu0 0
        %2394 = vmatprep.subr.bf16.mxu0 0
        %2395 = vmatpush1.bf16.msra.mxu0 0
        %2396 = vmatprep.subr.bf16.mxu0 0
        %2397 = vmatpush1.bf16.msra.mxu0 0
        %2398 = vmatprep.subr.bf16.mxu0 0
        %2399 = vmatpush1.bf16.msra.mxu0 0
        %2400 = vmatprep.subr.bf16.mxu0 0
        %2401 = vmatpush1.bf16.msra.mxu0 0
        %2402 = vmatprep.subr.bf16.mxu0 0
        %2403 = vmatpush1.bf16.msra.mxu0 0
        %2404 = vmatprep.subr.bf16.mxu0 0
        %2405 = vmatpush1.bf16.msra.mxu0 0
        %2406 = vmatprep.mubr.bf16.mxu0 0
        %2407 = vmatmul.mubr.bf16.gmra.mrb[0].mxu0 %v2372
        %v2408 = vpop.f32.mrb[0].mxu0
        %v2409 = vadd.f32 %v1784, %v2408
        %v2410 = vpop.f32.mrb[0].mxu0
        %v2411 = vpop.f32.mrb[0].mxu0
        %v2412 = vpop.f32.mrb[0].mxu0
        %2413 = vdwg.mxu0
        %v2414 = vadd.f32 %v1221, %v2409
        %v2415 = vsel %vm1246, %v2414, 0.0
        %2416 = vadd.xlane.f32.xlu0 %v2415
        %v2417 = vpop.xlane.xlu0 %2416
        %v2418 = vrcp.pop 32.0
        %v2419 = vmul.f32 %v2417, %v2418
        %v2420 = vsub.f32 %v2414, %v2419
        %v2421 = vmul.f32 %v2420, %v2420
        %v2422 = vsel %vm1246, %v2421, 0.0
        %2423 = vadd.xlane.f32.xlu0 %v2422
        %v2424 = vpop.xlane.xlu0 %2423
        %v2425 = vmul.f32 %v2424, %v2418
        %v2426 = vadd.f32 %v2425, 1e-05
        %v2427 = vrsqrt.pop %v2426
        %v2428 = vmul.f32 %v2420, %v2427
        %v2429 = vld [vmem:[#allocation27] sm:$0x1]
        %v2431 = vlaneseq
        %v2432 = vshrl.u32 %v2431, 7
        %v2433 = vsub.s32 0, %v2432
        %v2434 = vrot.slane %v2429, %v2433
        %v2436 = vmul.f32 %v2428, %v2434
        %v2437 = vld [vmem:[#allocation28] sm:$0x1]
        %v2439 = vlaneseq
        %v2440 = vshrl.u32 %v2439, 7
        %v2441 = vsub.s32 0, %v2440
        %v2442 = vrot.slane %v2437, %v2441
        %v2444 = vadd.f32 %v2436, %v2442
        %v2445 = vpack.c.bf16 %v2444, %v2444
        %v2446 = vld [vmem:[#allocation18] sm:$0xf]
        %v2447 = vld [vmem:[#allocation18 + $0x4] sm:$0xf]
        %v2448 = vld [vmem:[#allocation18 + $0x8] sm:$0xf]
        %v2449 = vld [vmem:[#allocation18 + $0xc] sm:$0xf]
        %v2450 = vld [vmem:[#allocation19] sm:$0x1]
        %v2452 = vlaneseq
        %v2453 = vshrl.u32 %v2452, 7
        %v2454 = vsub.s32 0, %v2453
        %v2455 = vrot.slane %v2450, %v2454
        %v2461 = vunpack.c.l.b16 %v2446
        %v2462 = vunpack.c.l.b16 %v2447
        %v2463 = vunpack.c.l.b16 %v2448
        %v2464 = vunpack.c.l.b16 %v2449
        %v2465 = vpack.c.b16 %v2462, %v2461
        %v2466 = vpack.c.b16 %v2464, %v2463
        %v2470 = vsel %vm1246, %v2445, 0
        %2472 = vmatprep.subr.bf16.mxu0 0
        %2473 = vmatpush1.bf16.msra.mxu0 %v2465
        %2474 = vmatprep.subr.bf16.mxu0 0
        %2475 = vmatpush1.bf16.msra.mxu0 %v2466
        %2476 = vmatprep.subr.bf16.mxu0 0
        %2477 = vmatpush1.bf16.msra.mxu0 0
        %2478 = vmatprep.subr.bf16.mxu0 0
        %2479 = vmatpush1.bf16.msra.mxu0 0
        %2480 = vmatprep.subr.bf16.mxu0 0
        %2481 = vmatpush1.bf16.msra.mxu0 0
        %2482 = vmatprep.subr.bf16.mxu0 0
        %2483 = vmatpush1.bf16.msra.mxu0 0
        %2484 = vmatprep.subr.bf16.mxu0 0
        %2485 = vmatpush1.bf16.msra.mxu0 0
        %2486 = vmatprep.subr.bf16.mxu0 0
        %2487 = vmatpush1.bf16.msra.mxu0 0
        %2488 = vmatprep.subr.bf16.mxu0 0
        %2489 = vmatpush1.bf16.msra.mxu0 0
        %2490 = vmatprep.subr.bf16.mxu0 0
        %2491 = vmatpush1.bf16.msra.mxu0 0
        %2492 = vmatprep.subr.bf16.mxu0 0
        %2493 = vmatpush1.bf16.msra.mxu0 0
        %2494 = vmatprep.subr.bf16.mxu0 0
        %2495 = vmatpush1.bf16.msra.mxu0 0
        %2496 = vmatprep.subr.bf16.mxu0 0
        %2497 = vmatpush1.bf16.msra.mxu0 0
        %2498 = vmatprep.subr.bf16.mxu0 0
        %2499 = vmatpush1.bf16.msra.mxu0 0
        %2500 = vmatprep.subr.bf16.mxu0 0
        %2501 = vmatpush1.bf16.msra.mxu0 0
        %2502 = vmatprep.subr.bf16.mxu0 0
        %2503 = vmatpush1.bf16.msra.mxu0 0
        %2504 = vmatprep.mubr.bf16.mxu0 0
        %2505 = vmatmul.mubr.bf16.gmra.mrb[0].mxu0 %v2470
        %v2506 = vpop.f32.mrb[0].mxu0
        %v2507 = vadd.f32 %v2455, %v2506
        %v2508 = vpop.f32.mrb[0].mxu0
        %v2509 = vpop.f32.mrb[0].mxu0
        %v2510 = vpop.f32.mrb[0].mxu0
        %2511 = vdwg.mxu0
        %v2512 = vld [vmem:[#allocation3] sm:$0xff]
        %v2513 = vld [vmem:[#allocation3 + $0x8] sm:$0xff]
        %v2514 = vld [vmem:[%s980] sm:$0x3]
        %v2515 = vunpack.c.0.s8 %v2514
        %v2516 = vcvt.s32.f32 %v2515
        %vm2517 = vcmp.gt.f32.partialorder %v2516, 0.0
        %v2518 = vsel %vm2517, 0.0, -1e+09
        %v2519 = vmul.f32 %v2507, 0.35355338
        %2521 = vrot.lane.b32.xlu0 %v2519, 120
        %v2522 = vpop.permute.xlu0 %2521
        %2524 = vrot.lane.b32.xlu0 %v2519, 112
        %v2525 = vpop.permute.xlu0 %2524
        %2527 = vrot.lane.b32.xlu0 %v2519, 104
        %v2528 = vpop.permute.xlu0 %2527
        %v2530 = vpack.c.bf16 %v2519, %v2519
        %v2531 = vpack.c.bf16 %v2522, %v2522
        %v2532 = vpack.c.bf16 %v2525, %v2525
        %v2533 = vpack.c.bf16 %v2528, %v2528
        %2536 = vrot.lane.b32.xlu0 %v2512, 120
        %v2537 = vpop.permute.xlu0 %2536
        %2538 = vrot.lane.b32.xlu0 %v2513, 120
        %v2539 = vpop.permute.xlu0 %2538
        %2542 = vrot.lane.b32.xlu0 %v2512, 112
        %v2543 = vpop.permute.xlu0 %2542
        %2544 = vrot.lane.b32.xlu0 %v2513, 112
        %v2545 = vpop.permute.xlu0 %2544
        %2548 = vrot.lane.b32.xlu0 %v2512, 104
        %v2549 = vpop.permute.xlu0 %2548
        %2550 = vrot.lane.b32.xlu0 %v2513, 104
        %v2551 = vpop.permute.xlu0 %2550
        %v2554 = vpack.c.bf16 %v2513, %v2512
        %v2555 = vpack.c.bf16 %v2539, %v2537
        %v2556 = vpack.c.bf16 %v2545, %v2543
        %v2557 = vpack.c.bf16 %v2551, %v2549
        %v2559 = vsel %vm1322, %v2530, 0
        %v2562 = vsel %vm1322, %v2554, 0
        %2564 = vmatprep.subr.bf16.mxu0 0
        %2565 = vmatpush1.bf16.xpose.msra.mxu0 %v2562
        %2566 = vmatprep.subr.bf16.mxu0 0
        %2567 = vmatpush1.bf16.xpose.msra.mxu0 0
        %2568 = vmatprep.subr.bf16.mxu0 0
        %2569 = vmatpush1.bf16.xpose.msra.mxu0 0
        %2570 = vmatprep.subr.bf16.mxu0 0
        %2571 = vmatpush1.bf16.xpose.msra.mxu0 0
        %2572 = vmatprep.subr.bf16.mxu0 0
        %2573 = vmatpush1.bf16.xpose.msra.mxu0 0
        %2574 = vmatprep.subr.bf16.mxu0 0
        %2575 = vmatpush1.bf16.xpose.msra.mxu0 0
        %2576 = vmatprep.subr.bf16.mxu0 0
        %2577 = vmatpush1.bf16.xpose.msra.mxu0 0
        %2578 = vmatprep.subr.bf16.mxu0 0
        %2579 = vmatpush1.bf16.xpose.msra.mxu0 0
        %2580 = vmatprep.subr.bf16.mxu0 0
        %2581 = vmatpush1.bf16.xpose.msra.mxu0 0
        %2582 = vmatprep.subr.bf16.mxu0 0
        %2583 = vmatpush1.bf16.xpose.msra.mxu0 0
        %2584 = vmatprep.subr.bf16.mxu0 0
        %2585 = vmatpush1.bf16.xpose.msra.mxu0 0
        %2586 = vmatprep.subr.bf16.mxu0 0
        %2587 = vmatpush1.bf16.xpose.msra.mxu0 0
        %2588 = vmatprep.subr.bf16.mxu0 0
        %2589 = vmatpush1.bf16.xpose.msra.mxu0 0
        %2590 = vmatprep.subr.bf16.mxu0 0
        %2591 = vmatpush1.bf16.xpose.msra.mxu0 0
        %2592 = vmatprep.subr.bf16.mxu0 0
        %2593 = vmatpush1.bf16.xpose.msra.mxu0 0
        %2594 = vmatprep.subr.bf16.mxu0 0
        %2595 = vmatpush1.bf16.xpose.msra.mxu0 0
        %2596 = vmatprep.mubr.bf16.mxu0 0
        %2597 = vmatmul.mubr.bf16.gmra.mrb[0].mxu0 %v2559
        %v2598 = vpop.f32.mrb[0].mxu0
        %v2599 = vadd.f32 %v2518, %v2598
        %v2600 = vpop.f32.mrb[0].mxu0
        %v2601 = vpop.f32.mrb[0].mxu0
        %v2602 = vpop.f32.mrb[0].mxu0
        %2603 = vdwg.mxu0
        %v2605 = vsel %vm1322, %v2531, 0
        %v2608 = vsel %vm1322, %v2555, 0
        %2610 = vmatprep.subr.bf16.mxu0 0
        %2611 = vmatpush1.bf16.xpose.msra.mxu0 %v2608
        %2612 = vmatprep.subr.bf16.mxu0 0
        %2613 = vmatpush1.bf16.xpose.msra.mxu0 0
        %2614 = vmatprep.subr.bf16.mxu0 0
        %2615 = vmatpush1.bf16.xpose.msra.mxu0 0
        %2616 = vmatprep.subr.bf16.mxu0 0
        %2617 = vmatpush1.bf16.xpose.msra.mxu0 0
        %2618 = vmatprep.subr.bf16.mxu0 0
        %2619 = vmatpush1.bf16.xpose.msra.mxu0 0
        %2620 = vmatprep.subr.bf16.mxu0 0
        %2621 = vmatpush1.bf16.xpose.msra.mxu0 0
        %2622 = vmatprep.subr.bf16.mxu0 0
        %2623 = vmatpush1.bf16.xpose.msra.mxu0 0
        %2624 = vmatprep.subr.bf16.mxu0 0
        %2625 = vmatpush1.bf16.xpose.msra.mxu0 0
        %2626 = vmatprep.subr.bf16.mxu0 0
        %2627 = vmatpush1.bf16.xpose.msra.mxu0 0
        %2628 = vmatprep.subr.bf16.mxu0 0
        %2629 = vmatpush1.bf16.xpose.msra.mxu0 0
        %2630 = vmatprep.subr.bf16.mxu0 0
        %2631 = vmatpush1.bf16.xpose.msra.mxu0 0
        %2632 = vmatprep.subr.bf16.mxu0 0
        %2633 = vmatpush1.bf16.xpose.msra.mxu0 0
        %2634 = vmatprep.subr.bf16.mxu0 0
        %2635 = vmatpush1.bf16.xpose.msra.mxu0 0
        %2636 = vmatprep.subr.bf16.mxu0 0
        %2637 = vmatpush1.bf16.xpose.msra.mxu0 0
        %2638 = vmatprep.subr.bf16.mxu0 0
        %2639 = vmatpush1.bf16.xpose.msra.mxu0 0
        %2640 = vmatprep.subr.bf16.mxu0 0
        %2641 = vmatpush1.bf16.xpose.msra.mxu0 0
        %2642 = vmatprep.mubr.bf16.mxu0 0
        %2643 = vmatmul.mubr.bf16.gmra.mrb[0].mxu0 %v2605
        %v2644 = vpop.f32.mrb[0].mxu0
        %v2645 = vadd.f32 %v2518, %v2644
        %v2646 = vpop.f32.mrb[0].mxu0
        %v2647 = vpop.f32.mrb[0].mxu0
        %v2648 = vpop.f32.mrb[0].mxu0
        %2649 = vdwg.mxu0
        %v2651 = vsel %vm1322, %v2532, 0
        %v2654 = vsel %vm1322, %v2556, 0
        %2656 = vmatprep.subr.bf16.mxu0 0
        %2657 = vmatpush1.bf16.xpose.msra.mxu0 %v2654
        %2658 = vmatprep.subr.bf16.mxu0 0
        %2659 = vmatpush1.bf16.xpose.msra.mxu0 0
        %2660 = vmatprep.subr.bf16.mxu0 0
        %2661 = vmatpush1.bf16.xpose.msra.mxu0 0
        %2662 = vmatprep.subr.bf16.mxu0 0
        %2663 = vmatpush1.bf16.xpose.msra.mxu0 0
        %2664 = vmatprep.subr.bf16.mxu0 0
        %2665 = vmatpush1.bf16.xpose.msra.mxu0 0
        %2666 = vmatprep.subr.bf16.mxu0 0
        %2667 = vmatpush1.bf16.xpose.msra.mxu0 0
        %2668 = vmatprep.subr.bf16.mxu0 0
        %2669 = vmatpush1.bf16.xpose.msra.mxu0 0
        %2670 = vmatprep.subr.bf16.mxu0 0
        %2671 = vmatpush1.bf16.xpose.msra.mxu0 0
        %2672 = vmatprep.subr.bf16.mxu0 0
        %2673 = vmatpush1.bf16.xpose.msra.mxu0 0
        %2674 = vmatprep.subr.bf16.mxu0 0
        %2675 = vmatpush1.bf16.xpose.msra.mxu0 0
        %2676 = vmatprep.subr.bf16.mxu0 0
        %2677 = vmatpush1.bf16.xpose.msra.mxu0 0
        %2678 = vmatprep.subr.bf16.mxu0 0
        %2679 = vmatpush1.bf16.xpose.msra.mxu0 0
        %2680 = vmatprep.subr.bf16.mxu0 0
        %2681 = vmatpush1.bf16.xpose.msra.mxu0 0
        %2682 = vmatprep.subr.bf16.mxu0 0
        %2683 = vmatpush1.bf16.xpose.msra.mxu0 0
        %2684 = vmatprep.subr.bf16.mxu0 0
        %2685 = vmatpush1.bf16.xpose.msra.mxu0 0
        %2686 = vmatprep.subr.bf16.mxu0 0
        %2687 = vmatpush1.bf16.xpose.msra.mxu0 0
        %2688 = vmatprep.mubr.bf16.mxu0 0
        %2689 = vmatmul.mubr.bf16.gmra.mrb[0].mxu0 %v2651
        %v2690 = vpop.f32.mrb[0].mxu0
        %v2691 = vadd.f32 %v2518, %v2690
        %v2692 = vpop.f32.mrb[0].mxu0
        %v2693 = vpop.f32.mrb[0].mxu0
        %v2694 = vpop.f32.mrb[0].mxu0
        %2695 = vdwg.mxu0
        %v2697 = vsel %vm1322, %v2533, 0
        %v2700 = vsel %vm1322, %v2557, 0
        %2702 = vmatprep.subr.bf16.mxu0 0
        %2703 = vmatpush1.bf16.xpose.msra.mxu0 %v2700
        %2704 = vmatprep.subr.bf16.mxu0 0
        %2705 = vmatpush1.bf16.xpose.msra.mxu0 0
        %2706 = vmatprep.subr.bf16.mxu0 0
        %2707 = vmatpush1.bf16.xpose.msra.mxu0 0
        %2708 = vmatprep.subr.bf16.mxu0 0
        %2709 = vmatpush1.bf16.xpose.msra.mxu0 0
        %2710 = vmatprep.subr.bf16.mxu0 0
        %2711 = vmatpush1.bf16.xpose.msra.mxu0 0
        %2712 = vmatprep.subr.bf16.mxu0 0
        %2713 = vmatpush1.bf16.xpose.msra.mxu0 0
        %2714 = vmatprep.subr.bf16.mxu0 0
        %2715 = vmatpush1.bf16.xpose.msra.mxu0 0
        %2716 = vmatprep.subr.bf16.mxu0 0
        %2717 = vmatpush1.bf16.xpose.msra.mxu0 0
        %2718 = vmatprep.subr.bf16.mxu0 0
        %2719 = vmatpush1.bf16.xpose.msra.mxu0 0
        %2720 = vmatprep.subr.bf16.mxu0 0
        %2721 = vmatpush1.bf16.xpose.msra.mxu0 0
        %2722 = vmatprep.subr.bf16.mxu0 0
        %2723 = vmatpush1.bf16.xpose.msra.mxu0 0
        %2724 = vmatprep.subr.bf16.mxu0 0
        %2725 = vmatpush1.bf16.xpose.msra.mxu0 0
        %2726 = vmatprep.subr.bf16.mxu0 0
        %2727 = vmatpush1.bf16.xpose.msra.mxu0 0
        %2728 = vmatprep.subr.bf16.mxu0 0
        %2729 = vmatpush1.bf16.xpose.msra.mxu0 0
        %2730 = vmatprep.subr.bf16.mxu0 0
        %2731 = vmatpush1.bf16.xpose.msra.mxu0 0
        %2732 = vmatprep.subr.bf16.mxu0 0
        %2733 = vmatpush1.bf16.xpose.msra.mxu0 0
        %2734 = vmatprep.mubr.bf16.mxu0 0
        %2735 = vmatmul.mubr.bf16.gmra.mrb[0].mxu0 %v2697
        %v2736 = vpop.f32.mrb[0].mxu0
        %v2737 = vadd.f32 %v2518, %v2736
        %v2738 = vpop.f32.mrb[0].mxu0
        %v2739 = vpop.f32.mrb[0].mxu0
        %v2740 = vpop.f32.mrb[0].mxu0
        %2741 = vdwg.mxu0
        %v2742 = vsel %vm1770, %v2599, -inf
        %2743 = vmax.xlane.f32.xlu0 %v2742
        %v2744 = vpop.xlane.xlu0 %2743
        %v2745 = vsel %vm1770, %v2645, -inf
        %2746 = vmax.xlane.f32.xlu0 %v2745
        %v2747 = vpop.xlane.xlu0 %2746
        %v2748 = vsel %vm1770, %v2691, -inf
        %2749 = vmax.xlane.f32.xlu0 %v2748
        %v2750 = vpop.xlane.xlu0 %2749
        %v2751 = vsel %vm1770, %v2737, -inf
        %2752 = vmax.xlane.f32.xlu0 %v2751
        %v2753 = vpop.xlane.xlu0 %2752
        %v2754 = vsub.f32 %v2599, %v2744
        %v2755 = vsub.f32 %v2645, %v2747
        %v2756 = vsub.f32 %v2691, %v2750
        %v2757 = vsub.f32 %v2737, %v2753
        %v2758 = vmul.f32 %v2754, 1.442695
        %v2759 = vpow.pop %v2758
        %v2760 = vmul.f32 %v2755, 1.442695
        %v2761 = vpow.pop %v2760
        %v2762 = vmul.f32 %v2756, 1.442695
        %v2763 = vpow.pop %v2762
        %v2764 = vmul.f32 %v2757, 1.442695
        %v2765 = vpow.pop %v2764
        %v2766 = vsel %vm1770, %v2759, 0.0
        %2767 = vadd.xlane.f32.xlu0 %v2766
        %v2768 = vpop.xlane.xlu0 %2767
        %v2769 = vsel %vm1770, %v2761, 0.0
        %2770 = vadd.xlane.f32.xlu0 %v2769
        %v2771 = vpop.xlane.xlu0 %2770
        %v2772 = vsel %vm1770, %v2763, 0.0
        %2773 = vadd.xlane.f32.xlu0 %v2772
        %v2774 = vpop.xlane.xlu0 %2773
        %v2775 = vsel %vm1770, %v2765, 0.0
        %2776 = vadd.xlane.f32.xlu0 %v2775
        %v2777 = vpop.xlane.xlu0 %2776
        %v2778 = vrcp.pop %v2768
        %v2779 = vrcp.pop %v2771
        %v2780 = vrcp.pop %v2774
        %v2781 = vrcp.pop %v2777
        %v2782 = vmul.f32 %v2759, %v2778
        %v2783 = vmul.f32 %v2761, %v2779
        %v2784 = vmul.f32 %v2763, %v2780
        %v2785 = vmul.f32 %v2765, %v2781
        %v2786 = vpack.c.bf16 %v2782, %v2782
        %v2787 = vpack.c.bf16 %v2783, %v2783
        %v2788 = vpack.c.bf16 %v2784, %v2784
        %v2789 = vpack.c.bf16 %v2785, %v2785
        %2791 = vrot.lane.b32.xlu0 %v2554, 96
        %v2792 = vpop.permute.xlu0 %2791
        %v2795 = vsel %vm1770, %v2786, 0
        %2797 = vmatprep.subr.bf16.mxu0 0
        %2798 = vmatpush1.bf16.msra.mxu0 %v2792
        %2799 = vmatprep.subr.bf16.mxu0 0
        %2800 = vmatpush1.bf16.msra.mxu0 0
        %2801 = vmatprep.subr.bf16.mxu0 0
        %2802 = vmatpush1.bf16.msra.mxu0 0
        %2803 = vmatprep.subr.bf16.mxu0 0
        %2804 = vmatpush1.bf16.msra.mxu0 0
        %2805 = vmatprep.subr.bf16.mxu0 0
        %2806 = vmatpush1.bf16.msra.mxu0 0
        %2807 = vmatprep.subr.bf16.mxu0 0
        %2808 = vmatpush1.bf16.msra.mxu0 0
        %2809 = vmatprep.subr.bf16.mxu0 0
        %2810 = vmatpush1.bf16.msra.mxu0 0
        %2811 = vmatprep.subr.bf16.mxu0 0
        %2812 = vmatpush1.bf16.msra.mxu0 0
        %2813 = vmatprep.subr.bf16.mxu0 0
        %2814 = vmatpush1.bf16.msra.mxu0 0
        %2815 = vmatprep.subr.bf16.mxu0 0
        %2816 = vmatpush1.bf16.msra.mxu0 0
        %2817 = vmatprep.subr.bf16.mxu0 0
        %2818 = vmatpush1.bf16.msra.mxu0 0
        %2819 = vmatprep.subr.bf16.mxu0 0
        %2820 = vmatpush1.bf16.msra.mxu0 0
        %2821 = vmatprep.subr.bf16.mxu0 0
        %2822 = vmatpush1.bf16.msra.mxu0 0
        %2823 = vmatprep.subr.bf16.mxu0 0
        %2824 = vmatpush1.bf16.msra.mxu0 0
        %2825 = vmatprep.subr.bf16.mxu0 0
        %2826 = vmatpush1.bf16.msra.mxu0 0
        %2827 = vmatprep.subr.bf16.mxu0 0
        %2828 = vmatpush1.bf16.msra.mxu0 0
        %2829 = vmatprep.mubr.bf16.mxu0 0
        %2830 = vmatmul.mubr.bf16.gmra.mrb[0].mxu0 %v2795
        %v2831 = vpop.f32.mrb[0].mxu0
        %v2832 = vadd.f32 0.0, %v2831
        %v2833 = vpop.f32.mrb[0].mxu0
        %v2834 = vpop.f32.mrb[0].mxu0
        %v2835 = vpop.f32.mrb[0].mxu0
        %2836 = vdwg.mxu0
        %2838 = vrot.lane.b32.xlu0 %v2555, 96
        %v2839 = vpop.permute.xlu0 %2838
        %v2842 = vsel %vm1770, %v2787, 0
        %2844 = vmatprep.subr.bf16.mxu0 0
        %2845 = vmatpush1.bf16.msra.mxu0 %v2839
        %2846 = vmatprep.subr.bf16.mxu0 0
        %2847 = vmatpush1.bf16.msra.mxu0 0
        %2848 = vmatprep.subr.bf16.mxu0 0
        %2849 = vmatpush1.bf16.msra.mxu0 0
        %2850 = vmatprep.subr.bf16.mxu0 0
        %2851 = vmatpush1.bf16.msra.mxu0 0
        %2852 = vmatprep.subr.bf16.mxu0 0
        %2853 = vmatpush1.bf16.msra.mxu0 0
        %2854 = vmatprep.subr.bf16.mxu0 0
        %2855 = vmatpush1.bf16.msra.mxu0 0
        %2856 = vmatprep.subr.bf16.mxu0 0
        %2857 = vmatpush1.bf16.msra.mxu0 0
        %2858 = vmatprep.subr.bf16.mxu0 0
        %2859 = vmatpush1.bf16.msra.mxu0 0
        %2860 = vmatprep.subr.bf16.mxu0 0
        %2861 = vmatpush1.bf16.msra.mxu0 0
        %2862 = vmatprep.subr.bf16.mxu0 0
        %2863 = vmatpush1.bf16.msra.mxu0 0
        %2864 = vmatprep.subr.bf16.mxu0 0
        %2865 = vmatpush1.bf16.msra.mxu0 0
        %2866 = vmatprep.subr.bf16.mxu0 0
        %2867 = vmatpush1.bf16.msra.mxu0 0
        %2868 = vmatprep.subr.bf16.mxu0 0
        %2869 = vmatpush1.bf16.msra.mxu0 0
        %2870 = vmatprep.subr.bf16.mxu0 0
        %2871 = vmatpush1.bf16.msra.mxu0 0
        %2872 = vmatprep.subr.bf16.mxu0 0
        %2873 = vmatpush1.bf16.msra.mxu0 0
        %2874 = vmatprep.subr.bf16.mxu0 0
        %2875 = vmatpush1.bf16.msra.mxu0 0
        %2876 = vmatprep.mubr.bf16.mxu0 0
        %2877 = vmatmul.mubr.bf16.gmra.mrb[0].mxu0 %v2842
        %v2878 = vpop.f32.mrb[0].mxu0
        %v2879 = vadd.f32 0.0, %v2878
        %v2880 = vpop.f32.mrb[0].mxu0
        %v2881 = vpop.f32.mrb[0].mxu0
        %v2882 = vpop.f32.mrb[0].mxu0
        %2883 = vdwg.mxu0
        %2885 = vrot.lane.b32.xlu0 %v2556, 96
        %v2886 = vpop.permute.xlu0 %2885
        %v2889 = vsel %vm1770, %v2788, 0
        %2891 = vmatprep.subr.bf16.mxu0 0
        %2892 = vmatpush1.bf16.msra.mxu0 %v2886
        %2893 = vmatprep.subr.bf16.mxu0 0
        %2894 = vmatpush1.bf16.msra.mxu0 0
        %2895 = vmatprep.subr.bf16.mxu0 0
        %2896 = vmatpush1.bf16.msra.mxu0 0
        %2897 = vmatprep.subr.bf16.mxu0 0
        %2898 = vmatpush1.bf16.msra.mxu0 0
        %2899 = vmatprep.subr.bf16.mxu0 0
        %2900 = vmatpush1.bf16.msra.mxu0 0
        %2901 = vmatprep.subr.bf16.mxu0 0
        %2902 = vmatpush1.bf16.msra.mxu0 0
        %2903 = vmatprep.subr.bf16.mxu0 0
        %2904 = vmatpush1.bf16.msra.mxu0 0
        %2905 = vmatprep.subr.bf16.mxu0 0
        %2906 = vmatpush1.bf16.msra.mxu0 0
        %2907 = vmatprep.subr.bf16.mxu0 0
        %2908 = vmatpush1.bf16.msra.mxu0 0
        %2909 = vmatprep.subr.bf16.mxu0 0
        %2910 = vmatpush1.bf16.msra.mxu0 0
        %2911 = vmatprep.subr.bf16.mxu0 0
        %2912 = vmatpush1.bf16.msra.mxu0 0
        %2913 = vmatprep.subr.bf16.mxu0 0
        %2914 = vmatpush1.bf16.msra.mxu0 0
        %2915 = vmatprep.subr.bf16.mxu0 0
        %2916 = vmatpush1.bf16.msra.mxu0 0
        %2917 = vmatprep.subr.bf16.mxu0 0
        %2918 = vmatpush1.bf16.msra.mxu0 0
        %2919 = vmatprep.subr.bf16.mxu0 0
        %2920 = vmatpush1.bf16.msra.mxu0 0
        %2921 = vmatprep.subr.bf16.mxu0 0
        %2922 = vmatpush1.bf16.msra.mxu0 0
        %2923 = vmatprep.mubr.bf16.mxu0 0
        %2924 = vmatmul.mubr.bf16.gmra.mrb[0].mxu0 %v2889
        %v2925 = vpop.f32.mrb[0].mxu0
        %v2926 = vadd.f32 0.0, %v2925
        %v2927 = vpop.f32.mrb[0].mxu0
        %v2928 = vpop.f32.mrb[0].mxu0
        %v2929 = vpop.f32.mrb[0].mxu0
        %2930 = vdwg.mxu0
        %2932 = vrot.lane.b32.xlu0 %v2557, 96
        %v2933 = vpop.permute.xlu0 %2932
        %v2936 = vsel %vm1770, %v2789, 0
        %2938 = vmatprep.subr.bf16.mxu0 0
        %2939 = vmatpush1.bf16.msra.mxu0 %v2933
        %2940 = vmatprep.subr.bf16.mxu0 0
        %2941 = vmatpush1.bf16.msra.mxu0 0
        %2942 = vmatprep.subr.bf16.mxu0 0
        %2943 = vmatpush1.bf16.msra.mxu0 0
        %2944 = vmatprep.subr.bf16.mxu0 0
        %2945 = vmatpush1.bf16.msra.mxu0 0
        %2946 = vmatprep.subr.bf16.mxu0 0
        %2947 = vmatpush1.bf16.msra.mxu0 0
        %2948 = vmatprep.subr.bf16.mxu0 0
        %2949 = vmatpush1.bf16.msra.mxu0 0
        %2950 = vmatprep.subr.bf16.mxu0 0
        %2951 = vmatpush1.bf16.msra.mxu0 0
        %2952 = vmatprep.subr.bf16.mxu0 0
        %2953 = vmatpush1.bf16.msra.mxu0 0
        %2954 = vmatprep.subr.bf16.mxu0 0
        %2955 = vmatpush1.bf16.msra.mxu0 0
        %2956 = vmatprep.subr.bf16.mxu0 0
        %2957 = vmatpush1.bf16.msra.mxu0 0
        %2958 = vmatprep.subr.bf16.mxu0 0
        %2959 = vmatpush1.bf16.msra.mxu0 0
        %2960 = vmatprep.subr.bf16.mxu0 0
        %2961 = vmatpush1.bf16.msra.mxu0 0
        %2962 = vmatprep.subr.bf16.mxu0 0
        %2963 = vmatpush1.bf16.msra.mxu0 0
        %2964 = vmatprep.subr.bf16.mxu0 0
        %2965 = vmatpush1.bf16.msra.mxu0 0
        %2966 = vmatprep.subr.bf16.mxu0 0
        %2967 = vmatpush1.bf16.msra.mxu0 0
        %2968 = vmatprep.subr.bf16.mxu0 0
        %2969 = vmatpush1.bf16.msra.mxu0 0
        %2970 = vmatprep.mubr.bf16.mxu0 0
        %2971 = vmatmul.mubr.bf16.gmra.mrb[0].mxu0 %v2936
        %v2972 = vpop.f32.mrb[0].mxu0
        %v2973 = vadd.f32 0.0, %v2972
        %v2974 = vpop.f32.mrb[0].mxu0
        %v2975 = vpop.f32.mrb[0].mxu0
        %v2976 = vpop.f32.mrb[0].mxu0
        %2977 = vdwg.mxu0
        %2979 = vrot.lane.b32.xlu0 %v2879, 8
        %v2980 = vpop.permute.xlu0 %2979
        %2983 = vrot.lane.b32.xlu0 %v2926, 16
        %v2984 = vpop.permute.xlu0 %2983
        %2987 = vrot.lane.b32.xlu0 %v2973, 24
        %v2988 = vpop.permute.xlu0 %2987
        %v2990 = vsel %vm1322, %v2832, %v2980
        %v2991 = vsel %vm1770, %v2990, %v2984
        %v2992 = vsel %vm1772, %v2991, %v2988
        %v2993 = vpack.c.bf16 %v2992, %v2992
        %v2994 = vld [vmem:[#allocation24] sm:$0xf]
        %v2995 = vld [vmem:[#allocation24 + $0x4] sm:$0xf]
        %v2996 = vld [vmem:[#allocation24 + $0x8] sm:$0xf]
        %v2997 = vld [vmem:[#allocation24 + $0xc] sm:$0xf]
        %v2998 = vld [vmem:[#allocation25] sm:$0x1]
        %v3000 = vlaneseq
        %v3001 = vshrl.u32 %v3000, 7
        %v3002 = vsub.s32 0, %v3001
        %v3003 = vrot.slane %v2998, %v3002
        %v3009 = vunpack.c.l.b16 %v2994
        %v3010 = vunpack.c.l.b16 %v2995
        %v3011 = vunpack.c.l.b16 %v2996
        %v3012 = vunpack.c.l.b16 %v2997
        %v3013 = vpack.c.b16 %v3010, %v3009
        %v3014 = vpack.c.b16 %v3012, %v3011
        %v3018 = vsel %vm1246, %v2993, 0
        %3020 = vmatprep.subr.bf16.mxu0 0
        %3021 = vmatpush1.bf16.msra.mxu0 %v3013
        %3022 = vmatprep.subr.bf16.mxu0 0
        %3023 = vmatpush1.bf16.msra.mxu0 %v3014
        %3024 = vmatprep.subr.bf16.mxu0 0
        %3025 = vmatpush1.bf16.msra.mxu0 0
        %3026 = vmatprep.subr.bf16.mxu0 0
        %3027 = vmatpush1.bf16.msra.mxu0 0
        %3028 = vmatprep.subr.bf16.mxu0 0
        %3029 = vmatpush1.bf16.msra.mxu0 0
        %3030 = vmatprep.subr.bf16.mxu0 0
        %3031 = vmatpush1.bf16.msra.mxu0 0
        %3032 = vmatprep.subr.bf16.mxu0 0
        %3033 = vmatpush1.bf16.msra.mxu0 0
        %3034 = vmatprep.subr.bf16.mxu0 0
        %3035 = vmatpush1.bf16.msra.mxu0 0
        %3036 = vmatprep.subr.bf16.mxu0 0
        %3037 = vmatpush1.bf16.msra.mxu0 0
        %3038 = vmatprep.subr.bf16.mxu0 0
        %3039 = vmatpush1.bf16.msra.mxu0 0
        %3040 = vmatprep.subr.bf16.mxu0 0
        %3041 = vmatpush1.bf16.msra.mxu0 0
        %3042 = vmatprep.subr.bf16.mxu0 0
        %3043 = vmatpush1.bf16.msra.mxu0 0
        %3044 = vmatprep.subr.bf16.mxu0 0
        %3045 = vmatpush1.bf16.msra.mxu0 0
        %3046 = vmatprep.subr.bf16.mxu0 0
        %3047 = vmatpush1.bf16.msra.mxu0 0
        %3048 = vmatprep.subr.bf16.mxu0 0
        %3049 = vmatpush1.bf16.msra.mxu0 0
        %3050 = vmatprep.subr.bf16.mxu0 0
        %3051 = vmatpush1.bf16.msra.mxu0 0
        %3052 = vmatprep.mubr.bf16.mxu0 0
        %3053 = vmatmul.mubr.bf16.gmra.mrb[0].mxu0 %v3018
        %v3054 = vpop.f32.mrb[0].mxu0
        %v3055 = vadd.f32 %v3003, %v3054
        %v3056 = vpop.f32.mrb[0].mxu0
        %v3057 = vpop.f32.mrb[0].mxu0
        %v3058 = vpop.f32.mrb[0].mxu0
        %3059 = vdwg.mxu0
        %v3060 = vadd.f32 %v2414, %v3055
        %v3061 = vsel %vm1246, %v3060, 0.0
        %3062 = vadd.xlane.f32.xlu0 %v3061
        %v3063 = vpop.xlane.xlu0 %3062
        %v3064 = vmul.f32 %v3063, %v2418
        %v3065 = vsub.f32 %v3060, %v3064
        %v3066 = vmul.f32 %v3065, %v3065
        %v3067 = vsel %vm1246, %v3066, 0.0
        %3068 = vadd.xlane.f32.xlu0 %v3067
        %v3069 = vpop.xlane.xlu0 %3068
        %v3070 = vmul.f32 %v3069, %v2418
        %v3071 = vadd.f32 %v3070, 1e-05
        %v3072 = vrsqrt.pop %v3071
        %v3073 = vmul.f32 %v3065, %v3072
        %v3074 = vld [vmem:[#allocation30] sm:$0x1]
        %v3076 = vlaneseq
        %v3077 = vshrl.u32 %v3076, 7
        %v3078 = vsub.s32 0, %v3077
        %v3079 = vrot.slane %v3074, %v3078
        %v3081 = vmul.f32 %v3073, %v3079
        %v3082 = vld [vmem:[#allocation31] sm:$0x1]
        %v3084 = vlaneseq
        %v3085 = vshrl.u32 %v3084, 7
        %v3086 = vsub.s32 0, %v3085
        %v3087 = vrot.slane %v3082, %v3086
        %v3089 = vadd.f32 %v3081, %v3087
        %v3090 = vpack.c.bf16 %v3089, %v3089
        %v3091 = vld [vmem:[#allocation33] sm:$0xf]
        %v3092 = vld [vmem:[#allocation33 + $0x4] sm:$0xf]
        %v3093 = vld [vmem:[#allocation33 + $0x8] sm:$0xf]
        %v3094 = vld [vmem:[#allocation33 + $0xc] sm:$0xf]
        %v3095 = vld [vmem:[#allocation34] sm:$0x1]
        %v3097 = vlaneseq
        %v3098 = vshrl.u32 %v3097, 7
        %v3099 = vsub.s32 0, %v3098
        %v3100 = vrot.slane %v3095, %v3099
        %v3106 = vunpack.c.l.b16 %v3091
        %v3107 = vunpack.c.l.b16 %v3092
        %v3108 = vunpack.c.l.b16 %v3093
        %v3109 = vunpack.c.l.b16 %v3094
        %v3110 = vpack.c.b16 %v3107, %v3106
        %v3111 = vpack.c.b16 %v3109, %v3108
        %v3115 = vsel %vm1246, %v3090, 0
        %3117 = vmatprep.subr.bf16.mxu0 0
        %3118 = vmatpush1.bf16.msra.mxu0 %v3110
        %3119 = vmatprep.subr.bf16.mxu0 0
        %3120 = vmatpush1.bf16.msra.mxu0 %v3111
        %3121 = vmatprep.subr.bf16.mxu0 0
        %3122 = vmatpush1.bf16.msra.mxu0 0
        %3123 = vmatprep.subr.bf16.mxu0 0
        %3124 = vmatpush1.bf16.msra.mxu0 0
        %3125 = vmatprep.subr.bf16.mxu0 0
        %3126 = vmatpush1.bf16.msra.mxu0 0
        %3127 = vmatprep.subr.bf16.mxu0 0
        %3128 = vmatpush1.bf16.msra.mxu0 0
        %3129 = vmatprep.subr.bf16.mxu0 0
        %3130 = vmatpush1.bf16.msra.mxu0 0
        %3131 = vmatprep.subr.bf16.mxu0 0
        %3132 = vmatpush1.bf16.msra.mxu0 0
        %3133 = vmatprep.subr.bf16.mxu0 0
        %3134 = vmatpush1.bf16.msra.mxu0 0
        %3135 = vmatprep.subr.bf16.mxu0 0
        %3136 = vmatpush1.bf16.msra.mxu0 0
        %3137 = vmatprep.subr.bf16.mxu0 0
        %3138 = vmatpush1.bf16.msra.mxu0 0
        %3139 = vmatprep.subr.bf16.mxu0 0
        %3140 = vmatpush1.bf16.msra.mxu0 0
        %3141 = vmatprep.subr.bf16.mxu0 0
        %3142 = vmatpush1.bf16.msra.mxu0 0
        %3143 = vmatprep.subr.bf16.mxu0 0
        %3144 = vmatpush1.bf16.msra.mxu0 0
        %3145 = vmatprep.subr.bf16.mxu0 0
        %3146 = vmatpush1.bf16.msra.mxu0 0
        %3147 = vmatprep.subr.bf16.mxu0 0
        %3148 = vmatpush1.bf16.msra.mxu0 0
        %3149 = vmatprep.mubr.bf16.mxu0 0
        %3150 = vmatmul.mubr.bf16.gmra.mrb[0].mxu0 %v3115
        %v3151 = vpop.f32.mrb[0].mxu0
        %v3152 = vadd.f32 %v3100, %v3151
        %v3153 = vpop.f32.mrb[0].mxu0
        %v3154 = vpop.f32.mrb[0].mxu0
        %v3155 = vpop.f32.mrb[0].mxu0
        %3156 = vdwg.mxu0
        %v3157 = vmax.f32 %v3152, 0.0
        %v3158 = vpack.c.bf16 %v3157, %v3157
        %v3159 = vld [vmem:[#allocation36] sm:$0xf]
        %v3160 = vld [vmem:[#allocation36 + $0x4] sm:$0xf]
        %v3161 = vld [vmem:[#allocation36 + $0x8] sm:$0xf]
        %v3162 = vld [vmem:[#allocation36 + $0xc] sm:$0xf]
        %v3163 = vld [vmem:[#allocation36 + $0x10] sm:$0xf]
        %v3164 = vld [vmem:[#allocation36 + $0x14] sm:$0xf]
        %v3165 = vld [vmem:[#allocation36 + $0x18] sm:$0xf]
        %v3166 = vld [vmem:[#allocation36 + $0x1c] sm:$0xf]
        %v3167 = vld [vmem:[#allocation37] sm:$0x1]
        %v3169 = vlaneseq
        %v3170 = vshrl.u32 %v3169, 7
        %v3171 = vsub.s32 0, %v3170
        %v3172 = vrot.slane %v3167, %v3171
        %v3182 = vunpack.c.l.b16 %v3159
        %v3183 = vunpack.c.l.b16 %v3160
        %v3184 = vunpack.c.l.b16 %v3161
        %v3185 = vunpack.c.l.b16 %v3162
        %v3186 = vunpack.c.l.b16 %v3163
        %v3187 = vunpack.c.l.b16 %v3164
        %v3188 = vunpack.c.l.b16 %v3165
        %v3189 = vunpack.c.l.b16 %v3166
        %v3190 = vpack.c.b16 %v3183, %v3182
        %v3191 = vpack.c.b16 %v3185, %v3184
        %v3192 = vpack.c.b16 %v3187, %v3186
        %v3193 = vpack.c.b16 %v3189, %v3188
        %vm3198 = vcmask 523264
        %v3200 = vsel %vm3198, %v3158, 0
        %3202 = vmatprep.subr.bf16.mxu0 0
        %3203 = vmatpush1.bf16.msra.mxu0 %v3190
        %3204 = vmatprep.subr.bf16.mxu0 0
        %3205 = vmatpush1.bf16.msra.mxu0 %v3191
        %3206 = vmatprep.subr.bf16.mxu0 0
        %3207 = vmatpush1.bf16.msra.mxu0 %v3192
        %3208 = vmatprep.subr.bf16.mxu0 0
        %3209 = vmatpush1.bf16.msra.mxu0 %v3193
        %3210 = vmatprep.subr.bf16.mxu0 0
        %3211 = vmatpush1.bf16.msra.mxu0 0
        %3212 = vmatprep.subr.bf16.mxu0 0
        %3213 = vmatpush1.bf16.msra.mxu0 0
        %3214 = vmatprep.subr.bf16.mxu0 0
        %3215 = vmatpush1.bf16.msra.mxu0 0
        %3216 = vmatprep.subr.bf16.mxu0 0
        %3217 = vmatpush1.bf16.msra.mxu0 0
        %3218 = vmatprep.subr.bf16.mxu0 0
        %3219 = vmatpush1.bf16.msra.mxu0 0
        %3220 = vmatprep.subr.bf16.mxu0 0
        %3221 = vmatpush1.bf16.msra.mxu0 0
        %3222 = vmatprep.subr.bf16.mxu0 0
        %3223 = vmatpush1.bf16.msra.mxu0 0
        %3224 = vmatprep.subr.bf16.mxu0 0
        %3225 = vmatpush1.bf16.msra.mxu0 0
        %3226 = vmatprep.subr.bf16.mxu0 0
        %3227 = vmatpush1.bf16.msra.mxu0 0
        %3228 = vmatprep.subr.bf16.mxu0 0
        %3229 = vmatpush1.bf16.msra.mxu0 0
        %3230 = vmatprep.subr.bf16.mxu0 0
        %3231 = vmatpush1.bf16.msra.mxu0 0
        %3232 = vmatprep.subr.bf16.mxu0 0
        %3233 = vmatpush1.bf16.msra.mxu0 0
        %3234 = vmatprep.mubr.bf16.mxu0 0
        %3235 = vmatmul.mubr.bf16.gmra.mrb[0].mxu0 %v3200
        %v3236 = vpop.f32.mrb[0].mxu0
        %v3237 = vadd.f32 %v3172, %v3236
        %v3238 = vpop.f32.mrb[0].mxu0
        %v3239 = vpop.f32.mrb[0].mxu0
        %v3240 = vpop.f32.mrb[0].mxu0
        %3241 = vdwg.mxu0
        %v3242 = vadd.f32 %v3060, %v3237
        %3243 = vst.msk [vmem:[#allocation2] sm:$0xff] %vm1246, %v3242
        %p3244 = scmp.eq.s32.totalorder %s62, 1
        // Predicated region
        $region217: #{decoder_forward.1} parent=115 // pred_check
          %p3245 = pneg %p3244
        $region218: #{decoder_forward.1} parent=115 // pred_check_branch
          %3247 = sbr.rel (%p3245) target = $region220
        $region219: #{decoder_forward.1} parent=115 // pred_region
          %v3248 = vsel %vm1246, %v3242, 0.0
          %3249 = vadd.xlane.f32.xlu0 %v3248
          %v3250 = vpop.xlane.xlu0 %3249
          %v3251 = vmul.f32 %v3250, %v2418
          %v3252 = vsub.f32 %v3242, %v3251
          %v3253 = vmul.f32 %v3252, %v3252
          %v3254 = vsel %vm1246, %v3253, 0.0
          %3255 = vadd.xlane.f32.xlu0 %v3254
          %v3256 = vpop.xlane.xlu0 %3255
          %v3257 = vmul.f32 %v3256, %v2418
          %v3258 = vadd.f32 %v3257, 1e-05
          %v3259 = vrsqrt.pop %v3258
          %v3260 = vmul.f32 %v3252, %v3259
          %v3261 = vld [vmem:[#allocation39] sm:$0x1]
          %v3263 = vlaneseq
          %v3264 = vshrl.u32 %v3263, 7
          %v3265 = vsub.s32 0, %v3264
          %v3266 = vrot.slane %v3261, %v3265
          %v3268 = vmul.f32 %v3260, %v3266
          %v3269 = vld [vmem:[#allocation40] sm:$0x1]
          %v3271 = vlaneseq
          %v3272 = vshrl.u32 %v3271, 7
          %v3273 = vsub.s32 0, %v3272
          %v3274 = vrot.slane %v3269, %v3273
          %v3276 = vadd.f32 %v3268, %v3274
          %3277 = vst.msk [vmem:[%s1139] sm:$0xff] %vm1246, %v3276
        $region220: #{decoder_forward.1} parent=115 // pred_fallthru
          _
        %s3278 = sand.u32 %s601, 1
        %s3279 = scalar_lea.sflag [#allocation6], %s3278
        %s3280 = sand.u32 %s601, 1
        %s3281 = smul.addr %s3280, 8
        %s3282 = scalar_lea.vmem [#allocation42], %s3281
        // Predicated region
        $region221: #{decoder_forward.1} parent=115 // pred_check
          %p3283 = pneg %p611
        $region222: #{decoder_forward.1} parent=115 // pred_check_branch
          %3285 = sbr.rel (%p3283) target = $region224
        $region223: #{decoder_forward.1} parent=115 // pred_region
          %s3287 = ssub.s32 128, 128
          %3288 = vsyncadd %s3279, %s3287
          %s3289 = smul.addr %s61, 128
          %s3290 = scalar_lea.hbm %s24, %s3289
          %s3292 = sshll.u32 %s3282, 4
          %s3293 = int_to_ptr.vmem [resolvable:$true] %s3292
          %3295 = dma.vmem_to_hbm [thread:$0]  %s3293, 128, %s3290, %s3279
        $region224: #{decoder_forward.1} parent=115 // pred_fallthru
          _
      $region116: #{decoder_forward.1} parent=5 // pred_fallthru
        _
      %p3296 = scmp.le.s32.totalorder 2, %s52
      // Predicated region
      $region225: #{decoder_forward.1} parent=5 // pred_check
        %p3297 = pneg %p3296
      $region226: #{decoder_forward.1} parent=5 // pred_check_branch
        %3299 = sbr.rel (%p3297) target = $region228
      $region227: #{decoder_forward.1} parent=5 // pred_region
        %s3300 = ssub.s32 %s52, 2
        // Predicated region
        $region229: #{decoder_forward.1} parent=227 // pred_check
          %p3301 = pneg %p617
        $region230: #{decoder_forward.1} parent=227 // pred_check_branch
          %3303 = sbr.rel (%p3301) target = $region232
        $region231: #{decoder_forward.1} parent=227 // pred_region
          %s3304 = sand.u32 %s602, 1
          %s3305 = scalar_lea.sflag [#allocation6], %s3304
          %s3306 = sand.u32 %s602, 1
          %s3307 = smul.addr %s3306, 8
          %s3308 = scalar_lea.vmem [#allocation42], %s3307
          %3309 = dma.done %s3305, 128
        $region232: #{decoder_forward.1} parent=227 // pred_fallthru
          _
      $region228: #{decoder_forward.1} parent=5 // pred_fallthru
        _
    $region6: #{decoder_forward.1} parent=1 // loop_footer
      %s56 = sadd.s32 1, %s52
    $region7: #{decoder_forward.1} parent=1 // loop_footer_branch
      %51 = sbr.rel target = $region3
    $region8: #{decoder_forward.1} parent=1 // loop_exit
      _
    %3310 = vsyncpa [#allocation5], 1
    %s3311 = scalar_lea.sflag [#allocation5], 1
    %3312 = vsyncpa %s3311, 1
    %3313 = vsyncpa [#allocation8], 1
    %s3314 = scalar_lea.sflag [#allocation8], 1
    %3315 = vsyncpa %s3314, 1
    %3316 = vsyncpa [#allocation11], 1
    %s3317 = scalar_lea.sflag [#allocation11], 1
    %3318 = vsyncpa %s3317, 1
    %3319 = vsyncpa [#allocation14], 1
    %3320 = vsyncpa [#allocation17], 1
    %3321 = vsyncpa [#allocation20], 1
    %3322 = vsyncpa [#allocation23], 1
    %3323 = vsyncpa [#allocation26], 1
    %3324 = vsyncpa [#allocation29], 1
    %3325 = vsyncpa [#allocation32], 1
    %3326 = vsyncpa [#allocation35], 1
    %3327 = vsyncpa [#allocation38], 1
    %3328 = vsyncpa [#allocation41], 1
    %3329 = vsyncpa [#allocation6], 1
    %s3330 = scalar_lea.sflag [#allocation6], 1
    %3331 = vsyncpa %s3330, 1

</llo_original>
